<compile_context>
chip_gen: v6e
topology: v6e:2x2x1
jax: 0.10.0
libtpu: 0.0.40
codegen_flags: <defaults>
</compile_context>

<pallas_src>
import jax
import jax.numpy as jnp
from jax.experimental import pallas as pl
from jax.experimental.pallas import tpu as pltpu

HIDDEN = 32
SEQ_LEN = 8
N_CHARS = 16
BATCH = 2
NOISE_DIM = 128
TAU = 0.75
N_BLOCKS = 5
BL = BATCH * SEQ_LEN  # flattened (batch, seq) rows


# ------------------------------- kernel ----------------------------------- #

def generator_kernel(noise_ref, w1_ref, b1_ref, wa_ref, ba_ref, wb_ref, bb_ref,
                     wc_ref, bc_ref, g_ref, out_ref, x_ref):
    H, L, B = HIDDEN, SEQ_LEN, BATCH

    # ---- fc1: emit channels-last activation directly; scratch row = b*L + l ----
    noise = noise_ref[...]                                           # (B, 128)
    for l in range(L):
        xl = (jnp.dot(noise, w1_ref[l], preferred_element_type=jnp.float32)
              + b1_ref[l])                                           # (B, H)
        for b in range(B):
            x_ref[pl.ds(b * L + l, 1), :] = xl[b:b + 1, :]
    x = x_ref[...]                                                   # (B*L, H)

    # Per-sequence boundary masks along the flattened (b, l) row axis.
    row = jax.lax.broadcasted_iota(jnp.int32, (BL, 1), 0)
    not_first = (row % L) != 0            # position l > 0 within its sequence
    not_last = (row % L) != (L - 1)       # position l < L-1 within its sequence

    zero_row = jnp.zeros((1, H), jnp.float32)

    def conv3(h, w_packed, bias):
        # Conv1d(H, H, kernel_size=3, padding=1), channels-last, both batch rows.
        # out[l] = h[l-1] @ W0 + h[l] @ W1 + h[l+1] @ W2 + b, done as one matmul
        # against the packed (3H, H) weight.
        h_prev = jnp.concatenate([zero_row, h[:-1, :]], axis=0)      # h[l-1]
        h_next = jnp.concatenate([h[1:, :], zero_row], axis=0)       # h[l+1]
        h_prev = jnp.where(not_first, h_prev, 0.0)                   # zero-pad l=0
        h_next = jnp.where(not_last, h_next, 0.0)                    # zero-pad l=L-1
        h3 = jnp.concatenate([h_prev, h, h_next], axis=1)            # (B*L, 3H)
        return jnp.dot(h3, w_packed, preferred_element_type=jnp.float32) + bias

    # ---- 5x ResBlock (statically unrolled, weights indexed with static r) ----
    for r in range(N_BLOCKS):
        h = jnp.maximum(x, 0.0)
        h = conv3(h, wa_ref[r], ba_ref[r])
        h = jnp.maximum(h, 0.0)
        h = conv3(h, wb_ref[r], bb_ref[r])
        x = x + 0.3 * h

    # ---- Conv1d(H, C, kernel_size=1) == channel matmul ----
    logits = (jnp.dot(x, wc_ref[...], preferred_element_type=jnp.float32)
              + bc_ref[...])                                         # (B*L, C)

    # ---- gumbel_softmax(tau=0.75, hard=False) over the char axis ----
    z = (logits + g_ref[...]) * (1.0 / TAU)
    z = z - jnp.max(z, axis=-1, keepdims=True)
    e = jnp.exp(z)
    out_ref[...] = e * pl.reciprocal(jnp.sum(e, axis=-1, keepdims=True), approx=False)


# ------------------------------- wrapper ----------------------------------- #

@jax.jit
def generator_forward(noise, params, gumbel):
    B, H, L, C = BATCH, HIDDEN, SEQ_LEN, N_CHARS
    out2d = pl.pallas_call(
        generator_kernel,
        out_shape=jax.ShapeDtypeStruct((BL, C), jnp.float32),
        grid=(1,),
        in_specs=[
            pl.BlockSpec((B, NOISE_DIM), lambda i: (0, 0)),
            pl.BlockSpec((L, NOISE_DIM, H), lambda i: (0, 0, 0)),
            pl.BlockSpec((L, 1, H), lambda i: (0, 0, 0)),
            pl.BlockSpec((N_BLOCKS, 3 * H, H), lambda i: (0, 0, 0)),
            pl.BlockSpec((N_BLOCKS, 1, H), lambda i: (0, 0, 0)),
            pl.BlockSpec((N_BLOCKS, 3 * H, H), lambda i: (0, 0, 0)),
            pl.BlockSpec((N_BLOCKS, 1, H), lambda i: (0, 0, 0)),
            pl.BlockSpec((H, C), lambda i: (0, 0)),
            pl.BlockSpec((1, C), lambda i: (0, 0)),
            pl.BlockSpec((BL, C), lambda i: (0, 0)),
        ],
        out_specs=pl.BlockSpec((BL, C), lambda i: (0, 0)),
        scratch_shapes=[pltpu.VMEM((BL, H), jnp.float32)],
    )(noise, params["w1"], params["b1"], params["wa"], params["ba"],
      params["wb"], params["bb"], params["wc"], params["bc"], gumbel)
    # Rows are (b, l)-major, so this reshape is a free view -> (B, L, C).
    return out2d.reshape(B, L, C)


# ------------------------ deterministic param init ------------------------- #

def init_params(key):
    H, L, C = HIDDEN, SEQ_LEN, N_CHARS
    keys = jax.random.split(key, 2 + N_BLOCKS * 4 + 2)
    ki = iter(range(len(keys)))

    def unif(k, shape, fan_in):
        bound = 1.0 / (float(fan_in) ** 0.5)
        return jax.random.uniform(k, shape, jnp.float32, -bound, bound)

    params = {}

    # fc1: PyTorch Linear weight (H*L, 128), bias (H*L,). Output index j = h*L + l.
    # Pre-split per sequence position so the kernel directly produces (B*L, H):
    #   w1[l, k, h] = W[h*L + l, k],  b1[l, 0, h] = b[h*L + l]
    w_fc = unif(keys[next(ki)], (H * L, NOISE_DIM), NOISE_DIM)
    b_fc = unif(keys[next(ki)], (H * L,), NOISE_DIM)
    params["w1"] = jnp.transpose(w_fc.reshape(H, L, NOISE_DIM), (1, 2, 0))  # (L,128,H)
    params["b1"] = jnp.transpose(b_fc.reshape(H, L), (1, 0)).reshape(L, 1, H)

    def pack_conv3(w):
        # PyTorch Conv1d weight (out, in, 3) -> packed (3*in, out):
        # rows [0:H]=tap0 (x[l-1]), [H:2H]=tap1 (x[l]), [2H:3H]=tap2 (x[l+1]),
        # each block stored (in, out) so the kernel does h3 @ w_packed.
        return jnp.concatenate(
            [jnp.transpose(w[:, :, t], (1, 0)) for t in range(3)], axis=0)

    wa, ba, wb, bb = [], [], [], []
    for _ in range(N_BLOCKS):
        w = unif(keys[next(ki)], (H, H, 3), H * 3)
        b = unif(keys[next(ki)], (H,), H * 3)
        wa.append(pack_conv3(w)); ba.append(b.reshape(1, H))
        w = unif(keys[next(ki)], (H, H, 3), H * 3)
        b = unif(keys[next(ki)], (H,), H * 3)
        wb.append(pack_conv3(w)); bb.append(b.reshape(1, H))
    params["wa"] = jnp.stack(wa)          # (5, 3H, H)
    params["ba"] = jnp.stack(ba)          # (5, 1, H)
    params["wb"] = jnp.stack(wb)          # (5, 3H, H)
    params["bb"] = jnp.stack(bb)          # (5, 1, H)

    # conv1 (kernel_size=1): PyTorch weight (C, H, 1) -> (H, C)
    wc = unif(keys[next(ki)], (C, H, 1), H)
    params["wc"] = jnp.transpose(wc[:, :, 0], (1, 0))
    params["bc"] = unif(keys[next(ki)], (1, C), H)
    return params


if __name__ == "__main__":
    key = jax.random.PRNGKey(0)
    k_param, k_noise, k_gumbel = jax.random.split(key, 3)

    params = init_params(k_param)
    noise = jax.random.normal(k_noise, (BATCH, NOISE_DIM), jnp.float32)
    # torch's F.gumbel_softmax samples its own standard-Gumbel noise; we sample
    # an equivalent Gumbel draw in JAX (RNG stream differs, distribution matches).
    gumbel = jax.random.gumbel(k_gumbel, (BL, N_CHARS), jnp.float32)

    out = generator_forward(noise, params, gumbel)
    out = jax.block_until_ready(out)

    assert out.shape == (BATCH, SEQ_LEN, N_CHARS)
    assert bool(jnp.all(jnp.isfinite(out)))
    # rows of the gumbel-softmax output must sum to 1
    assert bool(jnp.allclose(jnp.sum(out, axis=-1), 1.0, atol=1e-5))
    print("KERNEL_OK")
</pallas_src>

<mosaic_0001>
module attributes {stable_mosaic.version = 11 : i64} {
  func.func @generator_kernel(%arg0: i32, %arg1: memref<2x128xf32, #tpu.memory_space<vmem>>, %arg2: memref<8x128x32xf32, #tpu.memory_space<vmem>>, %arg3: memref<8x1x32xf32, #tpu.memory_space<vmem>>, %arg4: memref<5x96x32xf32, #tpu.memory_space<vmem>>, %arg5: memref<5x1x32xf32, #tpu.memory_space<vmem>>, %arg6: memref<5x96x32xf32, #tpu.memory_space<vmem>>, %arg7: memref<5x1x32xf32, #tpu.memory_space<vmem>>, %arg8: memref<32x16xf32, #tpu.memory_space<vmem>>, %arg9: memref<1x16xf32, #tpu.memory_space<vmem>>, %arg10: memref<16x16xf32, #tpu.memory_space<vmem>>, %arg11: memref<16x16xf32, #tpu.memory_space<vmem>>, %arg12: memref<16x32xf32, #tpu.memory_space<vmem>>) attributes {dimension_semantics = [#tpu.dimension_semantics<arbitrary>], iteration_bounds = array<i64: 1>, scalar_prefetch = 0 : i64, scratch_operands = 1 : i64, tpu.core_type = #tpu.core_type<tc>, window_params = [{pipeline_mode = #tpu.pipeline_mode<synchronous>, transform_indices = @transform_0, window_bounds = array<i64: 2, 128>}, {pipeline_mode = #tpu.pipeline_mode<synchronous>, transform_indices = @transform_1, window_bounds = array<i64: 8, 128, 32>}, {pipeline_mode = #tpu.pipeline_mode<synchronous>, transform_indices = @transform_2, window_bounds = array<i64: 8, 1, 32>}, {pipeline_mode = #tpu.pipeline_mode<synchronous>, transform_indices = @transform_3, window_bounds = array<i64: 5, 96, 32>}, {pipeline_mode = #tpu.pipeline_mode<synchronous>, transform_indices = @transform_4, window_bounds = array<i64: 5, 1, 32>}, {pipeline_mode = #tpu.pipeline_mode<synchronous>, transform_indices = @transform_5, window_bounds = array<i64: 5, 96, 32>}, {pipeline_mode = #tpu.pipeline_mode<synchronous>, transform_indices = @transform_6, window_bounds = array<i64: 5, 1, 32>}, {pipeline_mode = #tpu.pipeline_mode<synchronous>, transform_indices = @transform_7, window_bounds = array<i64: 32, 16>}, {pipeline_mode = #tpu.pipeline_mode<synchronous>, transform_indices = @transform_8, window_bounds = array<i64: 1, 16>}, {pipeline_mode = #tpu.pipeline_mode<synchronous>, transform_indices = @transform_9, window_bounds = array<i64: 16, 16>}, {pipeline_mode = #tpu.pipeline_mode<synchronous>, transform_indices = @transform_10, window_bounds = array<i64: 16, 16>}]} {
    %c0 = arith.constant 0 : index
    %c0_0 = arith.constant 0 : index
    %0 = vector.load %arg1[%c0, %c0_0] : memref<2x128xf32, #tpu.memory_space<vmem>>, vector<2x128xf32>
    %c0_1 = arith.constant 0 : index
    %c0_2 = arith.constant 0 : index
    %c0_3 = arith.constant 0 : index
    %1 = vector.load %arg2[%c0_1, %c0_2, %c0_3] : memref<8x128x32xf32, #tpu.memory_space<vmem>>, vector<1x128x32xf32>
    %2 = vector.shape_cast %1 : vector<1x128x32xf32> to vector<128x32xf32>
    %cst = arith.constant dense<0.000000e+00> : vector<2x32xf32>
    %3 = tpu.matmul %0, %2, %cst {dimension_numbers = #tpu.dot_dimension_numbers<[1], [0], [0], [1], [0, 0, 1, 1], [], []>} : vector<2x128xf32>, vector<128x32xf32>, vector<2x32xf32> -> vector<2x32xf32>
    %c0_4 = arith.constant 0 : index
    %c0_5 = arith.constant 0 : index
    %c0_6 = arith.constant 0 : index
    %4 = vector.load %arg3[%c0_4, %c0_5, %c0_6] : memref<8x1x32xf32, #tpu.memory_space<vmem>>, vector<1x1x32xf32>
    %5 = vector.shape_cast %4 : vector<1x1x32xf32> to vector<1x32xf32>
    %6 = vector.broadcast %5 : vector<1x32xf32> to vector<2x32xf32>
    %7 = arith.addf %3, %6 : vector<2x32xf32>
    %8 = vector.extract_strided_slice %7 {offsets = [0, 0], sizes = [1, 32], strides = [1, 1]} : vector<2x32xf32> to vector<1x32xf32>
    %c0_7 = arith.constant 0 : index
    %c0_8 = arith.constant 0 : index
    %9 = vector.load %arg12[%c0_7, %c0_8] : memref<16x32xf32, #tpu.memory_space<vmem>>, vector<1x32xf32>
    tpu.vector_store %arg12[%c0_7, %c0_8], %8 {strides = array<i32>} : memref<16x32xf32, #tpu.memory_space<vmem>>, vector<1x32xf32>,
    %10 = vector.extract_strided_slice %7 {offsets = [1, 0], sizes = [1, 32], strides = [1, 1]} : vector<2x32xf32> to vector<1x32xf32>
    %c8 = arith.constant 8 : index
    %c0_9 = arith.constant 0 : index
    %11 = vector.load %arg12[%c8, %c0_9] : memref<16x32xf32, #tpu.memory_space<vmem>>, vector<1x32xf32>
    tpu.vector_store %arg12[%c8, %c0_9], %10 {strides = array<i32>} : memref<16x32xf32, #tpu.memory_space<vmem>>, vector<1x32xf32>,
    %c1 = arith.constant 1 : index
    %c0_10 = arith.constant 0 : index
    %c0_11 = arith.constant 0 : index
    %12 = vector.load %arg2[%c1, %c0_10, %c0_11] : memref<8x128x32xf32, #tpu.memory_space<vmem>>, vector<1x128x32xf32>
    %13 = vector.shape_cast %12 : vector<1x128x32xf32> to vector<128x32xf32>
    %cst_12 = arith.constant dense<0.000000e+00> : vector<2x32xf32>
    %14 = tpu.matmul %0, %13, %cst_12 {dimension_numbers = #tpu.dot_dimension_numbers<[1], [0], [0], [1], [0, 0, 1, 1], [], []>} : vector<2x128xf32>, vector<128x32xf32>, vector<2x32xf32> -> vector<2x32xf32>
    %c1_13 = arith.constant 1 : index
    %c0_14 = arith.constant 0 : index
    %c0_15 = arith.constant 0 : index
    %15 = vector.load %arg3[%c1_13, %c0_14, %c0_15] : memref<8x1x32xf32, #tpu.memory_space<vmem>>, vector<1x1x32xf32>
    %16 = vector.shape_cast %15 : vector<1x1x32xf32> to vector<1x32xf32>
    %17 = vector.broadcast %16 : vector<1x32xf32> to vector<2x32xf32>
    %18 = arith.addf %14, %17 : vector<2x32xf32>
    %19 = vector.extract_strided_slice %18 {offsets = [0, 0], sizes = [1, 32], strides = [1, 1]} : vector<2x32xf32> to vector<1x32xf32>
    %c1_16 = arith.constant 1 : index
    %c0_17 = arith.constant 0 : index
    %20 = vector.load %arg12[%c1_16, %c0_17] : memref<16x32xf32, #tpu.memory_space<vmem>>, vector<1x32xf32>
    tpu.vector_store %arg12[%c1_16, %c0_17], %19 {strides = array<i32>} : memref<16x32xf32, #tpu.memory_space<vmem>>, vector<1x32xf32>,
    %21 = vector.extract_strided_slice %18 {offsets = [1, 0], sizes = [1, 32], strides = [1, 1]} : vector<2x32xf32> to vector<1x32xf32>
    %c9 = arith.constant 9 : index
    %c0_18 = arith.constant 0 : index
    %22 = vector.load %arg12[%c9, %c0_18] : memref<16x32xf32, #tpu.memory_space<vmem>>, vector<1x32xf32>
    tpu.vector_store %arg12[%c9, %c0_18], %21 {strides = array<i32>} : memref<16x32xf32, #tpu.memory_space<vmem>>, vector<1x32xf32>,
    %c2 = arith.constant 2 : index
    %c0_19 = arith.constant 0 : index
    %c0_20 = arith.constant 0 : index
    %23 = vector.load %arg2[%c2, %c0_19, %c0_20] : memref<8x128x32xf32, #tpu.memory_space<vmem>>, vector<1x128x32xf32>
    %24 = vector.shape_cast %23 : vector<1x128x32xf32> to vector<128x32xf32>
    %cst_21 = arith.constant dense<0.000000e+00> : vector<2x32xf32>
    %25 = tpu.matmul %0, %24, %cst_21 {dimension_numbers = #tpu.dot_dimension_numbers<[1], [0], [0], [1], [0, 0, 1, 1], [], []>} : vector<2x128xf32>, vector<128x32xf32>, vector<2x32xf32> -> vector<2x32xf32>
    %c2_22 = arith.constant 2 : index
    %c0_23 = arith.constant 0 : index
    %c0_24 = arith.constant 0 : index
    %26 = vector.load %arg3[%c2_22, %c0_23, %c0_24] : memref<8x1x32xf32, #tpu.memory_space<vmem>>, vector<1x1x32xf32>
    %27 = vector.shape_cast %26 : vector<1x1x32xf32> to vector<1x32xf32>
    %28 = vector.broadcast %27 : vector<1x32xf32> to vector<2x32xf32>
    %29 = arith.addf %25, %28 : vector<2x32xf32>
    %30 = vector.extract_strided_slice %29 {offsets = [0, 0], sizes = [1, 32], strides = [1, 1]} : vector<2x32xf32> to vector<1x32xf32>
    %c2_25 = arith.constant 2 : index
    %c0_26 = arith.constant 0 : index
    %31 = vector.load %arg12[%c2_25, %c0_26] : memref<16x32xf32, #tpu.memory_space<vmem>>, vector<1x32xf32>
    tpu.vector_store %arg12[%c2_25, %c0_26], %30 {strides = array<i32>} : memref<16x32xf32, #tpu.memory_space<vmem>>, vector<1x32xf32>,
    %32 = vector.extract_strided_slice %29 {offsets = [1, 0], sizes = [1, 32], strides = [1, 1]} : vector<2x32xf32> to vector<1x32xf32>
    %c10 = arith.constant 10 : index
    %c0_27 = arith.constant 0 : index
    %33 = vector.load %arg12[%c10, %c0_27] : memref<16x32xf32, #tpu.memory_space<vmem>>, vector<1x32xf32>
    tpu.vector_store %arg12[%c10, %c0_27], %32 {strides = array<i32>} : memref<16x32xf32, #tpu.memory_space<vmem>>, vector<1x32xf32>,
    %c3 = arith.constant 3 : index
    %c0_28 = arith.constant 0 : index
    %c0_29 = arith.constant 0 : index
    %34 = vector.load %arg2[%c3, %c0_28, %c0_29] : memref<8x128x32xf32, #tpu.memory_space<vmem>>, vector<1x128x32xf32>
    %35 = vector.shape_cast %34 : vector<1x128x32xf32> to vector<128x32xf32>
    %cst_30 = arith.constant dense<0.000000e+00> : vector<2x32xf32>
    %36 = tpu.matmul %0, %35, %cst_30 {dimension_numbers = #tpu.dot_dimension_numbers<[1], [0], [0], [1], [0, 0, 1, 1], [], []>} : vector<2x128xf32>, vector<128x32xf32>, vector<2x32xf32> -> vector<2x32xf32>
    %c3_31 = arith.constant 3 : index
    %c0_32 = arith.constant 0 : index
    %c0_33 = arith.constant 0 : index
    %37 = vector.load %arg3[%c3_31, %c0_32, %c0_33] : memref<8x1x32xf32, #tpu.memory_space<vmem>>, vector<1x1x32xf32>
    %38 = vector.shape_cast %37 : vector<1x1x32xf32> to vector<1x32xf32>
    %39 = vector.broadcast %38 : vector<1x32xf32> to vector<2x32xf32>
    %40 = arith.addf %36, %39 : vector<2x32xf32>
    %41 = vector.extract_strided_slice %40 {offsets = [0, 0], sizes = [1, 32], strides = [1, 1]} : vector<2x32xf32> to vector<1x32xf32>
    %c3_34 = arith.constant 3 : index
    %c0_35 = arith.constant 0 : index
    %42 = vector.load %arg12[%c3_34, %c0_35] : memref<16x32xf32, #tpu.memory_space<vmem>>, vector<1x32xf32>
    tpu.vector_store %arg12[%c3_34, %c0_35], %41 {strides = array<i32>} : memref<16x32xf32, #tpu.memory_space<vmem>>, vector<1x32xf32>,
    %43 = vector.extract_strided_slice %40 {offsets = [1, 0], sizes = [1, 32], strides = [1, 1]} : vector<2x32xf32> to vector<1x32xf32>
    %c11 = arith.constant 11 : index
    %c0_36 = arith.constant 0 : index
    %44 = vector.load %arg12[%c11, %c0_36] : memref<16x32xf32, #tpu.memory_space<vmem>>, vector<1x32xf32>
    tpu.vector_store %arg12[%c11, %c0_36], %43 {strides = array<i32>} : memref<16x32xf32, #tpu.memory_space<vmem>>, vector<1x32xf32>,
    %c4 = arith.constant 4 : index
    %c0_37 = arith.constant 0 : index
    %c0_38 = arith.constant 0 : index
    %45 = vector.load %arg2[%c4, %c0_37, %c0_38] : memref<8x128x32xf32, #tpu.memory_space<vmem>>, vector<1x128x32xf32>
    %46 = vector.shape_cast %45 : vector<1x128x32xf32> to vector<128x32xf32>
    %cst_39 = arith.constant dense<0.000000e+00> : vector<2x32xf32>
    %47 = tpu.matmul %0, %46, %cst_39 {dimension_numbers = #tpu.dot_dimension_numbers<[1], [0], [0], [1], [0, 0, 1, 1], [], []>} : vector<2x128xf32>, vector<128x32xf32>, vector<2x32xf32> -> vector<2x32xf32>
    %c4_40 = arith.constant 4 : index
    %c0_41 = arith.constant 0 : index
    %c0_42 = arith.constant 0 : index
    %48 = vector.load %arg3[%c4_40, %c0_41, %c0_42] : memref<8x1x32xf32, #tpu.memory_space<vmem>>, vector<1x1x32xf32>
    %49 = vector.shape_cast %48 : vector<1x1x32xf32> to vector<1x32xf32>
    %50 = vector.broadcast %49 : vector<1x32xf32> to vector<2x32xf32>
    %51 = arith.addf %47, %50 : vector<2x32xf32>
    %52 = vector.extract_strided_slice %51 {offsets = [0, 0], sizes = [1, 32], strides = [1, 1]} : vector<2x32xf32> to vector<1x32xf32>
    %c4_43 = arith.constant 4 : index
    %c0_44 = arith.constant 0 : index
    %53 = vector.load %arg12[%c4_43, %c0_44] : memref<16x32xf32, #tpu.memory_space<vmem>>, vector<1x32xf32>
    tpu.vector_store %arg12[%c4_43, %c0_44], %52 {strides = array<i32>} : memref<16x32xf32, #tpu.memory_space<vmem>>, vector<1x32xf32>,
    %54 = vector.extract_strided_slice %51 {offsets = [1, 0], sizes = [1, 32], strides = [1, 1]} : vector<2x32xf32> to vector<1x32xf32>
    %c12 = arith.constant 12 : index
    %c0_45 = arith.constant 0 : index
    %55 = vector.load %arg12[%c12, %c0_45] : memref<16x32xf32, #tpu.memory_space<vmem>>, vector<1x32xf32>
    tpu.vector_store %arg12[%c12, %c0_45], %54 {strides = array<i32>} : memref<16x32xf32, #tpu.memory_space<vmem>>, vector<1x32xf32>,
    %c5 = arith.constant 5 : index
    %c0_46 = arith.constant 0 : index
    %c0_47 = arith.constant 0 : index
    %56 = vector.load %arg2[%c5, %c0_46, %c0_47] : memref<8x128x32xf32, #tpu.memory_space<vmem>>, vector<1x128x32xf32>
    %57 = vector.shape_cast %56 : vector<1x128x32xf32> to vector<128x32xf32>
    %cst_48 = arith.constant dense<0.000000e+00> : vector<2x32xf32>
    %58 = tpu.matmul %0, %57, %cst_48 {dimension_numbers = #tpu.dot_dimension_numbers<[1], [0], [0], [1], [0, 0, 1, 1], [], []>} : vector<2x128xf32>, vector<128x32xf32>, vector<2x32xf32> -> vector<2x32xf32>
    %c5_49 = arith.constant 5 : index
    %c0_50 = arith.constant 0 : index
    %c0_51 = arith.constant 0 : index
    %59 = vector.load %arg3[%c5_49, %c0_50, %c0_51] : memref<8x1x32xf32, #tpu.memory_space<vmem>>, vector<1x1x32xf32>
    %60 = vector.shape_cast %59 : vector<1x1x32xf32> to vector<1x32xf32>
    %61 = vector.broadcast %60 : vector<1x32xf32> to vector<2x32xf32>
    %62 = arith.addf %58, %61 : vector<2x32xf32>
    %63 = vector.extract_strided_slice %62 {offsets = [0, 0], sizes = [1, 32], strides = [1, 1]} : vector<2x32xf32> to vector<1x32xf32>
    %c5_52 = arith.constant 5 : index
    %c0_53 = arith.constant 0 : index
    %64 = vector.load %arg12[%c5_52, %c0_53] : memref<16x32xf32, #tpu.memory_space<vmem>>, vector<1x32xf32>
    tpu.vector_store %arg12[%c5_52, %c0_53], %63 {strides = array<i32>} : memref<16x32xf32, #tpu.memory_space<vmem>>, vector<1x32xf32>,
    %65 = vector.extract_strided_slice %62 {offsets = [1, 0], sizes = [1, 32], strides = [1, 1]} : vector<2x32xf32> to vector<1x32xf32>
    %c13 = arith.constant 13 : index
    %c0_54 = arith.constant 0 : index
    %66 = vector.load %arg12[%c13, %c0_54] : memref<16x32xf32, #tpu.memory_space<vmem>>, vector<1x32xf32>
    tpu.vector_store %arg12[%c13, %c0_54], %65 {strides = array<i32>} : memref<16x32xf32, #tpu.memory_space<vmem>>, vector<1x32xf32>,
    %c6 = arith.constant 6 : index
    %c0_55 = arith.constant 0 : index
    %c0_56 = arith.constant 0 : index
    %67 = vector.load %arg2[%c6, %c0_55, %c0_56] : memref<8x128x32xf32, #tpu.memory_space<vmem>>, vector<1x128x32xf32>
    %68 = vector.shape_cast %67 : vector<1x128x32xf32> to vector<128x32xf32>
    %cst_57 = arith.constant dense<0.000000e+00> : vector<2x32xf32>
    %69 = tpu.matmul %0, %68, %cst_57 {dimension_numbers = #tpu.dot_dimension_numbers<[1], [0], [0], [1], [0, 0, 1, 1], [], []>} : vector<2x128xf32>, vector<128x32xf32>, vector<2x32xf32> -> vector<2x32xf32>
    %c6_58 = arith.constant 6 : index
    %c0_59 = arith.constant 0 : index
    %c0_60 = arith.constant 0 : index
    %70 = vector.load %arg3[%c6_58, %c0_59, %c0_60] : memref<8x1x32xf32, #tpu.memory_space<vmem>>, vector<1x1x32xf32>
    %71 = vector.shape_cast %70 : vector<1x1x32xf32> to vector<1x32xf32>
    %72 = vector.broadcast %71 : vector<1x32xf32> to vector<2x32xf32>
    %73 = arith.addf %69, %72 : vector<2x32xf32>
    %74 = vector.extract_strided_slice %73 {offsets = [0, 0], sizes = [1, 32], strides = [1, 1]} : vector<2x32xf32> to vector<1x32xf32>
    %c6_61 = arith.constant 6 : index
    %c0_62 = arith.constant 0 : index
    %75 = vector.load %arg12[%c6_61, %c0_62] : memref<16x32xf32, #tpu.memory_space<vmem>>, vector<1x32xf32>
    tpu.vector_store %arg12[%c6_61, %c0_62], %74 {strides = array<i32>} : memref<16x32xf32, #tpu.memory_space<vmem>>, vector<1x32xf32>,
    %76 = vector.extract_strided_slice %73 {offsets = [1, 0], sizes = [1, 32], strides = [1, 1]} : vector<2x32xf32> to vector<1x32xf32>
    %c14 = arith.constant 14 : index
    %c0_63 = arith.constant 0 : index
    %77 = vector.load %arg12[%c14, %c0_63] : memref<16x32xf32, #tpu.memory_space<vmem>>, vector<1x32xf32>
    tpu.vector_store %arg12[%c14, %c0_63], %76 {strides = array<i32>} : memref<16x32xf32, #tpu.memory_space<vmem>>, vector<1x32xf32>,
    %c7 = arith.constant 7 : index
    %c0_64 = arith.constant 0 : index
    %c0_65 = arith.constant 0 : index
    %78 = vector.load %arg2[%c7, %c0_64, %c0_65] : memref<8x128x32xf32, #tpu.memory_space<vmem>>, vector<1x128x32xf32>
    %79 = vector.shape_cast %78 : vector<1x128x32xf32> to vector<128x32xf32>
    %cst_66 = arith.constant dense<0.000000e+00> : vector<2x32xf32>
    %80 = tpu.matmul %0, %79, %cst_66 {dimension_numbers = #tpu.dot_dimension_numbers<[1], [0], [0], [1], [0, 0, 1, 1], [], []>} : vector<2x128xf32>, vector<128x32xf32>, vector<2x32xf32> -> vector<2x32xf32>
    %c7_67 = arith.constant 7 : index
    %c0_68 = arith.constant 0 : index
    %c0_69 = arith.constant 0 : index
    %81 = vector.load %arg3[%c7_67, %c0_68, %c0_69] : memref<8x1x32xf32, #tpu.memory_space<vmem>>, vector<1x1x32xf32>
    %82 = vector.shape_cast %81 : vector<1x1x32xf32> to vector<1x32xf32>
    %83 = vector.broadcast %82 : vector<1x32xf32> to vector<2x32xf32>
    %84 = arith.addf %80, %83 : vector<2x32xf32>
    %85 = vector.extract_strided_slice %84 {offsets = [0, 0], sizes = [1, 32], strides = [1, 1]} : vector<2x32xf32> to vector<1x32xf32>
    %c7_70 = arith.constant 7 : index
    %c0_71 = arith.constant 0 : index
    %86 = vector.load %arg12[%c7_70, %c0_71] : memref<16x32xf32, #tpu.memory_space<vmem>>, vector<1x32xf32>
    tpu.vector_store %arg12[%c7_70, %c0_71], %85 {strides = array<i32>} : memref<16x32xf32, #tpu.memory_space<vmem>>, vector<1x32xf32>,
    %87 = vector.extract_strided_slice %84 {offsets = [1, 0], sizes = [1, 32], strides = [1, 1]} : vector<2x32xf32> to vector<1x32xf32>
    %c15 = arith.constant 15 : index
    %c0_72 = arith.constant 0 : index
    %88 = vector.load %arg12[%c15, %c0_72] : memref<16x32xf32, #tpu.memory_space<vmem>>, vector<1x32xf32>
    tpu.vector_store %arg12[%c15, %c0_72], %87 {strides = array<i32>} : memref<16x32xf32, #tpu.memory_space<vmem>>, vector<1x32xf32>,
    %c0_73 = arith.constant 0 : index
    %c0_74 = arith.constant 0 : index
    %89 = vector.load %arg12[%c0_73, %c0_74] : memref<16x32xf32, #tpu.memory_space<vmem>>, vector<16x32xf32>
    %90 = tpu.iota {dimensions = array<i32: 0>} : vector<16x1xi32>
    %c8_i32 = arith.constant 8 : i32
    %c0_i32 = arith.constant 0 : i32
    %91 = arith.cmpi eq, %c8_i32, %c0_i32 : i32
    %c1_i32 = arith.constant 1 : i32
    %92 = arith.select %91, %c1_i32, %c8_i32 : i32
    %93 = vector.broadcast %92 : i32 to vector<16x1xi32>
    %94 = arith.remsi %90, %93 : vector<16x1xi32>
    %c0_i32_75 = arith.constant 0 : i32
    %95 = vector.broadcast %c0_i32_75 : i32 to vector<16x1xi32>
    %96 = arith.cmpi ne, %94, %95 : vector<16x1xi32>
    %c0_i32_76 = arith.constant 0 : i32
    %97 = vector.broadcast %c0_i32_76 : i32 to vector<16x1xi32>
    %98 = arith.cmpi slt, %94, %97 : vector<16x1xi32>
    %c0_i32_77 = arith.constant 0 : i32
    %99 = arith.cmpi slt, %92, %c0_i32_77 : i32
    %100 = vector.broadcast %99 : i1 to vector<16x1xi1>
    %101 = vector.broadcast %100 : vector<16x1xi1> to vector<16x1xi1>
    %102 = arith.xori %98, %101 : vector<16x1xi1>
    %103 = arith.andi %102, %96 : vector<16x1xi1>
    %104 = vector.broadcast %92 : i32 to vector<16x1xi32>
    %105 = arith.addi %94, %104 : vector<16x1xi32>
    %106 = arith.select %103, %105, %94 : vector<16x1xi1>, vector<16x1xi32>
    %c0_i32_78 = arith.constant 0 : i32
    %107 = vector.broadcast %c0_i32_78 : i32 to vector<16x1xi32>
    %108 = arith.cmpi ne, %106, %107 : vector<16x1xi32>
    %c8_i32_79 = arith.constant 8 : i32
    %c0_i32_80 = arith.constant 0 : i32
    %109 = arith.cmpi eq, %c8_i32_79, %c0_i32_80 : i32
    %c1_i32_81 = arith.constant 1 : i32
    %110 = arith.select %109, %c1_i32_81, %c8_i32_79 : i32
    %111 = vector.broadcast %110 : i32 to vector<16x1xi32>
    %112 = arith.remsi %90, %111 : vector<16x1xi32>
    %c0_i32_82 = arith.constant 0 : i32
    %113 = vector.broadcast %c0_i32_82 : i32 to vector<16x1xi32>
    %114 = arith.cmpi ne, %112, %113 : vector<16x1xi32>
    %c0_i32_83 = arith.constant 0 : i32
    %115 = vector.broadcast %c0_i32_83 : i32 to vector<16x1xi32>
    %116 = arith.cmpi slt, %112, %115 : vector<16x1xi32>
    %c0_i32_84 = arith.constant 0 : i32
    %117 = arith.cmpi slt, %110, %c0_i32_84 : i32
    %118 = vector.broadcast %117 : i1 to vector<16x1xi1>
    %119 = vector.broadcast %118 : vector<16x1xi1> to vector<16x1xi1>
    %120 = arith.xori %116, %119 : vector<16x1xi1>
    %121 = arith.andi %120, %114 : vector<16x1xi1>
    %122 = vector.broadcast %110 : i32 to vector<16x1xi32>
    %123 = arith.addi %112, %122 : vector<16x1xi32>
    %124 = arith.select %121, %123, %112 : vector<16x1xi1>, vector<16x1xi32>
    %c7_i32 = arith.constant 7 : i32
    %125 = vector.broadcast %c7_i32 : i32 to vector<16x1xi32>
    %126 = arith.cmpi ne, %124, %125 : vector<16x1xi32>
    %cst_85 = arith.constant 0.000000e+00 : f32
    %127 = vector.broadcast %cst_85 : f32 to vector<1x32xf32>
    %cst_86 = arith.constant 0.000000e+00 : f32
    %128 = vector.broadcast %cst_86 : f32 to vector<16x32xf32>
    %129 = arith.maximumf %89, %128 : vector<16x32xf32>
    %c0_87 = arith.constant 0 : index
    %c0_88 = arith.constant 0 : index
    %c0_89 = arith.constant 0 : index
    %130 = vector.load %arg4[%c0_87, %c0_88, %c0_89] : memref<5x96x32xf32, #tpu.memory_space<vmem>>, vector<1x96x32xf32>
    %131 = vector.shape_cast %130 : vector<1x96x32xf32> to vector<96x32xf32>
    %c0_90 = arith.constant 0 : index
    %c0_91 = arith.constant 0 : index
    %c0_92 = arith.constant 0 : index
    %132 = vector.load %arg5[%c0_90, %c0_91, %c0_92] : memref<5x1x32xf32, #tpu.memory_space<vmem>>, vector<1x1x32xf32>
    %133 = vector.shape_cast %132 : vector<1x1x32xf32> to vector<1x32xf32>
    %134 = vector.extract_strided_slice %129 {offsets = [0, 0], sizes = [15, 32], strides = [1, 1]} : vector<16x32xf32> to vector<15x32xf32>
    %135 = tpu.concatenate %127, %134 in 0 : vector<1x32xf32>, vector<15x32xf32> -> vector<16x32xf32>
    %136 = vector.extract_strided_slice %129 {offsets = [1, 0], sizes = [15, 32], strides = [1, 1]} : vector<16x32xf32> to vector<15x32xf32>
    %137 = tpu.concatenate %136, %127 in 0 : vector<15x32xf32>, vector<1x32xf32> -> vector<16x32xf32>
    %cst_93 = arith.constant 0.000000e+00 : f32
    %138 = vector.shape_cast %108 : vector<16x1xi1> to vector<16x1xi1>
    %139 = vector.broadcast %138 : vector<16x1xi1> to vector<16x32xi1>
    %140 = vector.broadcast %cst_93 : f32 to vector<16x32xf32>
    %141 = arith.select %139, %135, %140 : vector<16x32xi1>, vector<16x32xf32>
    %cst_94 = arith.constant 0.000000e+00 : f32
    %142 = vector.shape_cast %126 : vector<16x1xi1> to vector<16x1xi1>
    %143 = vector.broadcast %142 : vector<16x1xi1> to vector<16x32xi1>
    %144 = vector.broadcast %cst_94 : f32 to vector<16x32xf32>
    %145 = arith.select %143, %137, %144 : vector<16x32xi1>, vector<16x32xf32>
    %146 = tpu.concatenate %141, %129, %145 in 1 : vector<16x32xf32>, vector<16x32xf32>, vector<16x32xf32> -> vector<16x96xf32>
    %cst_95 = arith.constant dense<0.000000e+00> : vector<16x32xf32>
    %147 = tpu.matmul %146, %131, %cst_95 {dimension_numbers = #tpu.dot_dimension_numbers<[1], [0], [0], [1], [0, 0, 1, 1], [], []>} : vector<16x96xf32>, vector<96x32xf32>, vector<16x32xf32> -> vector<16x32xf32>
    %148 = vector.broadcast %133 : vector<1x32xf32> to vector<16x32xf32>
    %149 = arith.addf %147, %148 : vector<16x32xf32>
    %cst_96 = arith.constant 0.000000e+00 : f32
    %150 = vector.broadcast %cst_96 : f32 to vector<16x32xf32>
    %151 = arith.maximumf %149, %150 : vector<16x32xf32>
    %c0_97 = arith.constant 0 : index
    %c0_98 = arith.constant 0 : index
    %c0_99 = arith.constant 0 : index
    %152 = vector.load %arg6[%c0_97, %c0_98, %c0_99] : memref<5x96x32xf32, #tpu.memory_space<vmem>>, vector<1x96x32xf32>
    %153 = vector.shape_cast %152 : vector<1x96x32xf32> to vector<96x32xf32>
    %c0_100 = arith.constant 0 : index
    %c0_101 = arith.constant 0 : index
    %c0_102 = arith.constant 0 : index
    %154 = vector.load %arg7[%c0_100, %c0_101, %c0_102] : memref<5x1x32xf32, #tpu.memory_space<vmem>>, vector<1x1x32xf32>
    %155 = vector.shape_cast %154 : vector<1x1x32xf32> to vector<1x32xf32>
    %156 = vector.extract_strided_slice %151 {offsets = [0, 0], sizes = [15, 32], strides = [1, 1]} : vector<16x32xf32> to vector<15x32xf32>
    %157 = tpu.concatenate %127, %156 in 0 : vector<1x32xf32>, vector<15x32xf32> -> vector<16x32xf32>
    %158 = vector.extract_strided_slice %151 {offsets = [1, 0], sizes = [15, 32], strides = [1, 1]} : vector<16x32xf32> to vector<15x32xf32>
    %159 = tpu.concatenate %158, %127 in 0 : vector<15x32xf32>, vector<1x32xf32> -> vector<16x32xf32>
    %cst_103 = arith.constant 0.000000e+00 : f32
    %160 = vector.shape_cast %108 : vector<16x1xi1> to vector<16x1xi1>
    %161 = vector.broadcast %160 : vector<16x1xi1> to vector<16x32xi1>
    %162 = vector.broadcast %cst_103 : f32 to vector<16x32xf32>
    %163 = arith.select %161, %157, %162 : vector<16x32xi1>, vector<16x32xf32>
    %cst_104 = arith.constant 0.000000e+00 : f32
    %164 = vector.shape_cast %126 : vector<16x1xi1> to vector<16x1xi1>
    %165 = vector.broadcast %164 : vector<16x1xi1> to vector<16x32xi1>
    %166 = vector.broadcast %cst_104 : f32 to vector<16x32xf32>
    %167 = arith.select %165, %159, %166 : vector<16x32xi1>, vector<16x32xf32>
    %168 = tpu.concatenate %163, %151, %167 in 1 : vector<16x32xf32>, vector<16x32xf32>, vector<16x32xf32> -> vector<16x96xf32>
    %cst_105 = arith.constant dense<0.000000e+00> : vector<16x32xf32>
    %169 = tpu.matmul %168, %153, %cst_105 {dimension_numbers = #tpu.dot_dimension_numbers<[1], [0], [0], [1], [0, 0, 1, 1], [], []>} : vector<16x96xf32>, vector<96x32xf32>, vector<16x32xf32> -> vector<16x32xf32>
    %170 = vector.broadcast %155 : vector<1x32xf32> to vector<16x32xf32>
    %171 = arith.addf %169, %170 : vector<16x32xf32>
    %cst_106 = arith.constant 3.000000e-01 : f32
    %172 = vector.broadcast %cst_106 : f32 to vector<16x32xf32>
    %173 = arith.mulf %172, %171 : vector<16x32xf32>
    %174 = arith.addf %89, %173 : vector<16x32xf32>
    %cst_107 = arith.constant 0.000000e+00 : f32
    %175 = vector.broadcast %cst_107 : f32 to vector<16x32xf32>
    %176 = arith.maximumf %174, %175 : vector<16x32xf32>
    %c1_108 = arith.constant 1 : index
    %c0_109 = arith.constant 0 : index
    %c0_110 = arith.constant 0 : index
    %177 = vector.load %arg4[%c1_108, %c0_109, %c0_110] : memref<5x96x32xf32, #tpu.memory_space<vmem>>, vector<1x96x32xf32>
    %178 = vector.shape_cast %177 : vector<1x96x32xf32> to vector<96x32xf32>
    %c1_111 = arith.constant 1 : index
    %c0_112 = arith.constant 0 : index
    %c0_113 = arith.constant 0 : index
    %179 = vector.load %arg5[%c1_111, %c0_112, %c0_113] : memref<5x1x32xf32, #tpu.memory_space<vmem>>, vector<1x1x32xf32>
    %180 = vector.shape_cast %179 : vector<1x1x32xf32> to vector<1x32xf32>
    %181 = vector.extract_strided_slice %176 {offsets = [0, 0], sizes = [15, 32], strides = [1, 1]} : vector<16x32xf32> to vector<15x32xf32>
    %182 = tpu.concatenate %127, %181 in 0 : vector<1x32xf32>, vector<15x32xf32> -> vector<16x32xf32>
    %183 = vector.extract_strided_slice %176 {offsets = [1, 0], sizes = [15, 32], strides = [1, 1]} : vector<16x32xf32> to vector<15x32xf32>
    %184 = tpu.concatenate %183, %127 in 0 : vector<15x32xf32>, vector<1x32xf32> -> vector<16x32xf32>
    %cst_114 = arith.constant 0.000000e+00 : f32
    %185 = vector.shape_cast %108 : vector<16x1xi1> to vector<16x1xi1>
    %186 = vector.broadcast %185 : vector<16x1xi1> to vector<16x32xi1>
    %187 = vector.broadcast %cst_114 : f32 to vector<16x32xf32>
    %188 = arith.select %186, %182, %187 : vector<16x32xi1>, vector<16x32xf32>
    %cst_115 = arith.constant 0.000000e+00 : f32
    %189 = vector.shape_cast %126 : vector<16x1xi1> to vector<16x1xi1>
    %190 = vector.broadcast %189 : vector<16x1xi1> to vector<16x32xi1>
    %191 = vector.broadcast %cst_115 : f32 to vector<16x32xf32>
    %192 = arith.select %190, %184, %191 : vector<16x32xi1>, vector<16x32xf32>
    %193 = tpu.concatenate %188, %176, %192 in 1 : vector<16x32xf32>, vector<16x32xf32>, vector<16x32xf32> -> vector<16x96xf32>
    %cst_116 = arith.constant dense<0.000000e+00> : vector<16x32xf32>
    %194 = tpu.matmul %193, %178, %cst_116 {dimension_numbers = #tpu.dot_dimension_numbers<[1], [0], [0], [1], [0, 0, 1, 1], [], []>} : vector<16x96xf32>, vector<96x32xf32>, vector<16x32xf32> -> vector<16x32xf32>
    %195 = vector.broadcast %180 : vector<1x32xf32> to vector<16x32xf32>
    %196 = arith.addf %194, %195 : vector<16x32xf32>
    %cst_117 = arith.constant 0.000000e+00 : f32
    %197 = vector.broadcast %cst_117 : f32 to vector<16x32xf32>
    %198 = arith.maximumf %196, %197 : vector<16x32xf32>
    %c1_118 = arith.constant 1 : index
    %c0_119 = arith.constant 0 : index
    %c0_120 = arith.constant 0 : index
    %199 = vector.load %arg6[%c1_118, %c0_119, %c0_120] : memref<5x96x32xf32, #tpu.memory_space<vmem>>, vector<1x96x32xf32>
    %200 = vector.shape_cast %199 : vector<1x96x32xf32> to vector<96x32xf32>
    %c1_121 = arith.constant 1 : index
    %c0_122 = arith.constant 0 : index
    %c0_123 = arith.constant 0 : index
    %201 = vector.load %arg7[%c1_121, %c0_122, %c0_123] : memref<5x1x32xf32, #tpu.memory_space<vmem>>, vector<1x1x32xf32>
    %202 = vector.shape_cast %201 : vector<1x1x32xf32> to vector<1x32xf32>
    %203 = vector.extract_strided_slice %198 {offsets = [0, 0], sizes = [15, 32], strides = [1, 1]} : vector<16x32xf32> to vector<15x32xf32>
    %204 = tpu.concatenate %127, %203 in 0 : vector<1x32xf32>, vector<15x32xf32> -> vector<16x32xf32>
    %205 = vector.extract_strided_slice %198 {offsets = [1, 0], sizes = [15, 32], strides = [1, 1]} : vector<16x32xf32> to vector<15x32xf32>
    %206 = tpu.concatenate %205, %127 in 0 : vector<15x32xf32>, vector<1x32xf32> -> vector<16x32xf32>
    %cst_124 = arith.constant 0.000000e+00 : f32
    %207 = vector.shape_cast %108 : vector<16x1xi1> to vector<16x1xi1>
    %208 = vector.broadcast %207 : vector<16x1xi1> to vector<16x32xi1>
    %209 = vector.broadcast %cst_124 : f32 to vector<16x32xf32>
    %210 = arith.select %208, %204, %209 : vector<16x32xi1>, vector<16x32xf32>
    %cst_125 = arith.constant 0.000000e+00 : f32
    %211 = vector.shape_cast %126 : vector<16x1xi1> to vector<16x1xi1>
    %212 = vector.broadcast %211 : vector<16x1xi1> to vector<16x32xi1>
    %213 = vector.broadcast %cst_125 : f32 to vector<16x32xf32>
    %214 = arith.select %212, %206, %213 : vector<16x32xi1>, vector<16x32xf32>
    %215 = tpu.concatenate %210, %198, %214 in 1 : vector<16x32xf32>, vector<16x32xf32>, vector<16x32xf32> -> vector<16x96xf32>
    %cst_126 = arith.constant dense<0.000000e+00> : vector<16x32xf32>
    %216 = tpu.matmul %215, %200, %cst_126 {dimension_numbers = #tpu.dot_dimension_numbers<[1], [0], [0], [1], [0, 0, 1, 1], [], []>} : vector<16x96xf32>, vector<96x32xf32>, vector<16x32xf32> -> vector<16x32xf32>
    %217 = vector.broadcast %202 : vector<1x32xf32> to vector<16x32xf32>
    %218 = arith.addf %216, %217 : vector<16x32xf32>
    %cst_127 = arith.constant 3.000000e-01 : f32
    %219 = vector.broadcast %cst_127 : f32 to vector<16x32xf32>
    %220 = arith.mulf %219, %218 : vector<16x32xf32>
    %221 = arith.addf %174, %220 : vector<16x32xf32>
    %cst_128 = arith.constant 0.000000e+00 : f32
    %222 = vector.broadcast %cst_128 : f32 to vector<16x32xf32>
    %223 = arith.maximumf %221, %222 : vector<16x32xf32>
    %c2_129 = arith.constant 2 : index
    %c0_130 = arith.constant 0 : index
    %c0_131 = arith.constant 0 : index
    %224 = vector.load %arg4[%c2_129, %c0_130, %c0_131] : memref<5x96x32xf32, #tpu.memory_space<vmem>>, vector<1x96x32xf32>
    %225 = vector.shape_cast %224 : vector<1x96x32xf32> to vector<96x32xf32>
    %c2_132 = arith.constant 2 : index
    %c0_133 = arith.constant 0 : index
    %c0_134 = arith.constant 0 : index
    %226 = vector.load %arg5[%c2_132, %c0_133, %c0_134] : memref<5x1x32xf32, #tpu.memory_space<vmem>>, vector<1x1x32xf32>
    %227 = vector.shape_cast %226 : vector<1x1x32xf32> to vector<1x32xf32>
    %228 = vector.extract_strided_slice %223 {offsets = [0, 0], sizes = [15, 32], strides = [1, 1]} : vector<16x32xf32> to vector<15x32xf32>
    %229 = tpu.concatenate %127, %228 in 0 : vector<1x32xf32>, vector<15x32xf32> -> vector<16x32xf32>
    %230 = vector.extract_strided_slice %223 {offsets = [1, 0], sizes = [15, 32], strides = [1, 1]} : vector<16x32xf32> to vector<15x32xf32>
    %231 = tpu.concatenate %230, %127 in 0 : vector<15x32xf32>, vector<1x32xf32> -> vector<16x32xf32>
    %cst_135 = arith.constant 0.000000e+00 : f32
    %232 = vector.shape_cast %108 : vector<16x1xi1> to vector<16x1xi1>
    %233 = vector.broadcast %232 : vector<16x1xi1> to vector<16x32xi1>
    %234 = vector.broadcast %cst_135 : f32 to vector<16x32xf32>
    %235 = arith.select %233, %229, %234 : vector<16x32xi1>, vector<16x32xf32>
    %cst_136 = arith.constant 0.000000e+00 : f32
    %236 = vector.shape_cast %126 : vector<16x1xi1> to vector<16x1xi1>
    %237 = vector.broadcast %236 : vector<16x1xi1> to vector<16x32xi1>
    %238 = vector.broadcast %cst_136 : f32 to vector<16x32xf32>
    %239 = arith.select %237, %231, %238 : vector<16x32xi1>, vector<16x32xf32>
    %240 = tpu.concatenate %235, %223, %239 in 1 : vector<16x32xf32>, vector<16x32xf32>, vector<16x32xf32> -> vector<16x96xf32>
    %cst_137 = arith.constant dense<0.000000e+00> : vector<16x32xf32>
    %241 = tpu.matmul %240, %225, %cst_137 {dimension_numbers = #tpu.dot_dimension_numbers<[1], [0], [0], [1], [0, 0, 1, 1], [], []>} : vector<16x96xf32>, vector<96x32xf32>, vector<16x32xf32> -> vector<16x32xf32>
    %242 = vector.broadcast %227 : vector<1x32xf32> to vector<16x32xf32>
    %243 = arith.addf %241, %242 : vector<16x32xf32>
    %cst_138 = arith.constant 0.000000e+00 : f32
    %244 = vector.broadcast %cst_138 : f32 to vector<16x32xf32>
    %245 = arith.maximumf %243, %244 : vector<16x32xf32>
    %c2_139 = arith.constant 2 : index
    %c0_140 = arith.constant 0 : index
    %c0_141 = arith.constant 0 : index
    %246 = vector.load %arg6[%c2_139, %c0_140, %c0_141] : memref<5x96x32xf32, #tpu.memory_space<vmem>>, vector<1x96x32xf32>
    %247 = vector.shape_cast %246 : vector<1x96x32xf32> to vector<96x32xf32>
    %c2_142 = arith.constant 2 : index
    %c0_143 = arith.constant 0 : index
    %c0_144 = arith.constant 0 : index
    %248 = vector.load %arg7[%c2_142, %c0_143, %c0_144] : memref<5x1x32xf32, #tpu.memory_space<vmem>>, vector<1x1x32xf32>
    %249 = vector.shape_cast %248 : vector<1x1x32xf32> to vector<1x32xf32>
    %250 = vector.extract_strided_slice %245 {offsets = [0, 0], sizes = [15, 32], strides = [1, 1]} : vector<16x32xf32> to vector<15x32xf32>
    %251 = tpu.concatenate %127, %250 in 0 : vector<1x32xf32>, vector<15x32xf32> -> vector<16x32xf32>
    %252 = vector.extract_strided_slice %245 {offsets = [1, 0], sizes = [15, 32], strides = [1, 1]} : vector<16x32xf32> to vector<15x32xf32>
    %253 = tpu.concatenate %252, %127 in 0 : vector<15x32xf32>, vector<1x32xf32> -> vector<16x32xf32>
    %cst_145 = arith.constant 0.000000e+00 : f32
    %254 = vector.shape_cast %108 : vector<16x1xi1> to vector<16x1xi1>
    %255 = vector.broadcast %254 : vector<16x1xi1> to vector<16x32xi1>
    %256 = vector.broadcast %cst_145 : f32 to vector<16x32xf32>
    %257 = arith.select %255, %251, %256 : vector<16x32xi1>, vector<16x32xf32>
    %cst_146 = arith.constant 0.000000e+00 : f32
    %258 = vector.shape_cast %126 : vector<16x1xi1> to vector<16x1xi1>
    %259 = vector.broadcast %258 : vector<16x1xi1> to vector<16x32xi1>
    %260 = vector.broadcast %cst_146 : f32 to vector<16x32xf32>
    %261 = arith.select %259, %253, %260 : vector<16x32xi1>, vector<16x32xf32>
    %262 = tpu.concatenate %257, %245, %261 in 1 : vector<16x32xf32>, vector<16x32xf32>, vector<16x32xf32> -> vector<16x96xf32>
    %cst_147 = arith.constant dense<0.000000e+00> : vector<16x32xf32>
    %263 = tpu.matmul %262, %247, %cst_147 {dimension_numbers = #tpu.dot_dimension_numbers<[1], [0], [0], [1], [0, 0, 1, 1], [], []>} : vector<16x96xf32>, vector<96x32xf32>, vector<16x32xf32> -> vector<16x32xf32>
    %264 = vector.broadcast %249 : vector<1x32xf32> to vector<16x32xf32>
    %265 = arith.addf %263, %264 : vector<16x32xf32>
    %cst_148 = arith.constant 3.000000e-01 : f32
    %266 = vector.broadcast %cst_148 : f32 to vector<16x32xf32>
    %267 = arith.mulf %266, %265 : vector<16x32xf32>
    %268 = arith.addf %221, %267 : vector<16x32xf32>
    %cst_149 = arith.constant 0.000000e+00 : f32
    %269 = vector.broadcast %cst_149 : f32 to vector<16x32xf32>
    %270 = arith.maximumf %268, %269 : vector<16x32xf32>
    %c3_150 = arith.constant 3 : index
    %c0_151 = arith.constant 0 : index
    %c0_152 = arith.constant 0 : index
    %271 = vector.load %arg4[%c3_150, %c0_151, %c0_152] : memref<5x96x32xf32, #tpu.memory_space<vmem>>, vector<1x96x32xf32>
    %272 = vector.shape_cast %271 : vector<1x96x32xf32> to vector<96x32xf32>
    %c3_153 = arith.constant 3 : index
    %c0_154 = arith.constant 0 : index
    %c0_155 = arith.constant 0 : index
    %273 = vector.load %arg5[%c3_153, %c0_154, %c0_155] : memref<5x1x32xf32, #tpu.memory_space<vmem>>, vector<1x1x32xf32>
    %274 = vector.shape_cast %273 : vector<1x1x32xf32> to vector<1x32xf32>
    %275 = vector.extract_strided_slice %270 {offsets = [0, 0], sizes = [15, 32], strides = [1, 1]} : vector<16x32xf32> to vector<15x32xf32>
    %276 = tpu.concatenate %127, %275 in 0 : vector<1x32xf32>, vector<15x32xf32> -> vector<16x32xf32>
    %277 = vector.extract_strided_slice %270 {offsets = [1, 0], sizes = [15, 32], strides = [1, 1]} : vector<16x32xf32> to vector<15x32xf32>
    %278 = tpu.concatenate %277, %127 in 0 : vector<15x32xf32>, vector<1x32xf32> -> vector<16x32xf32>
    %cst_156 = arith.constant 0.000000e+00 : f32
    %279 = vector.shape_cast %108 : vector<16x1xi1> to vector<16x1xi1>
    %280 = vector.broadcast %279 : vector<16x1xi1> to vector<16x32xi1>
    %281 = vector.broadcast %cst_156 : f32 to vector<16x32xf32>
    %282 = arith.select %280, %276, %281 : vector<16x32xi1>, vector<16x32xf32>
    %cst_157 = arith.constant 0.000000e+00 : f32
    %283 = vector.shape_cast %126 : vector<16x1xi1> to vector<16x1xi1>
    %284 = vector.broadcast %283 : vector<16x1xi1> to vector<16x32xi1>
    %285 = vector.broadcast %cst_157 : f32 to vector<16x32xf32>
    %286 = arith.select %284, %278, %285 : vector<16x32xi1>, vector<16x32xf32>
    %287 = tpu.concatenate %282, %270, %286 in 1 : vector<16x32xf32>, vector<16x32xf32>, vector<16x32xf32> -> vector<16x96xf32>
    %cst_158 = arith.constant dense<0.000000e+00> : vector<16x32xf32>
    %288 = tpu.matmul %287, %272, %cst_158 {dimension_numbers = #tpu.dot_dimension_numbers<[1], [0], [0], [1], [0, 0, 1, 1], [], []>} : vector<16x96xf32>, vector<96x32xf32>, vector<16x32xf32> -> vector<16x32xf32>
    %289 = vector.broadcast %274 : vector<1x32xf32> to vector<16x32xf32>
    %290 = arith.addf %288, %289 : vector<16x32xf32>
    %cst_159 = arith.constant 0.000000e+00 : f32
    %291 = vector.broadcast %cst_159 : f32 to vector<16x32xf32>
    %292 = arith.maximumf %290, %291 : vector<16x32xf32>
    %c3_160 = arith.constant 3 : index
    %c0_161 = arith.constant 0 : index
    %c0_162 = arith.constant 0 : index
    %293 = vector.load %arg6[%c3_160, %c0_161, %c0_162] : memref<5x96x32xf32, #tpu.memory_space<vmem>>, vector<1x96x32xf32>
    %294 = vector.shape_cast %293 : vector<1x96x32xf32> to vector<96x32xf32>
    %c3_163 = arith.constant 3 : index
    %c0_164 = arith.constant 0 : index
    %c0_165 = arith.constant 0 : index
    %295 = vector.load %arg7[%c3_163, %c0_164, %c0_165] : memref<5x1x32xf32, #tpu.memory_space<vmem>>, vector<1x1x32xf32>
    %296 = vector.shape_cast %295 : vector<1x1x32xf32> to vector<1x32xf32>
    %297 = vector.extract_strided_slice %292 {offsets = [0, 0], sizes = [15, 32], strides = [1, 1]} : vector<16x32xf32> to vector<15x32xf32>
    %298 = tpu.concatenate %127, %297 in 0 : vector<1x32xf32>, vector<15x32xf32> -> vector<16x32xf32>
    %299 = vector.extract_strided_slice %292 {offsets = [1, 0], sizes = [15, 32], strides = [1, 1]} : vector<16x32xf32> to vector<15x32xf32>
    %300 = tpu.concatenate %299, %127 in 0 : vector<15x32xf32>, vector<1x32xf32> -> vector<16x32xf32>
    %cst_166 = arith.constant 0.000000e+00 : f32
    %301 = vector.shape_cast %108 : vector<16x1xi1> to vector<16x1xi1>
    %302 = vector.broadcast %301 : vector<16x1xi1> to vector<16x32xi1>
    %303 = vector.broadcast %cst_166 : f32 to vector<16x32xf32>
    %304 = arith.select %302, %298, %303 : vector<16x32xi1>, vector<16x32xf32>
    %cst_167 = arith.constant 0.000000e+00 : f32
    %305 = vector.shape_cast %126 : vector<16x1xi1> to vector<16x1xi1>
    %306 = vector.broadcast %305 : vector<16x1xi1> to vector<16x32xi1>
    %307 = vector.broadcast %cst_167 : f32 to vector<16x32xf32>
    %308 = arith.select %306, %300, %307 : vector<16x32xi1>, vector<16x32xf32>
    %309 = tpu.concatenate %304, %292, %308 in 1 : vector<16x32xf32>, vector<16x32xf32>, vector<16x32xf32> -> vector<16x96xf32>
    %cst_168 = arith.constant dense<0.000000e+00> : vector<16x32xf32>
    %310 = tpu.matmul %309, %294, %cst_168 {dimension_numbers = #tpu.dot_dimension_numbers<[1], [0], [0], [1], [0, 0, 1, 1], [], []>} : vector<16x96xf32>, vector<96x32xf32>, vector<16x32xf32> -> vector<16x32xf32>
    %311 = vector.broadcast %296 : vector<1x32xf32> to vector<16x32xf32>
    %312 = arith.addf %310, %311 : vector<16x32xf32>
    %cst_169 = arith.constant 3.000000e-01 : f32
    %313 = vector.broadcast %cst_169 : f32 to vector<16x32xf32>
    %314 = arith.mulf %313, %312 : vector<16x32xf32>
    %315 = arith.addf %268, %314 : vector<16x32xf32>
    %cst_170 = arith.constant 0.000000e+00 : f32
    %316 = vector.broadcast %cst_170 : f32 to vector<16x32xf32>
    %317 = arith.maximumf %315, %316 : vector<16x32xf32>
    %c4_171 = arith.constant 4 : index
    %c0_172 = arith.constant 0 : index
    %c0_173 = arith.constant 0 : index
    %318 = vector.load %arg4[%c4_171, %c0_172, %c0_173] : memref<5x96x32xf32, #tpu.memory_space<vmem>>, vector<1x96x32xf32>
    %319 = vector.shape_cast %318 : vector<1x96x32xf32> to vector<96x32xf32>
    %c4_174 = arith.constant 4 : index
    %c0_175 = arith.constant 0 : index
    %c0_176 = arith.constant 0 : index
    %320 = vector.load %arg5[%c4_174, %c0_175, %c0_176] : memref<5x1x32xf32, #tpu.memory_space<vmem>>, vector<1x1x32xf32>
    %321 = vector.shape_cast %320 : vector<1x1x32xf32> to vector<1x32xf32>
    %322 = vector.extract_strided_slice %317 {offsets = [0, 0], sizes = [15, 32], strides = [1, 1]} : vector<16x32xf32> to vector<15x32xf32>
    %323 = tpu.concatenate %127, %322 in 0 : vector<1x32xf32>, vector<15x32xf32> -> vector<16x32xf32>
    %324 = vector.extract_strided_slice %317 {offsets = [1, 0], sizes = [15, 32], strides = [1, 1]} : vector<16x32xf32> to vector<15x32xf32>
    %325 = tpu.concatenate %324, %127 in 0 : vector<15x32xf32>, vector<1x32xf32> -> vector<16x32xf32>
    %cst_177 = arith.constant 0.000000e+00 : f32
    %326 = vector.shape_cast %108 : vector<16x1xi1> to vector<16x1xi1>
    %327 = vector.broadcast %326 : vector<16x1xi1> to vector<16x32xi1>
    %328 = vector.broadcast %cst_177 : f32 to vector<16x32xf32>
    %329 = arith.select %327, %323, %328 : vector<16x32xi1>, vector<16x32xf32>
    %cst_178 = arith.constant 0.000000e+00 : f32
    %330 = vector.shape_cast %126 : vector<16x1xi1> to vector<16x1xi1>
    %331 = vector.broadcast %330 : vector<16x1xi1> to vector<16x32xi1>
    %332 = vector.broadcast %cst_178 : f32 to vector<16x32xf32>
    %333 = arith.select %331, %325, %332 : vector<16x32xi1>, vector<16x32xf32>
    %334 = tpu.concatenate %329, %317, %333 in 1 : vector<16x32xf32>, vector<16x32xf32>, vector<16x32xf32> -> vector<16x96xf32>
    %cst_179 = arith.constant dense<0.000000e+00> : vector<16x32xf32>
    %335 = tpu.matmul %334, %319, %cst_179 {dimension_numbers = #tpu.dot_dimension_numbers<[1], [0], [0], [1], [0, 0, 1, 1], [], []>} : vector<16x96xf32>, vector<96x32xf32>, vector<16x32xf32> -> vector<16x32xf32>
    %336 = vector.broadcast %321 : vector<1x32xf32> to vector<16x32xf32>
    %337 = arith.addf %335, %336 : vector<16x32xf32>
    %cst_180 = arith.constant 0.000000e+00 : f32
    %338 = vector.broadcast %cst_180 : f32 to vector<16x32xf32>
    %339 = arith.maximumf %337, %338 : vector<16x32xf32>
    %c4_181 = arith.constant 4 : index
    %c0_182 = arith.constant 0 : index
    %c0_183 = arith.constant 0 : index
    %340 = vector.load %arg6[%c4_181, %c0_182, %c0_183] : memref<5x96x32xf32, #tpu.memory_space<vmem>>, vector<1x96x32xf32>
    %341 = vector.shape_cast %340 : vector<1x96x32xf32> to vector<96x32xf32>
    %c4_184 = arith.constant 4 : index
    %c0_185 = arith.constant 0 : index
    %c0_186 = arith.constant 0 : index
    %342 = vector.load %arg7[%c4_184, %c0_185, %c0_186] : memref<5x1x32xf32, #tpu.memory_space<vmem>>, vector<1x1x32xf32>
    %343 = vector.shape_cast %342 : vector<1x1x32xf32> to vector<1x32xf32>
    %344 = vector.extract_strided_slice %339 {offsets = [0, 0], sizes = [15, 32], strides = [1, 1]} : vector<16x32xf32> to vector<15x32xf32>
    %345 = tpu.concatenate %127, %344 in 0 : vector<1x32xf32>, vector<15x32xf32> -> vector<16x32xf32>
    %346 = vector.extract_strided_slice %339 {offsets = [1, 0], sizes = [15, 32], strides = [1, 1]} : vector<16x32xf32> to vector<15x32xf32>
    %347 = tpu.concatenate %346, %127 in 0 : vector<15x32xf32>, vector<1x32xf32> -> vector<16x32xf32>
    %cst_187 = arith.constant 0.000000e+00 : f32
    %348 = vector.shape_cast %108 : vector<16x1xi1> to vector<16x1xi1>
    %349 = vector.broadcast %348 : vector<16x1xi1> to vector<16x32xi1>
    %350 = vector.broadcast %cst_187 : f32 to vector<16x32xf32>
    %351 = arith.select %349, %345, %350 : vector<16x32xi1>, vector<16x32xf32>
    %cst_188 = arith.constant 0.000000e+00 : f32
    %352 = vector.shape_cast %126 : vector<16x1xi1> to vector<16x1xi1>
    %353 = vector.broadcast %352 : vector<16x1xi1> to vector<16x32xi1>
    %354 = vector.broadcast %cst_188 : f32 to vector<16x32xf32>
    %355 = arith.select %353, %347, %354 : vector<16x32xi1>, vector<16x32xf32>
    %356 = tpu.concatenate %351, %339, %355 in 1 : vector<16x32xf32>, vector<16x32xf32>, vector<16x32xf32> -> vector<16x96xf32>
    %cst_189 = arith.constant dense<0.000000e+00> : vector<16x32xf32>
    %357 = tpu.matmul %356, %341, %cst_189 {dimension_numbers = #tpu.dot_dimension_numbers<[1], [0], [0], [1], [0, 0, 1, 1], [], []>} : vector<16x96xf32>, vector<96x32xf32>, vector<16x32xf32> -> vector<16x32xf32>
    %358 = vector.broadcast %343 : vector<1x32xf32> to vector<16x32xf32>
    %359 = arith.addf %357, %358 : vector<16x32xf32>
    %cst_190 = arith.constant 3.000000e-01 : f32
    %360 = vector.broadcast %cst_190 : f32 to vector<16x32xf32>
    %361 = arith.mulf %360, %359 : vector<16x32xf32>
    %362 = arith.addf %315, %361 : vector<16x32xf32>
    %c0_191 = arith.constant 0 : index
    %c0_192 = arith.constant 0 : index
    %363 = vector.load %arg8[%c0_191, %c0_192] : memref<32x16xf32, #tpu.memory_space<vmem>>, vector<32x16xf32>
    %cst_193 = arith.constant dense<0.000000e+00> : vector<16x16xf32>
    %364 = tpu.matmul %362, %363, %cst_193 {dimension_numbers = #tpu.dot_dimension_numbers<[1], [0], [0], [1], [0, 0, 1, 1], [], []>} : vector<16x32xf32>, vector<32x16xf32>, vector<16x16xf32> -> vector<16x16xf32>
    %c0_194 = arith.constant 0 : index
    %c0_195 = arith.constant 0 : index
    %365 = vector.load %arg9[%c0_194, %c0_195] : memref<1x16xf32, #tpu.memory_space<vmem>>, vector<1x16xf32>
    %366 = vector.broadcast %365 : vector<1x16xf32> to vector<16x16xf32>
    %367 = arith.addf %364, %366 : vector<16x16xf32>
    %c0_196 = arith.constant 0 : index
    %c0_197 = arith.constant 0 : index
    %368 = vector.load %arg10[%c0_196, %c0_197] : memref<16x16xf32, #tpu.memory_space<vmem>>, vector<16x16xf32>
    %369 = arith.addf %367, %368 : vector<16x16xf32>
    %cst_198 = arith.constant 1.33333337 : f32
    %370 = vector.broadcast %cst_198 : f32 to vector<16x16xf32>
    %371 = arith.mulf %369, %370 : vector<16x16xf32>
    %cst_199 = arith.constant dense<0xFF800000> : vector<16xf32>
    %372 = vector.multi_reduction <maximumf>, %371, %cst_199 [1] : vector<16x16xf32> to vector<16xf32>
    %373 = vector.shape_cast %372 : vector<16xf32> to vector<16x1xf32>
    %374 = vector.broadcast %373 : vector<16x1xf32> to vector<16x16xf32>
    %375 = arith.subf %371, %374 : vector<16x16xf32>
    %376 = math.exp %375 : vector<16x16xf32>
    %cst_200 = arith.constant dense<0.000000e+00> : vector<16xf32>
    %377 = vector.multi_reduction <add>, %376, %cst_200 [1] : vector<16x16xf32> to vector<16xf32>
    %378 = vector.shape_cast %377 : vector<16xf32> to vector<16x1xf32>
    %379 = tpu.reciprocal %378 : vector<16x1xf32> -> vector<16x1xf32>
    %380 = vector.broadcast %379 : vector<16x1xf32> to vector<16x16xf32>
    %381 = arith.mulf %376, %380 : vector<16x16xf32>
    %c0_201 = arith.constant 0 : index
    %c0_202 = arith.constant 0 : index
    %382 = vector.load %arg11[%c0_201, %c0_202] : memref<16x16xf32, #tpu.memory_space<vmem>>, vector<16x16xf32>
    tpu.vector_store %arg11[%c0_201, %c0_202], %381 {strides = array<i32>} : memref<16x16xf32, #tpu.memory_space<vmem>>, vector<16x16xf32>,
    return
  }
  func.func @transform_0(%arg0: i32) -> (i32, i32) {
    %c0_i32 = arith.constant 0 : i32
    %c0_i32_0 = arith.constant 0 : i32
    %c0_i32_1 = arith.constant 0 : i32
    return %c0_i32, %c0_i32_0 : i32, i32
  }
  func.func @transform_1(%arg0: i32) -> (i32, i32, i32) {
    %c0_i32 = arith.constant 0 : i32
    %c0_i32_0 = arith.constant 0 : i32
    %c0_i32_1 = arith.constant 0 : i32
    %c0_i32_2 = arith.constant 0 : i32
    return %c0_i32, %c0_i32_0, %c0_i32_1 : i32, i32, i32
  }
  func.func @transform_2(%arg0: i32) -> (i32, i32, i32) {
    %c0_i32 = arith.constant 0 : i32
    %c0_i32_0 = arith.constant 0 : i32
    %c0_i32_1 = arith.constant 0 : i32
    %c0_i32_2 = arith.constant 0 : i32
    return %c0_i32, %c0_i32_0, %c0_i32_1 : i32, i32, i32
  }
  func.func @transform_3(%arg0: i32) -> (i32, i32, i32) {
    %c0_i32 = arith.constant 0 : i32
    %c0_i32_0 = arith.constant 0 : i32
    %c0_i32_1 = arith.constant 0 : i32
    %c0_i32_2 = arith.constant 0 : i32
    return %c0_i32, %c0_i32_0, %c0_i32_1 : i32, i32, i32
  }
  func.func @transform_4(%arg0: i32) -> (i32, i32, i32) {
    %c0_i32 = arith.constant 0 : i32
    %c0_i32_0 = arith.constant 0 : i32
    %c0_i32_1 = arith.constant 0 : i32
    %c0_i32_2 = arith.constant 0 : i32
    return %c0_i32, %c0_i32_0, %c0_i32_1 : i32, i32, i32
  }
  func.func @transform_5(%arg0: i32) -> (i32, i32, i32) {
    %c0_i32 = arith.constant 0 : i32
    %c0_i32_0 = arith.constant 0 : i32
    %c0_i32_1 = arith.constant 0 : i32
    %c0_i32_2 = arith.constant 0 : i32
    return %c0_i32, %c0_i32_0, %c0_i32_1 : i32, i32, i32
  }
  func.func @transform_6(%arg0: i32) -> (i32, i32, i32) {
    %c0_i32 = arith.constant 0 : i32
    %c0_i32_0 = arith.constant 0 : i32
    %c0_i32_1 = arith.constant 0 : i32
    %c0_i32_2 = arith.constant 0 : i32
    return %c0_i32, %c0_i32_0, %c0_i32_1 : i32, i32, i32
  }
  func.func @transform_7(%arg0: i32) -> (i32, i32) {
    %c0_i32 = arith.constant 0 : i32
    %c0_i32_0 = arith.constant 0 : i32
    %c0_i32_1 = arith.constant 0 : i32
    return %c0_i32, %c0_i32_0 : i32, i32
  }
  func.func @transform_8(%arg0: i32) -> (i32, i32) {
    %c0_i32 = arith.constant 0 : i32
    %c0_i32_0 = arith.constant 0 : i32
    %c0_i32_1 = arith.constant 0 : i32
    return %c0_i32, %c0_i32_0 : i32, i32
  }
  func.func @transform_9(%arg0: i32) -> (i32, i32) {
    %c0_i32 = arith.constant 0 : i32
    %c0_i32_0 = arith.constant 0 : i32
    %c0_i32_1 = arith.constant 0 : i32
    return %c0_i32, %c0_i32_0 : i32, i32
  }
  func.func @transform_10(%arg0: i32) -> (i32, i32) {
    %c0_i32 = arith.constant 0 : i32
    %c0_i32_0 = arith.constant 0 : i32
    %c0_i32_1 = arith.constant 0 : i32
    return %c0_i32, %c0_i32_0 : i32, i32
  }
}

</mosaic_0001>

<llo_original>
// kernel: generator_forward.1
$region0: #{generator_forward.1}
  #allocation0 [shape = 'u32[]', space=smem, size = 0x4, offset = 0x4, fixed_abs, tag = 'smem constant byte address 0x4 - core index']
  #allocation1 [shape = 'u32[144,128]{1,0:T(1,128)}', space=vmem, size = 0x12000, scoped, tag = 'internal scratch']
  #allocation2 [shape = 'f32[16,32]{1,0:T(8,128)}', space=vmem, size = 0x2000, scoped, tag = 'scratch operand']
  %s0 = inlined_call_operand.vmem [shape: f32[2,128], index: 0, kind: input, shape index: {}]
  %s1 = inlined_call_operand.vmem [shape: f32[8,128,32], index: 1, kind: input, shape index: {}]
  %s2 = inlined_call_operand.vmem [shape: f32[8,1,32], index: 2, kind: input, shape index: {}]
  %s3 = inlined_call_operand.vmem [shape: f32[5,96,32], index: 3, kind: input, shape index: {}]
  %s4 = inlined_call_operand.vmem [shape: f32[5,1,32], index: 4, kind: input, shape index: {}]
  %s5 = inlined_call_operand.vmem [shape: f32[5,96,32], index: 5, kind: input, shape index: {}]
  %s6 = inlined_call_operand.vmem [shape: f32[5,1,32], index: 6, kind: input, shape index: {}]
  %s7 = inlined_call_operand.vmem [shape: f32[32,16], index: 7, kind: input, shape index: {}]
  %s8 = inlined_call_operand.vmem [shape: f32[1,16], index: 8, kind: input, shape index: {}]
  %s9 = inlined_call_operand.vmem [shape: f32[16,16], index: 9, kind: input, shape index: {}]
  %s10 = inlined_call_operand.hbm [shape: f32[16,16], index: 10, kind: output, shape index: {}]
  %s11 = sld [smem:[#allocation0]]
  $region50: #{generator_forward.1} parent=0
    _
  %s13 = ssub.s32 1, %s11
  %s14 = scalar_select 0, %s13, %s11
  $region1: #{generator_forward.1} parent=0
    #allocation3 [shape = 'u8[8192]{0}', space=vmem, size = 0x2000, scoped, tag = 'output window, operand 0, single buffered']
    #allocation4 [shape = 's32[1]{0}', space=sflag, size = 0x4, scoped, tag = 'scoped memory for generator_forward.1']
    %15 = vsyncpa [#allocation4], 0
    // Predicated region
    $region2: #{generator_forward.1} parent=1 // pred_check
      _
    $region3: #{generator_forward.1} parent=1 // pred_check_branch
      %17 = sbr.rel (0) target = $region5
    $region4: #{generator_forward.1} parent=1 // pred_region
      _
    $region5: #{generator_forward.1} parent=1 // pred_fallthru
      _
    // Predicated region
    $region6: #{generator_forward.1} parent=1 // pred_check
      _
    $region7: #{generator_forward.1} parent=1 // pred_check_branch
      %19 = sbr.rel (0) target = $region9
    $region8: #{generator_forward.1} parent=1 // pred_region
      _
    $region9: #{generator_forward.1} parent=1 // pred_fallthru
      _
    // Predicated region
    $region10: #{generator_forward.1} parent=1 // pred_check
      _
    $region11: #{generator_forward.1} parent=1 // pred_check_branch
      %21 = sbr.rel (0) target = $region13
    $region12: #{generator_forward.1} parent=1 // pred_region
      _
    $region13: #{generator_forward.1} parent=1 // pred_fallthru
      _
    // Predicated region
    $region14: #{generator_forward.1} parent=1 // pred_check
      _
    $region15: #{generator_forward.1} parent=1 // pred_check_branch
      %23 = sbr.rel (0) target = $region17
    $region16: #{generator_forward.1} parent=1 // pred_region
      _
    $region17: #{generator_forward.1} parent=1 // pred_fallthru
      _
    // Predicated region
    $region18: #{generator_forward.1} parent=1 // pred_check
      _
    $region19: #{generator_forward.1} parent=1 // pred_check_branch
      %25 = sbr.rel (0) target = $region21
    $region20: #{generator_forward.1} parent=1 // pred_region
      _
    $region21: #{generator_forward.1} parent=1 // pred_fallthru
      _
    // Predicated region
    $region22: #{generator_forward.1} parent=1 // pred_check
      _
    $region23: #{generator_forward.1} parent=1 // pred_check_branch
      %27 = sbr.rel (0) target = $region25
    $region24: #{generator_forward.1} parent=1 // pred_region
      _
    $region25: #{generator_forward.1} parent=1 // pred_fallthru
      _
    // Predicated region
    $region26: #{generator_forward.1} parent=1 // pred_check
      _
    $region27: #{generator_forward.1} parent=1 // pred_check_branch
      %29 = sbr.rel (0) target = $region29
    $region28: #{generator_forward.1} parent=1 // pred_region
      _
    $region29: #{generator_forward.1} parent=1 // pred_fallthru
      _
    // Predicated region
    $region30: #{generator_forward.1} parent=1 // pred_check
      _
    $region31: #{generator_forward.1} parent=1 // pred_check_branch
      %31 = sbr.rel (0) target = $region33
    $region32: #{generator_forward.1} parent=1 // pred_region
      _
    $region33: #{generator_forward.1} parent=1 // pred_fallthru
      _
    // Predicated region
    $region34: #{generator_forward.1} parent=1 // pred_check
      _
    $region35: #{generator_forward.1} parent=1 // pred_check_branch
      %33 = sbr.rel (0) target = $region37
    $region36: #{generator_forward.1} parent=1 // pred_region
      _
    $region37: #{generator_forward.1} parent=1 // pred_fallthru
      _
    // Predicated region
    $region38: #{generator_forward.1} parent=1 // pred_check
      _
    $region39: #{generator_forward.1} parent=1 // pred_check_branch
      %35 = sbr.rel (0) target = $region41
    $region40: #{generator_forward.1} parent=1 // pred_region
      _
    $region41: #{generator_forward.1} parent=1 // pred_fallthru
      _
    %v36 = vld [vmem:[%s0] sm:$0x3]
    %v37 = vld [vmem:[%s1] sm:$0xff]
    %v38 = vld [vmem:[%s1 + $0x8] sm:$0xff]
    %v39 = vld [vmem:[%s1 + $0x10] sm:$0xff]
    %v40 = vld [vmem:[%s1 + $0x18] sm:$0xff]
    %v41 = vld [vmem:[%s1 + $0x20] sm:$0xff]
    %v42 = vld [vmem:[%s1 + $0x28] sm:$0xff]
    %v43 = vld [vmem:[%s1 + $0x30] sm:$0xff]
    %v44 = vld [vmem:[%s1 + $0x38] sm:$0xff]
    %v45 = vld [vmem:[%s1 + $0x40] sm:$0xff]
    %v46 = vld [vmem:[%s1 + $0x48] sm:$0xff]
    %v47 = vld [vmem:[%s1 + $0x50] sm:$0xff]
    %v48 = vld [vmem:[%s1 + $0x58] sm:$0xff]
    %v49 = vld [vmem:[%s1 + $0x60] sm:$0xff]
    %v50 = vld [vmem:[%s1 + $0x68] sm:$0xff]
    %v51 = vld [vmem:[%s1 + $0x70] sm:$0xff]
    %v52 = vld [vmem:[%s1 + $0x78] sm:$0xff]
    %v53 = vld [vmem:[%s2] sm:$0x1]
    %v55 = vlaneseq
    %v56 = vshrl.u32 %v55, 7
    %v57 = vsub.s32 0, %v56
    %v58 = vrot.slane %v53, %v57
    %60 = vmatprep.subr.mxu0 0.0
    %61 = vmatpush1.msra.mxu0 %v52
    %62 = vmatprep.subr.mxu0 0.0
    %63 = vmatpush1.msra.mxu0 %v51
    %64 = vmatprep.subr.mxu0 0.0
    %65 = vmatpush1.msra.mxu0 %v50
    %66 = vmatprep.subr.mxu0 0.0
    %67 = vmatpush1.msra.mxu0 %v49
    %68 = vmatprep.subr.mxu0 0.0
    %69 = vmatpush1.msra.mxu0 %v48
    %70 = vmatprep.subr.mxu0 0.0
    %71 = vmatpush1.msra.mxu0 %v47
    %72 = vmatprep.subr.mxu0 0.0
    %73 = vmatpush1.msra.mxu0 %v46
    %74 = vmatprep.subr.mxu0 0.0
    %75 = vmatpush1.msra.mxu0 %v45
    %76 = vmatprep.subr.mxu0 0.0
    %77 = vmatpush1.msra.mxu0 %v44
    %78 = vmatprep.subr.mxu0 0.0
    %79 = vmatpush1.msra.mxu0 %v43
    %80 = vmatprep.subr.mxu0 0.0
    %81 = vmatpush1.msra.mxu0 %v42
    %82 = vmatprep.subr.mxu0 0.0
    %83 = vmatpush1.msra.mxu0 %v41
    %84 = vmatprep.subr.mxu0 0.0
    %85 = vmatpush1.msra.mxu0 %v40
    %86 = vmatprep.subr.mxu0 0.0
    %87 = vmatpush1.msra.mxu0 %v39
    %88 = vmatprep.subr.mxu0 0.0
    %89 = vmatpush1.msra.mxu0 %v38
    %90 = vmatprep.subr.mxu0 0.0
    %91 = vmatpush1.msra.mxu0 %v37
    %92 = vmatprep.subr.mxu0 0.0
    %93 = vmatpush2.msra.mxu0 0.0
    %94 = vmatprep.subr.mxu0 0.0
    %95 = vmatpush2.msra.mxu0 0.0
    %96 = vmatprep.subr.mxu0 0.0
    %97 = vmatpush2.msra.mxu0 0.0
    %98 = vmatprep.subr.mxu0 0.0
    %99 = vmatpush2.msra.mxu0 0.0
    %100 = vmatprep.subr.mxu0 0.0
    %101 = vmatpush2.msra.mxu0 0.0
    %102 = vmatprep.subr.mxu0 0.0
    %103 = vmatpush2.msra.mxu0 0.0
    %104 = vmatprep.subr.mxu0 0.0
    %105 = vmatpush2.msra.mxu0 0.0
    %106 = vmatprep.subr.mxu0 0.0
    %107 = vmatpush2.msra.mxu0 0.0
    %108 = vmatprep.subr.mxu0 0.0
    %109 = vmatpush2.msra.mxu0 0.0
    %110 = vmatprep.subr.mxu0 0.0
    %111 = vmatpush2.msra.mxu0 0.0
    %112 = vmatprep.subr.mxu0 0.0
    %113 = vmatpush2.msra.mxu0 0.0
    %114 = vmatprep.subr.mxu0 0.0
    %115 = vmatpush2.msra.mxu0 0.0
    %116 = vmatprep.subr.mxu0 0.0
    %117 = vmatpush2.msra.mxu0 0.0
    %118 = vmatprep.subr.mxu0 0.0
    %119 = vmatpush2.msra.mxu0 0.0
    %120 = vmatprep.subr.mxu0 0.0
    %121 = vmatpush2.msra.mxu0 0.0
    %122 = vmatprep.subr.mxu0 0.0
    %123 = vmatpush2.msra.mxu0 0.0
    %124 = vmatprep.mubr.f32.mxu0 0.0
    %125 = vmatmul.mubr.f32.gmra.mxu0 %v36
    %v126 = vpop.f32.mrf.mxu0
    %v127 = vadd.f32 %v58, %v126
    %v128 = vpop.f32.mrf.mxu0
    %129 = vdwg.mxu0
    %vm130 = vcmask 253952
    %131 = vst.msk [vmem:[#allocation2] sm:$0x1] %vm130, %v127
    %vm132 = vcmask 254977
    %133 = vst.msk [vmem:[#allocation2 + $0x7] sm:$0x2] %vm132, %v127
    %s134 = scalar_lea.vmem %s1, 128
    %v135 = vld [vmem:[%s134] sm:$0xff]
    %v136 = vld [vmem:[%s134 + $0x8] sm:$0xff]
    %v137 = vld [vmem:[%s134 + $0x10] sm:$0xff]
    %v138 = vld [vmem:[%s134 + $0x18] sm:$0xff]
    %v139 = vld [vmem:[%s134 + $0x20] sm:$0xff]
    %v140 = vld [vmem:[%s134 + $0x28] sm:$0xff]
    %v141 = vld [vmem:[%s134 + $0x30] sm:$0xff]
    %v142 = vld [vmem:[%s134 + $0x38] sm:$0xff]
    %v143 = vld [vmem:[%s134 + $0x40] sm:$0xff]
    %v144 = vld [vmem:[%s134 + $0x48] sm:$0xff]
    %v145 = vld [vmem:[%s134 + $0x50] sm:$0xff]
    %v146 = vld [vmem:[%s134 + $0x58] sm:$0xff]
    %v147 = vld [vmem:[%s134 + $0x60] sm:$0xff]
    %v148 = vld [vmem:[%s134 + $0x68] sm:$0xff]
    %v149 = vld [vmem:[%s134 + $0x70] sm:$0xff]
    %v150 = vld [vmem:[%s134 + $0x78] sm:$0xff]
    %s151 = scalar_lea.vmem %s2, 1
    %v152 = vld [vmem:[%s151] sm:$0x1]
    %v154 = vlaneseq
    %v155 = vshrl.u32 %v154, 7
    %v156 = vsub.s32 0, %v155
    %v157 = vrot.slane %v152, %v156
    %159 = vmatprep.subr.mxu0 0.0
    %160 = vmatpush1.msra.mxu0 %v150
    %161 = vmatprep.subr.mxu0 0.0
    %162 = vmatpush1.msra.mxu0 %v149
    %163 = vmatprep.subr.mxu0 0.0
    %164 = vmatpush1.msra.mxu0 %v148
    %165 = vmatprep.subr.mxu0 0.0
    %166 = vmatpush1.msra.mxu0 %v147
    %167 = vmatprep.subr.mxu0 0.0
    %168 = vmatpush1.msra.mxu0 %v146
    %169 = vmatprep.subr.mxu0 0.0
    %170 = vmatpush1.msra.mxu0 %v145
    %171 = vmatprep.subr.mxu0 0.0
    %172 = vmatpush1.msra.mxu0 %v144
    %173 = vmatprep.subr.mxu0 0.0
    %174 = vmatpush1.msra.mxu0 %v143
    %175 = vmatprep.subr.mxu0 0.0
    %176 = vmatpush1.msra.mxu0 %v142
    %177 = vmatprep.subr.mxu0 0.0
    %178 = vmatpush1.msra.mxu0 %v141
    %179 = vmatprep.subr.mxu0 0.0
    %180 = vmatpush1.msra.mxu0 %v140
    %181 = vmatprep.subr.mxu0 0.0
    %182 = vmatpush1.msra.mxu0 %v139
    %183 = vmatprep.subr.mxu0 0.0
    %184 = vmatpush1.msra.mxu0 %v138
    %185 = vmatprep.subr.mxu0 0.0
    %186 = vmatpush1.msra.mxu0 %v137
    %187 = vmatprep.subr.mxu0 0.0
    %188 = vmatpush1.msra.mxu0 %v136
    %189 = vmatprep.subr.mxu0 0.0
    %190 = vmatpush1.msra.mxu0 %v135
    %191 = vmatprep.subr.mxu0 0.0
    %192 = vmatpush2.msra.mxu0 0.0
    %193 = vmatprep.subr.mxu0 0.0
    %194 = vmatpush2.msra.mxu0 0.0
    %195 = vmatprep.subr.mxu0 0.0
    %196 = vmatpush2.msra.mxu0 0.0
    %197 = vmatprep.subr.mxu0 0.0
    %198 = vmatpush2.msra.mxu0 0.0
    %199 = vmatprep.subr.mxu0 0.0
    %200 = vmatpush2.msra.mxu0 0.0
    %201 = vmatprep.subr.mxu0 0.0
    %202 = vmatpush2.msra.mxu0 0.0
    %203 = vmatprep.subr.mxu0 0.0
    %204 = vmatpush2.msra.mxu0 0.0
    %205 = vmatprep.subr.mxu0 0.0
    %206 = vmatpush2.msra.mxu0 0.0
    %207 = vmatprep.subr.mxu0 0.0
    %208 = vmatpush2.msra.mxu0 0.0
    %209 = vmatprep.subr.mxu0 0.0
    %210 = vmatpush2.msra.mxu0 0.0
    %211 = vmatprep.subr.mxu0 0.0
    %212 = vmatpush2.msra.mxu0 0.0
    %213 = vmatprep.subr.mxu0 0.0
    %214 = vmatpush2.msra.mxu0 0.0
    %215 = vmatprep.subr.mxu0 0.0
    %216 = vmatpush2.msra.mxu0 0.0
    %217 = vmatprep.subr.mxu0 0.0
    %218 = vmatpush2.msra.mxu0 0.0
    %219 = vmatprep.subr.mxu0 0.0
    %220 = vmatpush2.msra.mxu0 0.0
    %221 = vmatprep.subr.mxu0 0.0
    %222 = vmatpush2.msra.mxu0 0.0
    %223 = vmatprep.mubr.f32.mxu0 0.0
    %224 = vmatmul.mubr.f32.gmra.mxu0 %v36
    %v225 = vpop.f32.mrf.mxu0
    %v226 = vadd.f32 %v157, %v225
    %v227 = vpop.f32.mrf.mxu0
    %228 = vdwg.mxu0
    %229 = vst.msk [vmem:[#allocation2 + $0x1] sm:$0x1] %vm130, %v226
    %230 = vst.msk [vmem:[#allocation2 + $0x8] sm:$0x2] %vm132, %v226
    %s231 = scalar_lea.vmem %s1, 256
    %v232 = vld [vmem:[%s231] sm:$0xff]
    %v233 = vld [vmem:[%s231 + $0x8] sm:$0xff]
    %v234 = vld [vmem:[%s231 + $0x10] sm:$0xff]
    %v235 = vld [vmem:[%s231 + $0x18] sm:$0xff]
    %v236 = vld [vmem:[%s231 + $0x20] sm:$0xff]
    %v237 = vld [vmem:[%s231 + $0x28] sm:$0xff]
    %v238 = vld [vmem:[%s231 + $0x30] sm:$0xff]
    %v239 = vld [vmem:[%s231 + $0x38] sm:$0xff]
    %v240 = vld [vmem:[%s231 + $0x40] sm:$0xff]
    %v241 = vld [vmem:[%s231 + $0x48] sm:$0xff]
    %v242 = vld [vmem:[%s231 + $0x50] sm:$0xff]
    %v243 = vld [vmem:[%s231 + $0x58] sm:$0xff]
    %v244 = vld [vmem:[%s231 + $0x60] sm:$0xff]
    %v245 = vld [vmem:[%s231 + $0x68] sm:$0xff]
    %v246 = vld [vmem:[%s231 + $0x70] sm:$0xff]
    %v247 = vld [vmem:[%s231 + $0x78] sm:$0xff]
    %s248 = scalar_lea.vmem %s2, 2
    %v249 = vld [vmem:[%s248] sm:$0x1]
    %v251 = vlaneseq
    %v252 = vshrl.u32 %v251, 7
    %v253 = vsub.s32 0, %v252
    %v254 = vrot.slane %v249, %v253
    %256 = vmatprep.subr.mxu0 0.0
    %257 = vmatpush1.msra.mxu0 %v247
    %258 = vmatprep.subr.mxu0 0.0
    %259 = vmatpush1.msra.mxu0 %v246
    %260 = vmatprep.subr.mxu0 0.0
    %261 = vmatpush1.msra.mxu0 %v245
    %262 = vmatprep.subr.mxu0 0.0
    %263 = vmatpush1.msra.mxu0 %v244
    %264 = vmatprep.subr.mxu0 0.0
    %265 = vmatpush1.msra.mxu0 %v243
    %266 = vmatprep.subr.mxu0 0.0
    %267 = vmatpush1.msra.mxu0 %v242
    %268 = vmatprep.subr.mxu0 0.0
    %269 = vmatpush1.msra.mxu0 %v241
    %270 = vmatprep.subr.mxu0 0.0
    %271 = vmatpush1.msra.mxu0 %v240
    %272 = vmatprep.subr.mxu0 0.0
    %273 = vmatpush1.msra.mxu0 %v239
    %274 = vmatprep.subr.mxu0 0.0
    %275 = vmatpush1.msra.mxu0 %v238
    %276 = vmatprep.subr.mxu0 0.0
    %277 = vmatpush1.msra.mxu0 %v237
    %278 = vmatprep.subr.mxu0 0.0
    %279 = vmatpush1.msra.mxu0 %v236
    %280 = vmatprep.subr.mxu0 0.0
    %281 = vmatpush1.msra.mxu0 %v235
    %282 = vmatprep.subr.mxu0 0.0
    %283 = vmatpush1.msra.mxu0 %v234
    %284 = vmatprep.subr.mxu0 0.0
    %285 = vmatpush1.msra.mxu0 %v233
    %286 = vmatprep.subr.mxu0 0.0
    %287 = vmatpush1.msra.mxu0 %v232
    %288 = vmatprep.subr.mxu0 0.0
    %289 = vmatpush2.msra.mxu0 0.0
    %290 = vmatprep.subr.mxu0 0.0
    %291 = vmatpush2.msra.mxu0 0.0
    %292 = vmatprep.subr.mxu0 0.0
    %293 = vmatpush2.msra.mxu0 0.0
    %294 = vmatprep.subr.mxu0 0.0
    %295 = vmatpush2.msra.mxu0 0.0
    %296 = vmatprep.subr.mxu0 0.0
    %297 = vmatpush2.msra.mxu0 0.0
    %298 = vmatprep.subr.mxu0 0.0
    %299 = vmatpush2.msra.mxu0 0.0
    %300 = vmatprep.subr.mxu0 0.0
    %301 = vmatpush2.msra.mxu0 0.0
    %302 = vmatprep.subr.mxu0 0.0
    %303 = vmatpush2.msra.mxu0 0.0
    %304 = vmatprep.subr.mxu0 0.0
    %305 = vmatpush2.msra.mxu0 0.0
    %306 = vmatprep.subr.mxu0 0.0
    %307 = vmatpush2.msra.mxu0 0.0
    %308 = vmatprep.subr.mxu0 0.0
    %309 = vmatpush2.msra.mxu0 0.0
    %310 = vmatprep.subr.mxu0 0.0
    %311 = vmatpush2.msra.mxu0 0.0
    %312 = vmatprep.subr.mxu0 0.0
    %313 = vmatpush2.msra.mxu0 0.0
    %314 = vmatprep.subr.mxu0 0.0
    %315 = vmatpush2.msra.mxu0 0.0
    %316 = vmatprep.subr.mxu0 0.0
    %317 = vmatpush2.msra.mxu0 0.0
    %318 = vmatprep.subr.mxu0 0.0
    %319 = vmatpush2.msra.mxu0 0.0
    %320 = vmatprep.mubr.f32.mxu0 0.0
    %321 = vmatmul.mubr.f32.gmra.mxu0 %v36
    %v322 = vpop.f32.mrf.mxu0
    %v323 = vadd.f32 %v254, %v322
    %v324 = vpop.f32.mrf.mxu0
    %325 = vdwg.mxu0
    %326 = vst.msk [vmem:[#allocation2 + $0x2] sm:$0x1] %vm130, %v323
    %327 = vst.msk [vmem:[#allocation2 + $0x9] sm:$0x2] %vm132, %v323
    %s328 = scalar_lea.vmem %s1, 384
    %v329 = vld [vmem:[%s328] sm:$0xff]
    %v330 = vld [vmem:[%s328 + $0x8] sm:$0xff]
    %v331 = vld [vmem:[%s328 + $0x10] sm:$0xff]
    %v332 = vld [vmem:[%s328 + $0x18] sm:$0xff]
    %v333 = vld [vmem:[%s328 + $0x20] sm:$0xff]
    %v334 = vld [vmem:[%s328 + $0x28] sm:$0xff]
    %v335 = vld [vmem:[%s328 + $0x30] sm:$0xff]
    %v336 = vld [vmem:[%s328 + $0x38] sm:$0xff]
    %v337 = vld [vmem:[%s328 + $0x40] sm:$0xff]
    %v338 = vld [vmem:[%s328 + $0x48] sm:$0xff]
    %v339 = vld [vmem:[%s328 + $0x50] sm:$0xff]
    %v340 = vld [vmem:[%s328 + $0x58] sm:$0xff]
    %v341 = vld [vmem:[%s328 + $0x60] sm:$0xff]
    %v342 = vld [vmem:[%s328 + $0x68] sm:$0xff]
    %v343 = vld [vmem:[%s328 + $0x70] sm:$0xff]
    %v344 = vld [vmem:[%s328 + $0x78] sm:$0xff]
    %s345 = scalar_lea.vmem %s2, 3
    %v346 = vld [vmem:[%s345] sm:$0x1]
    %v348 = vlaneseq
    %v349 = vshrl.u32 %v348, 7
    %v350 = vsub.s32 0, %v349
    %v351 = vrot.slane %v346, %v350
    %353 = vmatprep.subr.mxu0 0.0
    %354 = vmatpush1.msra.mxu0 %v344
    %355 = vmatprep.subr.mxu0 0.0
    %356 = vmatpush1.msra.mxu0 %v343
    %357 = vmatprep.subr.mxu0 0.0
    %358 = vmatpush1.msra.mxu0 %v342
    %359 = vmatprep.subr.mxu0 0.0
    %360 = vmatpush1.msra.mxu0 %v341
    %361 = vmatprep.subr.mxu0 0.0
    %362 = vmatpush1.msra.mxu0 %v340
    %363 = vmatprep.subr.mxu0 0.0
    %364 = vmatpush1.msra.mxu0 %v339
    %365 = vmatprep.subr.mxu0 0.0
    %366 = vmatpush1.msra.mxu0 %v338
    %367 = vmatprep.subr.mxu0 0.0
    %368 = vmatpush1.msra.mxu0 %v337
    %369 = vmatprep.subr.mxu0 0.0
    %370 = vmatpush1.msra.mxu0 %v336
    %371 = vmatprep.subr.mxu0 0.0
    %372 = vmatpush1.msra.mxu0 %v335
    %373 = vmatprep.subr.mxu0 0.0
    %374 = vmatpush1.msra.mxu0 %v334
    %375 = vmatprep.subr.mxu0 0.0
    %376 = vmatpush1.msra.mxu0 %v333
    %377 = vmatprep.subr.mxu0 0.0
    %378 = vmatpush1.msra.mxu0 %v332
    %379 = vmatprep.subr.mxu0 0.0
    %380 = vmatpush1.msra.mxu0 %v331
    %381 = vmatprep.subr.mxu0 0.0
    %382 = vmatpush1.msra.mxu0 %v330
    %383 = vmatprep.subr.mxu0 0.0
    %384 = vmatpush1.msra.mxu0 %v329
    %385 = vmatprep.subr.mxu0 0.0
    %386 = vmatpush2.msra.mxu0 0.0
    %387 = vmatprep.subr.mxu0 0.0
    %388 = vmatpush2.msra.mxu0 0.0
    %389 = vmatprep.subr.mxu0 0.0
    %390 = vmatpush2.msra.mxu0 0.0
    %391 = vmatprep.subr.mxu0 0.0
    %392 = vmatpush2.msra.mxu0 0.0
    %393 = vmatprep.subr.mxu0 0.0
    %394 = vmatpush2.msra.mxu0 0.0
    %395 = vmatprep.subr.mxu0 0.0
    %396 = vmatpush2.msra.mxu0 0.0
    %397 = vmatprep.subr.mxu0 0.0
    %398 = vmatpush2.msra.mxu0 0.0
    %399 = vmatprep.subr.mxu0 0.0
    %400 = vmatpush2.msra.mxu0 0.0
    %401 = vmatprep.subr.mxu0 0.0
    %402 = vmatpush2.msra.mxu0 0.0
    %403 = vmatprep.subr.mxu0 0.0
    %404 = vmatpush2.msra.mxu0 0.0
    %405 = vmatprep.subr.mxu0 0.0
    %406 = vmatpush2.msra.mxu0 0.0
    %407 = vmatprep.subr.mxu0 0.0
    %408 = vmatpush2.msra.mxu0 0.0
    %409 = vmatprep.subr.mxu0 0.0
    %410 = vmatpush2.msra.mxu0 0.0
    %411 = vmatprep.subr.mxu0 0.0
    %412 = vmatpush2.msra.mxu0 0.0
    %413 = vmatprep.subr.mxu0 0.0
    %414 = vmatpush2.msra.mxu0 0.0
    %415 = vmatprep.subr.mxu0 0.0
    %416 = vmatpush2.msra.mxu0 0.0
    %417 = vmatprep.mubr.f32.mxu0 0.0
    %418 = vmatmul.mubr.f32.gmra.mxu0 %v36
    %v419 = vpop.f32.mrf.mxu0
    %v420 = vadd.f32 %v351, %v419
    %v421 = vpop.f32.mrf.mxu0
    %422 = vdwg.mxu0
    %423 = vst.msk [vmem:[#allocation2 + $0x3] sm:$0x1] %vm130, %v420
    %424 = vst.msk [vmem:[#allocation2 + $0xa] sm:$0x2] %vm132, %v420
    %s425 = scalar_lea.vmem %s1, 512
    %v426 = vld [vmem:[%s425] sm:$0xff]
    %v427 = vld [vmem:[%s425 + $0x8] sm:$0xff]
    %v428 = vld [vmem:[%s425 + $0x10] sm:$0xff]
    %v429 = vld [vmem:[%s425 + $0x18] sm:$0xff]
    %v430 = vld [vmem:[%s425 + $0x20] sm:$0xff]
    %v431 = vld [vmem:[%s425 + $0x28] sm:$0xff]
    %v432 = vld [vmem:[%s425 + $0x30] sm:$0xff]
    %v433 = vld [vmem:[%s425 + $0x38] sm:$0xff]
    %v434 = vld [vmem:[%s425 + $0x40] sm:$0xff]
    %v435 = vld [vmem:[%s425 + $0x48] sm:$0xff]
    %v436 = vld [vmem:[%s425 + $0x50] sm:$0xff]
    %v437 = vld [vmem:[%s425 + $0x58] sm:$0xff]
    %v438 = vld [vmem:[%s425 + $0x60] sm:$0xff]
    %v439 = vld [vmem:[%s425 + $0x68] sm:$0xff]
    %v440 = vld [vmem:[%s425 + $0x70] sm:$0xff]
    %v441 = vld [vmem:[%s425 + $0x78] sm:$0xff]
    %s442 = scalar_lea.vmem %s2, 4
    %v443 = vld [vmem:[%s442] sm:$0x1]
    %v445 = vlaneseq
    %v446 = vshrl.u32 %v445, 7
    %v447 = vsub.s32 0, %v446
    %v448 = vrot.slane %v443, %v447
    %450 = vmatprep.subr.mxu0 0.0
    %451 = vmatpush1.msra.mxu0 %v441
    %452 = vmatprep.subr.mxu0 0.0
    %453 = vmatpush1.msra.mxu0 %v440
    %454 = vmatprep.subr.mxu0 0.0
    %455 = vmatpush1.msra.mxu0 %v439
    %456 = vmatprep.subr.mxu0 0.0
    %457 = vmatpush1.msra.mxu0 %v438
    %458 = vmatprep.subr.mxu0 0.0
    %459 = vmatpush1.msra.mxu0 %v437
    %460 = vmatprep.subr.mxu0 0.0
    %461 = vmatpush1.msra.mxu0 %v436
    %462 = vmatprep.subr.mxu0 0.0
    %463 = vmatpush1.msra.mxu0 %v435
    %464 = vmatprep.subr.mxu0 0.0
    %465 = vmatpush1.msra.mxu0 %v434
    %466 = vmatprep.subr.mxu0 0.0
    %467 = vmatpush1.msra.mxu0 %v433
    %468 = vmatprep.subr.mxu0 0.0
    %469 = vmatpush1.msra.mxu0 %v432
    %470 = vmatprep.subr.mxu0 0.0
    %471 = vmatpush1.msra.mxu0 %v431
    %472 = vmatprep.subr.mxu0 0.0
    %473 = vmatpush1.msra.mxu0 %v430
    %474 = vmatprep.subr.mxu0 0.0
    %475 = vmatpush1.msra.mxu0 %v429
    %476 = vmatprep.subr.mxu0 0.0
    %477 = vmatpush1.msra.mxu0 %v428
    %478 = vmatprep.subr.mxu0 0.0
    %479 = vmatpush1.msra.mxu0 %v427
    %480 = vmatprep.subr.mxu0 0.0
    %481 = vmatpush1.msra.mxu0 %v426
    %482 = vmatprep.subr.mxu0 0.0
    %483 = vmatpush2.msra.mxu0 0.0
    %484 = vmatprep.subr.mxu0 0.0
    %485 = vmatpush2.msra.mxu0 0.0
    %486 = vmatprep.subr.mxu0 0.0
    %487 = vmatpush2.msra.mxu0 0.0
    %488 = vmatprep.subr.mxu0 0.0
    %489 = vmatpush2.msra.mxu0 0.0
    %490 = vmatprep.subr.mxu0 0.0
    %491 = vmatpush2.msra.mxu0 0.0
    %492 = vmatprep.subr.mxu0 0.0
    %493 = vmatpush2.msra.mxu0 0.0
    %494 = vmatprep.subr.mxu0 0.0
    %495 = vmatpush2.msra.mxu0 0.0
    %496 = vmatprep.subr.mxu0 0.0
    %497 = vmatpush2.msra.mxu0 0.0
    %498 = vmatprep.subr.mxu0 0.0
    %499 = vmatpush2.msra.mxu0 0.0
    %500 = vmatprep.subr.mxu0 0.0
    %501 = vmatpush2.msra.mxu0 0.0
    %502 = vmatprep.subr.mxu0 0.0
    %503 = vmatpush2.msra.mxu0 0.0
    %504 = vmatprep.subr.mxu0 0.0
    %505 = vmatpush2.msra.mxu0 0.0
    %506 = vmatprep.subr.mxu0 0.0
    %507 = vmatpush2.msra.mxu0 0.0
    %508 = vmatprep.subr.mxu0 0.0
    %509 = vmatpush2.msra.mxu0 0.0
    %510 = vmatprep.subr.mxu0 0.0
    %511 = vmatpush2.msra.mxu0 0.0
    %512 = vmatprep.subr.mxu0 0.0
    %513 = vmatpush2.msra.mxu0 0.0
    %514 = vmatprep.mubr.f32.mxu0 0.0
    %515 = vmatmul.mubr.f32.gmra.mxu0 %v36
    %v516 = vpop.f32.mrf.mxu0
    %v517 = vadd.f32 %v448, %v516
    %v518 = vpop.f32.mrf.mxu0
    %519 = vdwg.mxu0
    %520 = vst.msk [vmem:[#allocation2 + $0x4] sm:$0x1] %vm130, %v517
    %521 = vst.msk [vmem:[#allocation2 + $0xb] sm:$0x2] %vm132, %v517
    %s522 = scalar_lea.vmem %s1, 640
    %v523 = vld [vmem:[%s522] sm:$0xff]
    %v524 = vld [vmem:[%s522 + $0x8] sm:$0xff]
    %v525 = vld [vmem:[%s522 + $0x10] sm:$0xff]
    %v526 = vld [vmem:[%s522 + $0x18] sm:$0xff]
    %v527 = vld [vmem:[%s522 + $0x20] sm:$0xff]
    %v528 = vld [vmem:[%s522 + $0x28] sm:$0xff]
    %v529 = vld [vmem:[%s522 + $0x30] sm:$0xff]
    %v530 = vld [vmem:[%s522 + $0x38] sm:$0xff]
    %v531 = vld [vmem:[%s522 + $0x40] sm:$0xff]
    %v532 = vld [vmem:[%s522 + $0x48] sm:$0xff]
    %v533 = vld [vmem:[%s522 + $0x50] sm:$0xff]
    %v534 = vld [vmem:[%s522 + $0x58] sm:$0xff]
    %v535 = vld [vmem:[%s522 + $0x60] sm:$0xff]
    %v536 = vld [vmem:[%s522 + $0x68] sm:$0xff]
    %v537 = vld [vmem:[%s522 + $0x70] sm:$0xff]
    %v538 = vld [vmem:[%s522 + $0x78] sm:$0xff]
    %s539 = scalar_lea.vmem %s2, 5
    %v540 = vld [vmem:[%s539] sm:$0x1]
    %v542 = vlaneseq
    %v543 = vshrl.u32 %v542, 7
    %v544 = vsub.s32 0, %v543
    %v545 = vrot.slane %v540, %v544
    %547 = vmatprep.subr.mxu0 0.0
    %548 = vmatpush1.msra.mxu0 %v538
    %549 = vmatprep.subr.mxu0 0.0
    %550 = vmatpush1.msra.mxu0 %v537
    %551 = vmatprep.subr.mxu0 0.0
    %552 = vmatpush1.msra.mxu0 %v536
    %553 = vmatprep.subr.mxu0 0.0
    %554 = vmatpush1.msra.mxu0 %v535
    %555 = vmatprep.subr.mxu0 0.0
    %556 = vmatpush1.msra.mxu0 %v534
    %557 = vmatprep.subr.mxu0 0.0
    %558 = vmatpush1.msra.mxu0 %v533
    %559 = vmatprep.subr.mxu0 0.0
    %560 = vmatpush1.msra.mxu0 %v532
    %561 = vmatprep.subr.mxu0 0.0
    %562 = vmatpush1.msra.mxu0 %v531
    %563 = vmatprep.subr.mxu0 0.0
    %564 = vmatpush1.msra.mxu0 %v530
    %565 = vmatprep.subr.mxu0 0.0
    %566 = vmatpush1.msra.mxu0 %v529
    %567 = vmatprep.subr.mxu0 0.0
    %568 = vmatpush1.msra.mxu0 %v528
    %569 = vmatprep.subr.mxu0 0.0
    %570 = vmatpush1.msra.mxu0 %v527
    %571 = vmatprep.subr.mxu0 0.0
    %572 = vmatpush1.msra.mxu0 %v526
    %573 = vmatprep.subr.mxu0 0.0
    %574 = vmatpush1.msra.mxu0 %v525
    %575 = vmatprep.subr.mxu0 0.0
    %576 = vmatpush1.msra.mxu0 %v524
    %577 = vmatprep.subr.mxu0 0.0
    %578 = vmatpush1.msra.mxu0 %v523
    %579 = vmatprep.subr.mxu0 0.0
    %580 = vmatpush2.msra.mxu0 0.0
    %581 = vmatprep.subr.mxu0 0.0
    %582 = vmatpush2.msra.mxu0 0.0
    %583 = vmatprep.subr.mxu0 0.0
    %584 = vmatpush2.msra.mxu0 0.0
    %585 = vmatprep.subr.mxu0 0.0
    %586 = vmatpush2.msra.mxu0 0.0
    %587 = vmatprep.subr.mxu0 0.0
    %588 = vmatpush2.msra.mxu0 0.0
    %589 = vmatprep.subr.mxu0 0.0
    %590 = vmatpush2.msra.mxu0 0.0
    %591 = vmatprep.subr.mxu0 0.0
    %592 = vmatpush2.msra.mxu0 0.0
    %593 = vmatprep.subr.mxu0 0.0
    %594 = vmatpush2.msra.mxu0 0.0
    %595 = vmatprep.subr.mxu0 0.0
    %596 = vmatpush2.msra.mxu0 0.0
    %597 = vmatprep.subr.mxu0 0.0
    %598 = vmatpush2.msra.mxu0 0.0
    %599 = vmatprep.subr.mxu0 0.0
    %600 = vmatpush2.msra.mxu0 0.0
    %601 = vmatprep.subr.mxu0 0.0
    %602 = vmatpush2.msra.mxu0 0.0
    %603 = vmatprep.subr.mxu0 0.0
    %604 = vmatpush2.msra.mxu0 0.0
    %605 = vmatprep.subr.mxu0 0.0
    %606 = vmatpush2.msra.mxu0 0.0
    %607 = vmatprep.subr.mxu0 0.0
    %608 = vmatpush2.msra.mxu0 0.0
    %609 = vmatprep.subr.mxu0 0.0
    %610 = vmatpush2.msra.mxu0 0.0
    %611 = vmatprep.mubr.f32.mxu0 0.0
    %612 = vmatmul.mubr.f32.gmra.mxu0 %v36
    %v613 = vpop.f32.mrf.mxu0
    %v614 = vadd.f32 %v545, %v613
    %v615 = vpop.f32.mrf.mxu0
    %616 = vdwg.mxu0
    %617 = vst.msk [vmem:[#allocation2 + $0x5] sm:$0x1] %vm130, %v614
    %618 = vst.msk [vmem:[#allocation2 + $0xc] sm:$0x2] %vm132, %v614
    %s619 = scalar_lea.vmem %s1, 768
    %v620 = vld [vmem:[%s619] sm:$0xff]
    %v621 = vld [vmem:[%s619 + $0x8] sm:$0xff]
    %v622 = vld [vmem:[%s619 + $0x10] sm:$0xff]
    %v623 = vld [vmem:[%s619 + $0x18] sm:$0xff]
    %v624 = vld [vmem:[%s619 + $0x20] sm:$0xff]
    %v625 = vld [vmem:[%s619 + $0x28] sm:$0xff]
    %v626 = vld [vmem:[%s619 + $0x30] sm:$0xff]
    %v627 = vld [vmem:[%s619 + $0x38] sm:$0xff]
    %v628 = vld [vmem:[%s619 + $0x40] sm:$0xff]
    %v629 = vld [vmem:[%s619 + $0x48] sm:$0xff]
    %v630 = vld [vmem:[%s619 + $0x50] sm:$0xff]
    %v631 = vld [vmem:[%s619 + $0x58] sm:$0xff]
    %v632 = vld [vmem:[%s619 + $0x60] sm:$0xff]
    %v633 = vld [vmem:[%s619 + $0x68] sm:$0xff]
    %v634 = vld [vmem:[%s619 + $0x70] sm:$0xff]
    %v635 = vld [vmem:[%s619 + $0x78] sm:$0xff]
    %s636 = scalar_lea.vmem %s2, 6
    %v637 = vld [vmem:[%s636] sm:$0x1]
    %v639 = vlaneseq
    %v640 = vshrl.u32 %v639, 7
    %v641 = vsub.s32 0, %v640
    %v642 = vrot.slane %v637, %v641
    %644 = vmatprep.subr.mxu0 0.0
    %645 = vmatpush1.msra.mxu0 %v635
    %646 = vmatprep.subr.mxu0 0.0
    %647 = vmatpush1.msra.mxu0 %v634
    %648 = vmatprep.subr.mxu0 0.0
    %649 = vmatpush1.msra.mxu0 %v633
    %650 = vmatprep.subr.mxu0 0.0
    %651 = vmatpush1.msra.mxu0 %v632
    %652 = vmatprep.subr.mxu0 0.0
    %653 = vmatpush1.msra.mxu0 %v631
    %654 = vmatprep.subr.mxu0 0.0
    %655 = vmatpush1.msra.mxu0 %v630
    %656 = vmatprep.subr.mxu0 0.0
    %657 = vmatpush1.msra.mxu0 %v629
    %658 = vmatprep.subr.mxu0 0.0
    %659 = vmatpush1.msra.mxu0 %v628
    %660 = vmatprep.subr.mxu0 0.0
    %661 = vmatpush1.msra.mxu0 %v627
    %662 = vmatprep.subr.mxu0 0.0
    %663 = vmatpush1.msra.mxu0 %v626
    %664 = vmatprep.subr.mxu0 0.0
    %665 = vmatpush1.msra.mxu0 %v625
    %666 = vmatprep.subr.mxu0 0.0
    %667 = vmatpush1.msra.mxu0 %v624
    %668 = vmatprep.subr.mxu0 0.0
    %669 = vmatpush1.msra.mxu0 %v623
    %670 = vmatprep.subr.mxu0 0.0
    %671 = vmatpush1.msra.mxu0 %v622
    %672 = vmatprep.subr.mxu0 0.0
    %673 = vmatpush1.msra.mxu0 %v621
    %674 = vmatprep.subr.mxu0 0.0
    %675 = vmatpush1.msra.mxu0 %v620
    %676 = vmatprep.subr.mxu0 0.0
    %677 = vmatpush2.msra.mxu0 0.0
    %678 = vmatprep.subr.mxu0 0.0
    %679 = vmatpush2.msra.mxu0 0.0
    %680 = vmatprep.subr.mxu0 0.0
    %681 = vmatpush2.msra.mxu0 0.0
    %682 = vmatprep.subr.mxu0 0.0
    %683 = vmatpush2.msra.mxu0 0.0
    %684 = vmatprep.subr.mxu0 0.0
    %685 = vmatpush2.msra.mxu0 0.0
    %686 = vmatprep.subr.mxu0 0.0
    %687 = vmatpush2.msra.mxu0 0.0
    %688 = vmatprep.subr.mxu0 0.0
    %689 = vmatpush2.msra.mxu0 0.0
    %690 = vmatprep.subr.mxu0 0.0
    %691 = vmatpush2.msra.mxu0 0.0
    %692 = vmatprep.subr.mxu0 0.0
    %693 = vmatpush2.msra.mxu0 0.0
    %694 = vmatprep.subr.mxu0 0.0
    %695 = vmatpush2.msra.mxu0 0.0
    %696 = vmatprep.subr.mxu0 0.0
    %697 = vmatpush2.msra.mxu0 0.0
    %698 = vmatprep.subr.mxu0 0.0
    %699 = vmatpush2.msra.mxu0 0.0
    %700 = vmatprep.subr.mxu0 0.0
    %701 = vmatpush2.msra.mxu0 0.0
    %702 = vmatprep.subr.mxu0 0.0
    %703 = vmatpush2.msra.mxu0 0.0
    %704 = vmatprep.subr.mxu0 0.0
    %705 = vmatpush2.msra.mxu0 0.0
    %706 = vmatprep.subr.mxu0 0.0
    %707 = vmatpush2.msra.mxu0 0.0
    %708 = vmatprep.mubr.f32.mxu0 0.0
    %709 = vmatmul.mubr.f32.gmra.mxu0 %v36
    %v710 = vpop.f32.mrf.mxu0
    %v711 = vadd.f32 %v642, %v710
    %v712 = vpop.f32.mrf.mxu0
    %713 = vdwg.mxu0
    %714 = vst.msk [vmem:[#allocation2 + $0x6] sm:$0x1] %vm130, %v711
    %715 = vst.msk [vmem:[#allocation2 + $0xd] sm:$0x2] %vm132, %v711
    %s716 = scalar_lea.vmem %s1, 896
    %v717 = vld [vmem:[%s716] sm:$0xff]
    %v718 = vld [vmem:[%s716 + $0x8] sm:$0xff]
    %v719 = vld [vmem:[%s716 + $0x10] sm:$0xff]
    %v720 = vld [vmem:[%s716 + $0x18] sm:$0xff]
    %v721 = vld [vmem:[%s716 + $0x20] sm:$0xff]
    %v722 = vld [vmem:[%s716 + $0x28] sm:$0xff]
    %v723 = vld [vmem:[%s716 + $0x30] sm:$0xff]
    %v724 = vld [vmem:[%s716 + $0x38] sm:$0xff]
    %v725 = vld [vmem:[%s716 + $0x40] sm:$0xff]
    %v726 = vld [vmem:[%s716 + $0x48] sm:$0xff]
    %v727 = vld [vmem:[%s716 + $0x50] sm:$0xff]
    %v728 = vld [vmem:[%s716 + $0x58] sm:$0xff]
    %v729 = vld [vmem:[%s716 + $0x60] sm:$0xff]
    %v730 = vld [vmem:[%s716 + $0x68] sm:$0xff]
    %v731 = vld [vmem:[%s716 + $0x70] sm:$0xff]
    %v732 = vld [vmem:[%s716 + $0x78] sm:$0xff]
    %s733 = scalar_lea.vmem %s2, 7
    %v734 = vld [vmem:[%s733] sm:$0x1]
    %v736 = vlaneseq
    %v737 = vshrl.u32 %v736, 7
    %v738 = vsub.s32 0, %v737
    %v739 = vrot.slane %v734, %v738
    %741 = vmatprep.subr.mxu0 0.0
    %742 = vmatpush1.msra.mxu0 %v732
    %743 = vmatprep.subr.mxu0 0.0
    %744 = vmatpush1.msra.mxu0 %v731
    %745 = vmatprep.subr.mxu0 0.0
    %746 = vmatpush1.msra.mxu0 %v730
    %747 = vmatprep.subr.mxu0 0.0
    %748 = vmatpush1.msra.mxu0 %v729
    %749 = vmatprep.subr.mxu0 0.0
    %750 = vmatpush1.msra.mxu0 %v728
    %751 = vmatprep.subr.mxu0 0.0
    %752 = vmatpush1.msra.mxu0 %v727
    %753 = vmatprep.subr.mxu0 0.0
    %754 = vmatpush1.msra.mxu0 %v726
    %755 = vmatprep.subr.mxu0 0.0
    %756 = vmatpush1.msra.mxu0 %v725
    %757 = vmatprep.subr.mxu0 0.0
    %758 = vmatpush1.msra.mxu0 %v724
    %759 = vmatprep.subr.mxu0 0.0
    %760 = vmatpush1.msra.mxu0 %v723
    %761 = vmatprep.subr.mxu0 0.0
    %762 = vmatpush1.msra.mxu0 %v722
    %763 = vmatprep.subr.mxu0 0.0
    %764 = vmatpush1.msra.mxu0 %v721
    %765 = vmatprep.subr.mxu0 0.0
    %766 = vmatpush1.msra.mxu0 %v720
    %767 = vmatprep.subr.mxu0 0.0
    %768 = vmatpush1.msra.mxu0 %v719
    %769 = vmatprep.subr.mxu0 0.0
    %770 = vmatpush1.msra.mxu0 %v718
    %771 = vmatprep.subr.mxu0 0.0
    %772 = vmatpush1.msra.mxu0 %v717
    %773 = vmatprep.subr.mxu0 0.0
    %774 = vmatpush2.msra.mxu0 0.0
    %775 = vmatprep.subr.mxu0 0.0
    %776 = vmatpush2.msra.mxu0 0.0
    %777 = vmatprep.subr.mxu0 0.0
    %778 = vmatpush2.msra.mxu0 0.0
    %779 = vmatprep.subr.mxu0 0.0
    %780 = vmatpush2.msra.mxu0 0.0
    %781 = vmatprep.subr.mxu0 0.0
    %782 = vmatpush2.msra.mxu0 0.0
    %783 = vmatprep.subr.mxu0 0.0
    %784 = vmatpush2.msra.mxu0 0.0
    %785 = vmatprep.subr.mxu0 0.0
    %786 = vmatpush2.msra.mxu0 0.0
    %787 = vmatprep.subr.mxu0 0.0
    %788 = vmatpush2.msra.mxu0 0.0
    %789 = vmatprep.subr.mxu0 0.0
    %790 = vmatpush2.msra.mxu0 0.0
    %791 = vmatprep.subr.mxu0 0.0
    %792 = vmatpush2.msra.mxu0 0.0
    %793 = vmatprep.subr.mxu0 0.0
    %794 = vmatpush2.msra.mxu0 0.0
    %795 = vmatprep.subr.mxu0 0.0
    %796 = vmatpush2.msra.mxu0 0.0
    %797 = vmatprep.subr.mxu0 0.0
    %798 = vmatpush2.msra.mxu0 0.0
    %799 = vmatprep.subr.mxu0 0.0
    %800 = vmatpush2.msra.mxu0 0.0
    %801 = vmatprep.subr.mxu0 0.0
    %802 = vmatpush2.msra.mxu0 0.0
    %803 = vmatprep.subr.mxu0 0.0
    %804 = vmatpush2.msra.mxu0 0.0
    %805 = vmatprep.mubr.f32.mxu0 0.0
    %806 = vmatmul.mubr.f32.gmra.mxu0 %v36
    %v807 = vpop.f32.mrf.mxu0
    %v808 = vadd.f32 %v739, %v807
    %v809 = vpop.f32.mrf.mxu0
    %810 = vdwg.mxu0
    %811 = vst.msk [vmem:[#allocation2 + $0x7] sm:$0x1] %vm130, %v808
    %812 = vst.msk [vmem:[#allocation2 + $0xe] sm:$0x2] %vm132, %v808
    %v813 = vld [vmem:[#allocation2] sm:$0xff]
    %v814 = vld [vmem:[#allocation2 + $0x8] sm:$0xff]
    %v815 = vlaneseq
    %v816 = vshrl.u32 %v815, 7
    %v817 = vadd.s32 %v816, 8
    %vm818 = vcmp.lt.s32.totalorder %v816, 0
    %v819 = vsub.s32 0, %v816
    %v820 = vsel %vm818, %v819, %v816
    %v821 = vshrl.u32 %v820, 3
    %v822 = vand.u32 %v820, 7
    %v823 = vsub.s32 0, %v822
    %v824 = vsel %vm818, %v823, %v822
    %vm825 = vcmp.lt.s32.totalorder %v817, 0
    %v826 = vsub.s32 0, %v817
    %v827 = vsel %vm825, %v826, %v817
    %v828 = vshrl.u32 %v827, 3
    %v829 = vand.u32 %v827, 7
    %v830 = vsub.s32 0, %v829
    %v831 = vsel %vm825, %v830, %v829
    %vm832 = vcmp.ne.s32.totalorder %v824, 0
    %vm833 = vcmp.ne.s32.totalorder %v831, 0
    %vm834 = vcmp.lt.s32.totalorder %v824, 0
    %vm835 = vcmp.lt.s32.totalorder %v831, 0
    %vm836 = vmand %vm834, %vm832
    %vm837 = vmand %vm835, %vm833
    %v838 = vadd.s32 %v824, 8
    %v839 = vadd.s32 %v831, 8
    %v840 = vsel %vm836, %v838, %v824
    %v841 = vsel %vm837, %v839, %v831
    %vm842 = vcmp.ne.s32.totalorder %v840, 0
    %vm843 = vcmp.ne.s32.totalorder %v841, 0
    %vm844 = vcmp.ne.s32.totalorder %v840, 7
    %vm845 = vcmp.ne.s32.totalorder %v841, 7
    %v846 = vmax.f32 %v813, 0.0
    %v847 = vmax.f32 %v814, 0.0
    %v848 = vld [vmem:[%s3] sm:$0xff]
    %v849 = vld [vmem:[%s3 + $0x8] sm:$0xff]
    %v850 = vld [vmem:[%s3 + $0x10] sm:$0xff]
    %v851 = vld [vmem:[%s3 + $0x18] sm:$0xff]
    %v852 = vld [vmem:[%s3 + $0x20] sm:$0xff]
    %v853 = vld [vmem:[%s3 + $0x28] sm:$0xff]
    %v854 = vld [vmem:[%s3 + $0x30] sm:$0xff]
    %v855 = vld [vmem:[%s3 + $0x38] sm:$0xff]
    %v856 = vld [vmem:[%s3 + $0x40] sm:$0xff]
    %v857 = vld [vmem:[%s3 + $0x48] sm:$0xff]
    %v858 = vld [vmem:[%s3 + $0x50] sm:$0xff]
    %v859 = vld [vmem:[%s3 + $0x58] sm:$0xff]
    %v860 = vld [vmem:[%s4] sm:$0x1]
    %vm863 = vcmask 1040384
    %v864 = vrot.slane %v846, 7
    %v865 = vrot.slane %v847, 7
    %v866 = vsel %vm863, %v864, %v865
    %v869 = vsel %vm863, 0.0, %v864
    %vm870 = vcmask 1046528
    %v871 = vrot.slane %v846, 1
    %v872 = vrot.slane %v847, 1
    %v873 = vsel %vm870, %v871, %v872
    %v876 = vsel %vm870, %v872, 0.0
    %v877 = vsel %vm842, 1, 0
    %v878 = vsel %vm843, 1, 0
    %vm879 = vcmp.eq.s32.totalorder %v877, 1
    %vm880 = vcmp.eq.s32.totalorder %v878, 1
    %v881 = vsel %vm879, %v869, 0.0
    %v882 = vsel %vm880, %v866, 0.0
    %v883 = vsel %vm844, 1, 0
    %v884 = vsel %vm845, 1, 0
    %vm885 = vcmp.eq.s32.totalorder %v883, 1
    %vm886 = vcmp.eq.s32.totalorder %v884, 1
    %v887 = vsel %vm885, %v873, 0.0
    %v888 = vsel %vm886, %v876, 0.0
    %889 = vrot.lane.b32.xlu0 %v846, 32
    %v890 = vpop.permute.xlu0 %889
    %891 = vrot.lane.b32.xlu0 %v847, 32
    %v892 = vpop.permute.xlu0 %891
    %897 = vrot.lane.b32.xlu0 %v887, 64
    %v898 = vpop.permute.xlu0 %897
    %899 = vrot.lane.b32.xlu0 %v888, 64
    %v900 = vpop.permute.xlu0 %899
    %vm903 = vcmask 261120
    %v904 = vsel %vm903, %v881, %v890
    %v905 = vsel %vm903, %v882, %v892
    %vm906 = vcmask 523264
    %v907 = vsel %vm906, %v904, %v898
    %v908 = vsel %vm906, %v905, %v900
    %v910 = vlaneseq
    %v911 = vshrl.u32 %v910, 7
    %v912 = vsub.s32 0, %v911
    %v913 = vrot.slane %v860, %v912
    %vm915 = vcmask 785408
    %v917 = vsel %vm915, %v907, 0
    %v920 = vsel %vm915, %v908, 0
    %922 = vmatprep.subr.mxu0 0.0
    %923 = vmatpush1.msra.mxu0 0.0
    %924 = vmatprep.subr.mxu0 0.0
    %925 = vmatpush1.msra.mxu0 0.0
    %926 = vmatprep.subr.mxu0 0.0
    %927 = vmatpush1.msra.mxu0 0.0
    %928 = vmatprep.subr.mxu0 0.0
    %929 = vmatpush1.msra.mxu0 0.0
    %930 = vmatprep.subr.mxu0 0.0
    %931 = vmatpush1.msra.mxu0 %v859
    %932 = vmatprep.subr.mxu0 0.0
    %933 = vmatpush1.msra.mxu0 %v858
    %934 = vmatprep.subr.mxu0 0.0
    %935 = vmatpush1.msra.mxu0 %v857
    %936 = vmatprep.subr.mxu0 0.0
    %937 = vmatpush1.msra.mxu0 %v856
    %938 = vmatprep.subr.mxu0 0.0
    %939 = vmatpush1.msra.mxu0 %v855
    %940 = vmatprep.subr.mxu0 0.0
    %941 = vmatpush1.msra.mxu0 %v854
    %942 = vmatprep.subr.mxu0 0.0
    %943 = vmatpush1.msra.mxu0 %v853
    %944 = vmatprep.subr.mxu0 0.0
    %945 = vmatpush1.msra.mxu0 %v852
    %946 = vmatprep.subr.mxu0 0.0
    %947 = vmatpush1.msra.mxu0 %v851
    %948 = vmatprep.subr.mxu0 0.0
    %949 = vmatpush1.msra.mxu0 %v850
    %950 = vmatprep.subr.mxu0 0.0
    %951 = vmatpush1.msra.mxu0 %v849
    %952 = vmatprep.subr.mxu0 0.0
    %953 = vmatpush1.msra.mxu0 %v848
    %954 = vmatprep.subr.mxu0 0.0
    %955 = vmatpush2.msra.mxu0 0.0
    %956 = vmatprep.subr.mxu0 0.0
    %957 = vmatpush2.msra.mxu0 0.0
    %958 = vmatprep.subr.mxu0 0.0
    %959 = vmatpush2.msra.mxu0 0.0
    %960 = vmatprep.subr.mxu0 0.0
    %961 = vmatpush2.msra.mxu0 0.0
    %962 = vmatprep.subr.mxu0 0.0
    %963 = vmatpush2.msra.mxu0 0.0
    %964 = vmatprep.subr.mxu0 0.0
    %965 = vmatpush2.msra.mxu0 0.0
    %966 = vmatprep.subr.mxu0 0.0
    %967 = vmatpush2.msra.mxu0 0.0
    %968 = vmatprep.subr.mxu0 0.0
    %969 = vmatpush2.msra.mxu0 0.0
    %970 = vmatprep.subr.mxu0 0.0
    %971 = vmatpush2.msra.mxu0 0.0
    %972 = vmatprep.subr.mxu0 0.0
    %973 = vmatpush2.msra.mxu0 0.0
    %974 = vmatprep.subr.mxu0 0.0
    %975 = vmatpush2.msra.mxu0 0.0
    %976 = vmatprep.subr.mxu0 0.0
    %977 = vmatpush2.msra.mxu0 0.0
    %978 = vmatprep.subr.mxu0 0.0
    %979 = vmatpush2.msra.mxu0 0.0
    %980 = vmatprep.subr.mxu0 0.0
    %981 = vmatpush2.msra.mxu0 0.0
    %982 = vmatprep.subr.mxu0 0.0
    %983 = vmatpush2.msra.mxu0 0.0
    %984 = vmatprep.subr.mxu0 0.0
    %985 = vmatpush2.msra.mxu0 0.0
    %986 = vmatprep.mubr.f32.mxu0 0.0
    %987 = vmatmul.mubr.f32.gmra.mxu0 %v917
    %v988 = vpop.f32.mrf.mxu0
    %v989 = vadd.f32 %v913, %v988
    %v990 = vpop.f32.mrf.mxu0
    %991 = vmatprep.mubr.f32.mxu0 0.0
    %992 = vmatmul.mubr.f32.gmra.mxu0 %v920
    %v993 = vpop.f32.mrf.mxu0
    %v994 = vadd.f32 %v913, %v993
    %v995 = vpop.f32.mrf.mxu0
    %996 = vdwg.mxu0
    %v997 = vmax.f32 %v989, 0.0
    %v998 = vmax.f32 %v994, 0.0
    %v999 = vld [vmem:[%s5] sm:$0xff]
    %v1000 = vld [vmem:[%s5 + $0x8] sm:$0xff]
    %v1001 = vld [vmem:[%s5 + $0x10] sm:$0xff]
    %v1002 = vld [vmem:[%s5 + $0x18] sm:$0xff]
    %v1003 = vld [vmem:[%s5 + $0x20] sm:$0xff]
    %v1004 = vld [vmem:[%s5 + $0x28] sm:$0xff]
    %v1005 = vld [vmem:[%s5 + $0x30] sm:$0xff]
    %v1006 = vld [vmem:[%s5 + $0x38] sm:$0xff]
    %v1007 = vld [vmem:[%s5 + $0x40] sm:$0xff]
    %v1008 = vld [vmem:[%s5 + $0x48] sm:$0xff]
    %v1009 = vld [vmem:[%s5 + $0x50] sm:$0xff]
    %v1010 = vld [vmem:[%s5 + $0x58] sm:$0xff]
    %v1011 = vld [vmem:[%s6] sm:$0x1]
    %v1014 = vrot.slane %v997, 7
    %v1015 = vrot.slane %v998, 7
    %v1016 = vsel %vm863, %v1014, %v1015
    %v1019 = vsel %vm863, 0.0, %v1014
    %v1020 = vrot.slane %v997, 1
    %v1021 = vrot.slane %v998, 1
    %v1022 = vsel %vm870, %v1020, %v1021
    %v1025 = vsel %vm870, %v1021, 0.0
    %v1026 = vsel %vm879, %v1019, 0.0
    %v1027 = vsel %vm880, %v1016, 0.0
    %v1028 = vsel %vm885, %v1022, 0.0
    %v1029 = vsel %vm886, %v1025, 0.0
    %1030 = vrot.lane.b32.xlu0 %v997, 32
    %v1031 = vpop.permute.xlu0 %1030
    %1032 = vrot.lane.b32.xlu0 %v998, 32
    %v1033 = vpop.permute.xlu0 %1032
    %1038 = vrot.lane.b32.xlu0 %v1028, 64
    %v1039 = vpop.permute.xlu0 %1038
    %1040 = vrot.lane.b32.xlu0 %v1029, 64
    %v1041 = vpop.permute.xlu0 %1040
    %v1044 = vsel %vm903, %v1026, %v1031
    %v1045 = vsel %vm903, %v1027, %v1033
    %v1046 = vsel %vm906, %v1044, %v1039
    %v1047 = vsel %vm906, %v1045, %v1041
    %v1049 = vlaneseq
    %v1050 = vshrl.u32 %v1049, 7
    %v1051 = vsub.s32 0, %v1050
    %v1052 = vrot.slane %v1011, %v1051
    %v1055 = vsel %vm915, %v1046, 0
    %v1058 = vsel %vm915, %v1047, 0
    %1060 = vmatprep.subr.mxu0 0.0
    %1061 = vmatpush1.msra.mxu0 0.0
    %1062 = vmatprep.subr.mxu0 0.0
    %1063 = vmatpush1.msra.mxu0 0.0
    %1064 = vmatprep.subr.mxu0 0.0
    %1065 = vmatpush1.msra.mxu0 0.0
    %1066 = vmatprep.subr.mxu0 0.0
    %1067 = vmatpush1.msra.mxu0 0.0
    %1068 = vmatprep.subr.mxu0 0.0
    %1069 = vmatpush1.msra.mxu0 %v1010
    %1070 = vmatprep.subr.mxu0 0.0
    %1071 = vmatpush1.msra.mxu0 %v1009
    %1072 = vmatprep.subr.mxu0 0.0
    %1073 = vmatpush1.msra.mxu0 %v1008
    %1074 = vmatprep.subr.mxu0 0.0
    %1075 = vmatpush1.msra.mxu0 %v1007
    %1076 = vmatprep.subr.mxu0 0.0
    %1077 = vmatpush1.msra.mxu0 %v1006
    %1078 = vmatprep.subr.mxu0 0.0
    %1079 = vmatpush1.msra.mxu0 %v1005
    %1080 = vmatprep.subr.mxu0 0.0
    %1081 = vmatpush1.msra.mxu0 %v1004
    %1082 = vmatprep.subr.mxu0 0.0
    %1083 = vmatpush1.msra.mxu0 %v1003
    %1084 = vmatprep.subr.mxu0 0.0
    %1085 = vmatpush1.msra.mxu0 %v1002
    %1086 = vmatprep.subr.mxu0 0.0
    %1087 = vmatpush1.msra.mxu0 %v1001
    %1088 = vmatprep.subr.mxu0 0.0
    %1089 = vmatpush1.msra.mxu0 %v1000
    %1090 = vmatprep.subr.mxu0 0.0
    %1091 = vmatpush1.msra.mxu0 %v999
    %1092 = vmatprep.subr.mxu0 0.0
    %1093 = vmatpush2.msra.mxu0 0.0
    %1094 = vmatprep.subr.mxu0 0.0
    %1095 = vmatpush2.msra.mxu0 0.0
    %1096 = vmatprep.subr.mxu0 0.0
    %1097 = vmatpush2.msra.mxu0 0.0
    %1098 = vmatprep.subr.mxu0 0.0
    %1099 = vmatpush2.msra.mxu0 0.0
    %1100 = vmatprep.subr.mxu0 0.0
    %1101 = vmatpush2.msra.mxu0 0.0
    %1102 = vmatprep.subr.mxu0 0.0
    %1103 = vmatpush2.msra.mxu0 0.0
    %1104 = vmatprep.subr.mxu0 0.0
    %1105 = vmatpush2.msra.mxu0 0.0
    %1106 = vmatprep.subr.mxu0 0.0
    %1107 = vmatpush2.msra.mxu0 0.0
    %1108 = vmatprep.subr.mxu0 0.0
    %1109 = vmatpush2.msra.mxu0 0.0
    %1110 = vmatprep.subr.mxu0 0.0
    %1111 = vmatpush2.msra.mxu0 0.0
    %1112 = vmatprep.subr.mxu0 0.0
    %1113 = vmatpush2.msra.mxu0 0.0
    %1114 = vmatprep.subr.mxu0 0.0
    %1115 = vmatpush2.msra.mxu0 0.0
    %1116 = vmatprep.subr.mxu0 0.0
    %1117 = vmatpush2.msra.mxu0 0.0
    %1118 = vmatprep.subr.mxu0 0.0
    %1119 = vmatpush2.msra.mxu0 0.0
    %1120 = vmatprep.subr.mxu0 0.0
    %1121 = vmatpush2.msra.mxu0 0.0
    %1122 = vmatprep.subr.mxu0 0.0
    %1123 = vmatpush2.msra.mxu0 0.0
    %1124 = vmatprep.mubr.f32.mxu0 0.0
    %1125 = vmatmul.mubr.f32.gmra.mxu0 %v1055
    %v1126 = vpop.f32.mrf.mxu0
    %v1127 = vadd.f32 %v1052, %v1126
    %v1128 = vpop.f32.mrf.mxu0
    %1129 = vmatprep.mubr.f32.mxu0 0.0
    %1130 = vmatmul.mubr.f32.gmra.mxu0 %v1058
    %v1131 = vpop.f32.mrf.mxu0
    %v1132 = vadd.f32 %v1052, %v1131
    %v1133 = vpop.f32.mrf.mxu0
    %1134 = vdwg.mxu0
    %v1135 = vmul.f32 %v1127, 0.3
    %v1136 = vmul.f32 %v1132, 0.3
    %v1137 = vadd.f32 %v813, %v1135
    %v1138 = vadd.f32 %v814, %v1136
    %v1139 = vmax.f32 %v1137, 0.0
    %v1140 = vmax.f32 %v1138, 0.0
    %s1141 = scalar_lea.vmem %s3, 96
    %v1142 = vld [vmem:[%s1141] sm:$0xff]
    %v1143 = vld [vmem:[%s1141 + $0x8] sm:$0xff]
    %v1144 = vld [vmem:[%s1141 + $0x10] sm:$0xff]
    %v1145 = vld [vmem:[%s1141 + $0x18] sm:$0xff]
    %v1146 = vld [vmem:[%s1141 + $0x20] sm:$0xff]
    %v1147 = vld [vmem:[%s1141 + $0x28] sm:$0xff]
    %v1148 = vld [vmem:[%s1141 + $0x30] sm:$0xff]
    %v1149 = vld [vmem:[%s1141 + $0x38] sm:$0xff]
    %v1150 = vld [vmem:[%s1141 + $0x40] sm:$0xff]
    %v1151 = vld [vmem:[%s1141 + $0x48] sm:$0xff]
    %v1152 = vld [vmem:[%s1141 + $0x50] sm:$0xff]
    %v1153 = vld [vmem:[%s1141 + $0x58] sm:$0xff]
    %s1154 = scalar_lea.vmem %s4, 1
    %v1155 = vld [vmem:[%s1154] sm:$0x1]
    %v1158 = vrot.slane %v1139, 7
    %v1159 = vrot.slane %v1140, 7
    %v1160 = vsel %vm863, %v1158, %v1159
    %v1163 = vsel %vm863, 0.0, %v1158
    %v1164 = vrot.slane %v1139, 1
    %v1165 = vrot.slane %v1140, 1
    %v1166 = vsel %vm870, %v1164, %v1165
    %v1169 = vsel %vm870, %v1165, 0.0
    %v1170 = vsel %vm879, %v1163, 0.0
    %v1171 = vsel %vm880, %v1160, 0.0
    %v1172 = vsel %vm885, %v1166, 0.0
    %v1173 = vsel %vm886, %v1169, 0.0
    %1174 = vrot.lane.b32.xlu0 %v1139, 32
    %v1175 = vpop.permute.xlu0 %1174
    %1176 = vrot.lane.b32.xlu0 %v1140, 32
    %v1177 = vpop.permute.xlu0 %1176
    %1182 = vrot.lane.b32.xlu0 %v1172, 64
    %v1183 = vpop.permute.xlu0 %1182
    %1184 = vrot.lane.b32.xlu0 %v1173, 64
    %v1185 = vpop.permute.xlu0 %1184
    %v1188 = vsel %vm903, %v1170, %v1175
    %v1189 = vsel %vm903, %v1171, %v1177
    %v1190 = vsel %vm906, %v1188, %v1183
    %v1191 = vsel %vm906, %v1189, %v1185
    %v1193 = vlaneseq
    %v1194 = vshrl.u32 %v1193, 7
    %v1195 = vsub.s32 0, %v1194
    %v1196 = vrot.slane %v1155, %v1195
    %v1199 = vsel %vm915, %v1190, 0
    %v1202 = vsel %vm915, %v1191, 0
    %1204 = vmatprep.subr.mxu0 0.0
    %1205 = vmatpush1.msra.mxu0 0.0
    %1206 = vmatprep.subr.mxu0 0.0
    %1207 = vmatpush1.msra.mxu0 0.0
    %1208 = vmatprep.subr.mxu0 0.0
    %1209 = vmatpush1.msra.mxu0 0.0
    %1210 = vmatprep.subr.mxu0 0.0
    %1211 = vmatpush1.msra.mxu0 0.0
    %1212 = vmatprep.subr.mxu0 0.0
    %1213 = vmatpush1.msra.mxu0 %v1153
    %1214 = vmatprep.subr.mxu0 0.0
    %1215 = vmatpush1.msra.mxu0 %v1152
    %1216 = vmatprep.subr.mxu0 0.0
    %1217 = vmatpush1.msra.mxu0 %v1151
    %1218 = vmatprep.subr.mxu0 0.0
    %1219 = vmatpush1.msra.mxu0 %v1150
    %1220 = vmatprep.subr.mxu0 0.0
    %1221 = vmatpush1.msra.mxu0 %v1149
    %1222 = vmatprep.subr.mxu0 0.0
    %1223 = vmatpush1.msra.mxu0 %v1148
    %1224 = vmatprep.subr.mxu0 0.0
    %1225 = vmatpush1.msra.mxu0 %v1147
    %1226 = vmatprep.subr.mxu0 0.0
    %1227 = vmatpush1.msra.mxu0 %v1146
    %1228 = vmatprep.subr.mxu0 0.0
    %1229 = vmatpush1.msra.mxu0 %v1145
    %1230 = vmatprep.subr.mxu0 0.0
    %1231 = vmatpush1.msra.mxu0 %v1144
    %1232 = vmatprep.subr.mxu0 0.0
    %1233 = vmatpush1.msra.mxu0 %v1143
    %1234 = vmatprep.subr.mxu0 0.0
    %1235 = vmatpush1.msra.mxu0 %v1142
    %1236 = vmatprep.subr.mxu0 0.0
    %1237 = vmatpush2.msra.mxu0 0.0
    %1238 = vmatprep.subr.mxu0 0.0
    %1239 = vmatpush2.msra.mxu0 0.0
    %1240 = vmatprep.subr.mxu0 0.0
    %1241 = vmatpush2.msra.mxu0 0.0
    %1242 = vmatprep.subr.mxu0 0.0
    %1243 = vmatpush2.msra.mxu0 0.0
    %1244 = vmatprep.subr.mxu0 0.0
    %1245 = vmatpush2.msra.mxu0 0.0
    %1246 = vmatprep.subr.mxu0 0.0
    %1247 = vmatpush2.msra.mxu0 0.0
    %1248 = vmatprep.subr.mxu0 0.0
    %1249 = vmatpush2.msra.mxu0 0.0
    %1250 = vmatprep.subr.mxu0 0.0
    %1251 = vmatpush2.msra.mxu0 0.0
    %1252 = vmatprep.subr.mxu0 0.0
    %1253 = vmatpush2.msra.mxu0 0.0
    %1254 = vmatprep.subr.mxu0 0.0
    %1255 = vmatpush2.msra.mxu0 0.0
    %1256 = vmatprep.subr.mxu0 0.0
    %1257 = vmatpush2.msra.mxu0 0.0
    %1258 = vmatprep.subr.mxu0 0.0
    %1259 = vmatpush2.msra.mxu0 0.0
    %1260 = vmatprep.subr.mxu0 0.0
    %1261 = vmatpush2.msra.mxu0 0.0
    %1262 = vmatprep.subr.mxu0 0.0
    %1263 = vmatpush2.msra.mxu0 0.0
    %1264 = vmatprep.subr.mxu0 0.0
    %1265 = vmatpush2.msra.mxu0 0.0
    %1266 = vmatprep.subr.mxu0 0.0
    %1267 = vmatpush2.msra.mxu0 0.0
    %1268 = vmatprep.mubr.f32.mxu0 0.0
    %1269 = vmatmul.mubr.f32.gmra.mxu0 %v1199
    %v1270 = vpop.f32.mrf.mxu0
    %v1271 = vadd.f32 %v1196, %v1270
    %v1272 = vpop.f32.mrf.mxu0
    %1273 = vmatprep.mubr.f32.mxu0 0.0
    %1274 = vmatmul.mubr.f32.gmra.mxu0 %v1202
    %v1275 = vpop.f32.mrf.mxu0
    %v1276 = vadd.f32 %v1196, %v1275
    %v1277 = vpop.f32.mrf.mxu0
    %1278 = vdwg.mxu0
    %v1279 = vmax.f32 %v1271, 0.0
    %v1280 = vmax.f32 %v1276, 0.0
    %s1281 = scalar_lea.vmem %s5, 96
    %v1282 = vld [vmem:[%s1281] sm:$0xff]
    %v1283 = vld [vmem:[%s1281 + $0x8] sm:$0xff]
    %v1284 = vld [vmem:[%s1281 + $0x10] sm:$0xff]
    %v1285 = vld [vmem:[%s1281 + $0x18] sm:$0xff]
    %v1286 = vld [vmem:[%s1281 + $0x20] sm:$0xff]
    %v1287 = vld [vmem:[%s1281 + $0x28] sm:$0xff]
    %v1288 = vld [vmem:[%s1281 + $0x30] sm:$0xff]
    %v1289 = vld [vmem:[%s1281 + $0x38] sm:$0xff]
    %v1290 = vld [vmem:[%s1281 + $0x40] sm:$0xff]
    %v1291 = vld [vmem:[%s1281 + $0x48] sm:$0xff]
    %v1292 = vld [vmem:[%s1281 + $0x50] sm:$0xff]
    %v1293 = vld [vmem:[%s1281 + $0x58] sm:$0xff]
    %s1294 = scalar_lea.vmem %s6, 1
    %v1295 = vld [vmem:[%s1294] sm:$0x1]
    %v1298 = vrot.slane %v1279, 7
    %v1299 = vrot.slane %v1280, 7
    %v1300 = vsel %vm863, %v1298, %v1299
    %v1303 = vsel %vm863, 0.0, %v1298
    %v1304 = vrot.slane %v1279, 1
    %v1305 = vrot.slane %v1280, 1
    %v1306 = vsel %vm870, %v1304, %v1305
    %v1309 = vsel %vm870, %v1305, 0.0
    %v1310 = vsel %vm879, %v1303, 0.0
    %v1311 = vsel %vm880, %v1300, 0.0
    %v1312 = vsel %vm885, %v1306, 0.0
    %v1313 = vsel %vm886, %v1309, 0.0
    %1314 = vrot.lane.b32.xlu0 %v1279, 32
    %v1315 = vpop.permute.xlu0 %1314
    %1316 = vrot.lane.b32.xlu0 %v1280, 32
    %v1317 = vpop.permute.xlu0 %1316
    %1322 = vrot.lane.b32.xlu0 %v1312, 64
    %v1323 = vpop.permute.xlu0 %1322
    %1324 = vrot.lane.b32.xlu0 %v1313, 64
    %v1325 = vpop.permute.xlu0 %1324
    %v1328 = vsel %vm903, %v1310, %v1315
    %v1329 = vsel %vm903, %v1311, %v1317
    %v1330 = vsel %vm906, %v1328, %v1323
    %v1331 = vsel %vm906, %v1329, %v1325
    %v1333 = vlaneseq
    %v1334 = vshrl.u32 %v1333, 7
    %v1335 = vsub.s32 0, %v1334
    %v1336 = vrot.slane %v1295, %v1335
    %v1339 = vsel %vm915, %v1330, 0
    %v1342 = vsel %vm915, %v1331, 0
    %1344 = vmatprep.subr.mxu0 0.0
    %1345 = vmatpush1.msra.mxu0 0.0
    %1346 = vmatprep.subr.mxu0 0.0
    %1347 = vmatpush1.msra.mxu0 0.0
    %1348 = vmatprep.subr.mxu0 0.0
    %1349 = vmatpush1.msra.mxu0 0.0
    %1350 = vmatprep.subr.mxu0 0.0
    %1351 = vmatpush1.msra.mxu0 0.0
    %1352 = vmatprep.subr.mxu0 0.0
    %1353 = vmatpush1.msra.mxu0 %v1293
    %1354 = vmatprep.subr.mxu0 0.0
    %1355 = vmatpush1.msra.mxu0 %v1292
    %1356 = vmatprep.subr.mxu0 0.0
    %1357 = vmatpush1.msra.mxu0 %v1291
    %1358 = vmatprep.subr.mxu0 0.0
    %1359 = vmatpush1.msra.mxu0 %v1290
    %1360 = vmatprep.subr.mxu0 0.0
    %1361 = vmatpush1.msra.mxu0 %v1289
    %1362 = vmatprep.subr.mxu0 0.0
    %1363 = vmatpush1.msra.mxu0 %v1288
    %1364 = vmatprep.subr.mxu0 0.0
    %1365 = vmatpush1.msra.mxu0 %v1287
    %1366 = vmatprep.subr.mxu0 0.0
    %1367 = vmatpush1.msra.mxu0 %v1286
    %1368 = vmatprep.subr.mxu0 0.0
    %1369 = vmatpush1.msra.mxu0 %v1285
    %1370 = vmatprep.subr.mxu0 0.0
    %1371 = vmatpush1.msra.mxu0 %v1284
    %1372 = vmatprep.subr.mxu0 0.0
    %1373 = vmatpush1.msra.mxu0 %v1283
    %1374 = vmatprep.subr.mxu0 0.0
    %1375 = vmatpush1.msra.mxu0 %v1282
    %1376 = vmatprep.subr.mxu0 0.0
    %1377 = vmatpush2.msra.mxu0 0.0
    %1378 = vmatprep.subr.mxu0 0.0
    %1379 = vmatpush2.msra.mxu0 0.0
    %1380 = vmatprep.subr.mxu0 0.0
    %1381 = vmatpush2.msra.mxu0 0.0
    %1382 = vmatprep.subr.mxu0 0.0
    %1383 = vmatpush2.msra.mxu0 0.0
    %1384 = vmatprep.subr.mxu0 0.0
    %1385 = vmatpush2.msra.mxu0 0.0
    %1386 = vmatprep.subr.mxu0 0.0
    %1387 = vmatpush2.msra.mxu0 0.0
    %1388 = vmatprep.subr.mxu0 0.0
    %1389 = vmatpush2.msra.mxu0 0.0
    %1390 = vmatprep.subr.mxu0 0.0
    %1391 = vmatpush2.msra.mxu0 0.0
    %1392 = vmatprep.subr.mxu0 0.0
    %1393 = vmatpush2.msra.mxu0 0.0
    %1394 = vmatprep.subr.mxu0 0.0
    %1395 = vmatpush2.msra.mxu0 0.0
    %1396 = vmatprep.subr.mxu0 0.0
    %1397 = vmatpush2.msra.mxu0 0.0
    %1398 = vmatprep.subr.mxu0 0.0
    %1399 = vmatpush2.msra.mxu0 0.0
    %1400 = vmatprep.subr.mxu0 0.0
    %1401 = vmatpush2.msra.mxu0 0.0
    %1402 = vmatprep.subr.mxu0 0.0
    %1403 = vmatpush2.msra.mxu0 0.0
    %1404 = vmatprep.subr.mxu0 0.0
    %1405 = vmatpush2.msra.mxu0 0.0
    %1406 = vmatprep.subr.mxu0 0.0
    %1407 = vmatpush2.msra.mxu0 0.0
    %1408 = vmatprep.mubr.f32.mxu0 0.0
    %1409 = vmatmul.mubr.f32.gmra.mxu0 %v1339
    %v1410 = vpop.f32.mrf.mxu0
    %v1411 = vadd.f32 %v1336, %v1410
    %v1412 = vpop.f32.mrf.mxu0
    %1413 = vmatprep.mubr.f32.mxu0 0.0
    %1414 = vmatmul.mubr.f32.gmra.mxu0 %v1342
    %v1415 = vpop.f32.mrf.mxu0
    %v1416 = vadd.f32 %v1336, %v1415
    %v1417 = vpop.f32.mrf.mxu0
    %1418 = vdwg.mxu0
    %v1419 = vmul.f32 %v1411, 0.3
    %v1420 = vmul.f32 %v1416, 0.3
    %v1421 = vadd.f32 %v1137, %v1419
    %v1422 = vadd.f32 %v1138, %v1420
    %v1423 = vmax.f32 %v1421, 0.0
    %v1424 = vmax.f32 %v1422, 0.0
    %s1425 = scalar_lea.vmem %s3, 192
    %v1426 = vld [vmem:[%s1425] sm:$0xff]
    %v1427 = vld [vmem:[%s1425 + $0x8] sm:$0xff]
    %v1428 = vld [vmem:[%s1425 + $0x10] sm:$0xff]
    %v1429 = vld [vmem:[%s1425 + $0x18] sm:$0xff]
    %v1430 = vld [vmem:[%s1425 + $0x20] sm:$0xff]
    %v1431 = vld [vmem:[%s1425 + $0x28] sm:$0xff]
    %v1432 = vld [vmem:[%s1425 + $0x30] sm:$0xff]
    %v1433 = vld [vmem:[%s1425 + $0x38] sm:$0xff]
    %v1434 = vld [vmem:[%s1425 + $0x40] sm:$0xff]
    %v1435 = vld [vmem:[%s1425 + $0x48] sm:$0xff]
    %v1436 = vld [vmem:[%s1425 + $0x50] sm:$0xff]
    %v1437 = vld [vmem:[%s1425 + $0x58] sm:$0xff]
    %s1438 = scalar_lea.vmem %s4, 2
    %v1439 = vld [vmem:[%s1438] sm:$0x1]
    %v1442 = vrot.slane %v1423, 7
    %v1443 = vrot.slane %v1424, 7
    %v1444 = vsel %vm863, %v1442, %v1443
    %v1447 = vsel %vm863, 0.0, %v1442
    %v1448 = vrot.slane %v1423, 1
    %v1449 = vrot.slane %v1424, 1
    %v1450 = vsel %vm870, %v1448, %v1449
    %v1453 = vsel %vm870, %v1449, 0.0
    %v1454 = vsel %vm879, %v1447, 0.0
    %v1455 = vsel %vm880, %v1444, 0.0
    %v1456 = vsel %vm885, %v1450, 0.0
    %v1457 = vsel %vm886, %v1453, 0.0
    %1458 = vrot.lane.b32.xlu0 %v1423, 32
    %v1459 = vpop.permute.xlu0 %1458
    %1460 = vrot.lane.b32.xlu0 %v1424, 32
    %v1461 = vpop.permute.xlu0 %1460
    %1466 = vrot.lane.b32.xlu0 %v1456, 64
    %v1467 = vpop.permute.xlu0 %1466
    %1468 = vrot.lane.b32.xlu0 %v1457, 64
    %v1469 = vpop.permute.xlu0 %1468
    %v1472 = vsel %vm903, %v1454, %v1459
    %v1473 = vsel %vm903, %v1455, %v1461
    %v1474 = vsel %vm906, %v1472, %v1467
    %v1475 = vsel %vm906, %v1473, %v1469
    %v1477 = vlaneseq
    %v1478 = vshrl.u32 %v1477, 7
    %v1479 = vsub.s32 0, %v1478
    %v1480 = vrot.slane %v1439, %v1479
    %v1483 = vsel %vm915, %v1474, 0
    %v1486 = vsel %vm915, %v1475, 0
    %1488 = vmatprep.subr.mxu0 0.0
    %1489 = vmatpush1.msra.mxu0 0.0
    %1490 = vmatprep.subr.mxu0 0.0
    %1491 = vmatpush1.msra.mxu0 0.0
    %1492 = vmatprep.subr.mxu0 0.0
    %1493 = vmatpush1.msra.mxu0 0.0
    %1494 = vmatprep.subr.mxu0 0.0
    %1495 = vmatpush1.msra.mxu0 0.0
    %1496 = vmatprep.subr.mxu0 0.0
    %1497 = vmatpush1.msra.mxu0 %v1437
    %1498 = vmatprep.subr.mxu0 0.0
    %1499 = vmatpush1.msra.mxu0 %v1436
    %1500 = vmatprep.subr.mxu0 0.0
    %1501 = vmatpush1.msra.mxu0 %v1435
    %1502 = vmatprep.subr.mxu0 0.0
    %1503 = vmatpush1.msra.mxu0 %v1434
    %1504 = vmatprep.subr.mxu0 0.0
    %1505 = vmatpush1.msra.mxu0 %v1433
    %1506 = vmatprep.subr.mxu0 0.0
    %1507 = vmatpush1.msra.mxu0 %v1432
    %1508 = vmatprep.subr.mxu0 0.0
    %1509 = vmatpush1.msra.mxu0 %v1431
    %1510 = vmatprep.subr.mxu0 0.0
    %1511 = vmatpush1.msra.mxu0 %v1430
    %1512 = vmatprep.subr.mxu0 0.0
    %1513 = vmatpush1.msra.mxu0 %v1429
    %1514 = vmatprep.subr.mxu0 0.0
    %1515 = vmatpush1.msra.mxu0 %v1428
    %1516 = vmatprep.subr.mxu0 0.0
    %1517 = vmatpush1.msra.mxu0 %v1427
    %1518 = vmatprep.subr.mxu0 0.0
    %1519 = vmatpush1.msra.mxu0 %v1426
    %1520 = vmatprep.subr.mxu0 0.0
    %1521 = vmatpush2.msra.mxu0 0.0
    %1522 = vmatprep.subr.mxu0 0.0
    %1523 = vmatpush2.msra.mxu0 0.0
    %1524 = vmatprep.subr.mxu0 0.0
    %1525 = vmatpush2.msra.mxu0 0.0
    %1526 = vmatprep.subr.mxu0 0.0
    %1527 = vmatpush2.msra.mxu0 0.0
    %1528 = vmatprep.subr.mxu0 0.0
    %1529 = vmatpush2.msra.mxu0 0.0
    %1530 = vmatprep.subr.mxu0 0.0
    %1531 = vmatpush2.msra.mxu0 0.0
    %1532 = vmatprep.subr.mxu0 0.0
    %1533 = vmatpush2.msra.mxu0 0.0
    %1534 = vmatprep.subr.mxu0 0.0
    %1535 = vmatpush2.msra.mxu0 0.0
    %1536 = vmatprep.subr.mxu0 0.0
    %1537 = vmatpush2.msra.mxu0 0.0
    %1538 = vmatprep.subr.mxu0 0.0
    %1539 = vmatpush2.msra.mxu0 0.0
    %1540 = vmatprep.subr.mxu0 0.0
    %1541 = vmatpush2.msra.mxu0 0.0
    %1542 = vmatprep.subr.mxu0 0.0
    %1543 = vmatpush2.msra.mxu0 0.0
    %1544 = vmatprep.subr.mxu0 0.0
    %1545 = vmatpush2.msra.mxu0 0.0
    %1546 = vmatprep.subr.mxu0 0.0
    %1547 = vmatpush2.msra.mxu0 0.0
    %1548 = vmatprep.subr.mxu0 0.0
    %1549 = vmatpush2.msra.mxu0 0.0
    %1550 = vmatprep.subr.mxu0 0.0
    %1551 = vmatpush2.msra.mxu0 0.0
    %1552 = vmatprep.mubr.f32.mxu0 0.0
    %1553 = vmatmul.mubr.f32.gmra.mxu0 %v1483
    %v1554 = vpop.f32.mrf.mxu0
    %v1555 = vadd.f32 %v1480, %v1554
    %v1556 = vpop.f32.mrf.mxu0
    %1557 = vmatprep.mubr.f32.mxu0 0.0
    %1558 = vmatmul.mubr.f32.gmra.mxu0 %v1486
    %v1559 = vpop.f32.mrf.mxu0
    %v1560 = vadd.f32 %v1480, %v1559
    %v1561 = vpop.f32.mrf.mxu0
    %1562 = vdwg.mxu0
    %v1563 = vmax.f32 %v1555, 0.0
    %v1564 = vmax.f32 %v1560, 0.0
    %s1565 = scalar_lea.vmem %s5, 192
    %v1566 = vld [vmem:[%s1565] sm:$0xff]
    %v1567 = vld [vmem:[%s1565 + $0x8] sm:$0xff]
    %v1568 = vld [vmem:[%s1565 + $0x10] sm:$0xff]
    %v1569 = vld [vmem:[%s1565 + $0x18] sm:$0xff]
    %v1570 = vld [vmem:[%s1565 + $0x20] sm:$0xff]
    %v1571 = vld [vmem:[%s1565 + $0x28] sm:$0xff]
    %v1572 = vld [vmem:[%s1565 + $0x30] sm:$0xff]
    %v1573 = vld [vmem:[%s1565 + $0x38] sm:$0xff]
    %v1574 = vld [vmem:[%s1565 + $0x40] sm:$0xff]
    %v1575 = vld [vmem:[%s1565 + $0x48] sm:$0xff]
    %v1576 = vld [vmem:[%s1565 + $0x50] sm:$0xff]
    %v1577 = vld [vmem:[%s1565 + $0x58] sm:$0xff]
    %s1578 = scalar_lea.vmem %s6, 2
    %v1579 = vld [vmem:[%s1578] sm:$0x1]
    %v1582 = vrot.slane %v1563, 7
    %v1583 = vrot.slane %v1564, 7
    %v1584 = vsel %vm863, %v1582, %v1583
    %v1587 = vsel %vm863, 0.0, %v1582
    %v1588 = vrot.slane %v1563, 1
    %v1589 = vrot.slane %v1564, 1
    %v1590 = vsel %vm870, %v1588, %v1589
    %v1593 = vsel %vm870, %v1589, 0.0
    %v1594 = vsel %vm879, %v1587, 0.0
    %v1595 = vsel %vm880, %v1584, 0.0
    %v1596 = vsel %vm885, %v1590, 0.0
    %v1597 = vsel %vm886, %v1593, 0.0
    %1598 = vrot.lane.b32.xlu0 %v1563, 32
    %v1599 = vpop.permute.xlu0 %1598
    %1600 = vrot.lane.b32.xlu0 %v1564, 32
    %v1601 = vpop.permute.xlu0 %1600
    %1606 = vrot.lane.b32.xlu0 %v1596, 64
    %v1607 = vpop.permute.xlu0 %1606
    %1608 = vrot.lane.b32.xlu0 %v1597, 64
    %v1609 = vpop.permute.xlu0 %1608
    %v1612 = vsel %vm903, %v1594, %v1599
    %v1613 = vsel %vm903, %v1595, %v1601
    %v1614 = vsel %vm906, %v1612, %v1607
    %v1615 = vsel %vm906, %v1613, %v1609
    %v1617 = vlaneseq
    %v1618 = vshrl.u32 %v1617, 7
    %v1619 = vsub.s32 0, %v1618
    %v1620 = vrot.slane %v1579, %v1619
    %v1623 = vsel %vm915, %v1614, 0
    %v1626 = vsel %vm915, %v1615, 0
    %1628 = vmatprep.subr.mxu0 0.0
    %1629 = vmatpush1.msra.mxu0 0.0
    %1630 = vmatprep.subr.mxu0 0.0
    %1631 = vmatpush1.msra.mxu0 0.0
    %1632 = vmatprep.subr.mxu0 0.0
    %1633 = vmatpush1.msra.mxu0 0.0
    %1634 = vmatprep.subr.mxu0 0.0
    %1635 = vmatpush1.msra.mxu0 0.0
    %1636 = vmatprep.subr.mxu0 0.0
    %1637 = vmatpush1.msra.mxu0 %v1577
    %1638 = vmatprep.subr.mxu0 0.0
    %1639 = vmatpush1.msra.mxu0 %v1576
    %1640 = vmatprep.subr.mxu0 0.0
    %1641 = vmatpush1.msra.mxu0 %v1575
    %1642 = vmatprep.subr.mxu0 0.0
    %1643 = vmatpush1.msra.mxu0 %v1574
    %1644 = vmatprep.subr.mxu0 0.0
    %1645 = vmatpush1.msra.mxu0 %v1573
    %1646 = vmatprep.subr.mxu0 0.0
    %1647 = vmatpush1.msra.mxu0 %v1572
    %1648 = vmatprep.subr.mxu0 0.0
    %1649 = vmatpush1.msra.mxu0 %v1571
    %1650 = vmatprep.subr.mxu0 0.0
    %1651 = vmatpush1.msra.mxu0 %v1570
    %1652 = vmatprep.subr.mxu0 0.0
    %1653 = vmatpush1.msra.mxu0 %v1569
    %1654 = vmatprep.subr.mxu0 0.0
    %1655 = vmatpush1.msra.mxu0 %v1568
    %1656 = vmatprep.subr.mxu0 0.0
    %1657 = vmatpush1.msra.mxu0 %v1567
    %1658 = vmatprep.subr.mxu0 0.0
    %1659 = vmatpush1.msra.mxu0 %v1566
    %1660 = vmatprep.subr.mxu0 0.0
    %1661 = vmatpush2.msra.mxu0 0.0
    %1662 = vmatprep.subr.mxu0 0.0
    %1663 = vmatpush2.msra.mxu0 0.0
    %1664 = vmatprep.subr.mxu0 0.0
    %1665 = vmatpush2.msra.mxu0 0.0
    %1666 = vmatprep.subr.mxu0 0.0
    %1667 = vmatpush2.msra.mxu0 0.0
    %1668 = vmatprep.subr.mxu0 0.0
    %1669 = vmatpush2.msra.mxu0 0.0
    %1670 = vmatprep.subr.mxu0 0.0
    %1671 = vmatpush2.msra.mxu0 0.0
    %1672 = vmatprep.subr.mxu0 0.0
    %1673 = vmatpush2.msra.mxu0 0.0
    %1674 = vmatprep.subr.mxu0 0.0
    %1675 = vmatpush2.msra.mxu0 0.0
    %1676 = vmatprep.subr.mxu0 0.0
    %1677 = vmatpush2.msra.mxu0 0.0
    %1678 = vmatprep.subr.mxu0 0.0
    %1679 = vmatpush2.msra.mxu0 0.0
    %1680 = vmatprep.subr.mxu0 0.0
    %1681 = vmatpush2.msra.mxu0 0.0
    %1682 = vmatprep.subr.mxu0 0.0
    %1683 = vmatpush2.msra.mxu0 0.0
    %1684 = vmatprep.subr.mxu0 0.0
    %1685 = vmatpush2.msra.mxu0 0.0
    %1686 = vmatprep.subr.mxu0 0.0
    %1687 = vmatpush2.msra.mxu0 0.0
    %1688 = vmatprep.subr.mxu0 0.0
    %1689 = vmatpush2.msra.mxu0 0.0
    %1690 = vmatprep.subr.mxu0 0.0
    %1691 = vmatpush2.msra.mxu0 0.0
    %1692 = vmatprep.mubr.f32.mxu0 0.0
    %1693 = vmatmul.mubr.f32.gmra.mxu0 %v1623
    %v1694 = vpop.f32.mrf.mxu0
    %v1695 = vadd.f32 %v1620, %v1694
    %v1696 = vpop.f32.mrf.mxu0
    %1697 = vmatprep.mubr.f32.mxu0 0.0
    %1698 = vmatmul.mubr.f32.gmra.mxu0 %v1626
    %v1699 = vpop.f32.mrf.mxu0
    %v1700 = vadd.f32 %v1620, %v1699
    %v1701 = vpop.f32.mrf.mxu0
    %1702 = vdwg.mxu0
    %v1703 = vmul.f32 %v1695, 0.3
    %v1704 = vmul.f32 %v1700, 0.3
    %v1705 = vadd.f32 %v1421, %v1703
    %v1706 = vadd.f32 %v1422, %v1704
    %v1707 = vmax.f32 %v1705, 0.0
    %v1708 = vmax.f32 %v1706, 0.0
    %s1709 = scalar_lea.vmem %s3, 288
    %v1710 = vld [vmem:[%s1709] sm:$0xff]
    %v1711 = vld [vmem:[%s1709 + $0x8] sm:$0xff]
    %v1712 = vld [vmem:[%s1709 + $0x10] sm:$0xff]
    %v1713 = vld [vmem:[%s1709 + $0x18] sm:$0xff]
    %v1714 = vld [vmem:[%s1709 + $0x20] sm:$0xff]
    %v1715 = vld [vmem:[%s1709 + $0x28] sm:$0xff]
    %v1716 = vld [vmem:[%s1709 + $0x30] sm:$0xff]
    %v1717 = vld [vmem:[%s1709 + $0x38] sm:$0xff]
    %v1718 = vld [vmem:[%s1709 + $0x40] sm:$0xff]
    %v1719 = vld [vmem:[%s1709 + $0x48] sm:$0xff]
    %v1720 = vld [vmem:[%s1709 + $0x50] sm:$0xff]
    %v1721 = vld [vmem:[%s1709 + $0x58] sm:$0xff]
    %s1722 = scalar_lea.vmem %s4, 3
    %v1723 = vld [vmem:[%s1722] sm:$0x1]
    %v1726 = vrot.slane %v1707, 7
    %v1727 = vrot.slane %v1708, 7
    %v1728 = vsel %vm863, %v1726, %v1727
    %v1731 = vsel %vm863, 0.0, %v1726
    %v1732 = vrot.slane %v1707, 1
    %v1733 = vrot.slane %v1708, 1
    %v1734 = vsel %vm870, %v1732, %v1733
    %v1737 = vsel %vm870, %v1733, 0.0
    %v1738 = vsel %vm879, %v1731, 0.0
    %v1739 = vsel %vm880, %v1728, 0.0
    %v1740 = vsel %vm885, %v1734, 0.0
    %v1741 = vsel %vm886, %v1737, 0.0
    %1742 = vrot.lane.b32.xlu0 %v1707, 32
    %v1743 = vpop.permute.xlu0 %1742
    %1744 = vrot.lane.b32.xlu0 %v1708, 32
    %v1745 = vpop.permute.xlu0 %1744
    %1750 = vrot.lane.b32.xlu0 %v1740, 64
    %v1751 = vpop.permute.xlu0 %1750
    %1752 = vrot.lane.b32.xlu0 %v1741, 64
    %v1753 = vpop.permute.xlu0 %1752
    %v1756 = vsel %vm903, %v1738, %v1743
    %v1757 = vsel %vm903, %v1739, %v1745
    %v1758 = vsel %vm906, %v1756, %v1751
    %v1759 = vsel %vm906, %v1757, %v1753
    %v1761 = vlaneseq
    %v1762 = vshrl.u32 %v1761, 7
    %v1763 = vsub.s32 0, %v1762
    %v1764 = vrot.slane %v1723, %v1763
    %v1767 = vsel %vm915, %v1758, 0
    %v1770 = vsel %vm915, %v1759, 0
    %1772 = vmatprep.subr.mxu0 0.0
    %1773 = vmatpush1.msra.mxu0 0.0
    %1774 = vmatprep.subr.mxu0 0.0
    %1775 = vmatpush1.msra.mxu0 0.0
    %1776 = vmatprep.subr.mxu0 0.0
    %1777 = vmatpush1.msra.mxu0 0.0
    %1778 = vmatprep.subr.mxu0 0.0
    %1779 = vmatpush1.msra.mxu0 0.0
    %1780 = vmatprep.subr.mxu0 0.0
    %1781 = vmatpush1.msra.mxu0 %v1721
    %1782 = vmatprep.subr.mxu0 0.0
    %1783 = vmatpush1.msra.mxu0 %v1720
    %1784 = vmatprep.subr.mxu0 0.0
    %1785 = vmatpush1.msra.mxu0 %v1719
    %1786 = vmatprep.subr.mxu0 0.0
    %1787 = vmatpush1.msra.mxu0 %v1718
    %1788 = vmatprep.subr.mxu0 0.0
    %1789 = vmatpush1.msra.mxu0 %v1717
    %1790 = vmatprep.subr.mxu0 0.0
    %1791 = vmatpush1.msra.mxu0 %v1716
    %1792 = vmatprep.subr.mxu0 0.0
    %1793 = vmatpush1.msra.mxu0 %v1715
    %1794 = vmatprep.subr.mxu0 0.0
    %1795 = vmatpush1.msra.mxu0 %v1714
    %1796 = vmatprep.subr.mxu0 0.0
    %1797 = vmatpush1.msra.mxu0 %v1713
    %1798 = vmatprep.subr.mxu0 0.0
    %1799 = vmatpush1.msra.mxu0 %v1712
    %1800 = vmatprep.subr.mxu0 0.0
    %1801 = vmatpush1.msra.mxu0 %v1711
    %1802 = vmatprep.subr.mxu0 0.0
    %1803 = vmatpush1.msra.mxu0 %v1710
    %1804 = vmatprep.subr.mxu0 0.0
    %1805 = vmatpush2.msra.mxu0 0.0
    %1806 = vmatprep.subr.mxu0 0.0
    %1807 = vmatpush2.msra.mxu0 0.0
    %1808 = vmatprep.subr.mxu0 0.0
    %1809 = vmatpush2.msra.mxu0 0.0
    %1810 = vmatprep.subr.mxu0 0.0
    %1811 = vmatpush2.msra.mxu0 0.0
    %1812 = vmatprep.subr.mxu0 0.0
    %1813 = vmatpush2.msra.mxu0 0.0
    %1814 = vmatprep.subr.mxu0 0.0
    %1815 = vmatpush2.msra.mxu0 0.0
    %1816 = vmatprep.subr.mxu0 0.0
    %1817 = vmatpush2.msra.mxu0 0.0
    %1818 = vmatprep.subr.mxu0 0.0
    %1819 = vmatpush2.msra.mxu0 0.0
    %1820 = vmatprep.subr.mxu0 0.0
    %1821 = vmatpush2.msra.mxu0 0.0
    %1822 = vmatprep.subr.mxu0 0.0
    %1823 = vmatpush2.msra.mxu0 0.0
    %1824 = vmatprep.subr.mxu0 0.0
    %1825 = vmatpush2.msra.mxu0 0.0
    %1826 = vmatprep.subr.mxu0 0.0
    %1827 = vmatpush2.msra.mxu0 0.0
    %1828 = vmatprep.subr.mxu0 0.0
    %1829 = vmatpush2.msra.mxu0 0.0
    %1830 = vmatprep.subr.mxu0 0.0
    %1831 = vmatpush2.msra.mxu0 0.0
    %1832 = vmatprep.subr.mxu0 0.0
    %1833 = vmatpush2.msra.mxu0 0.0
    %1834 = vmatprep.subr.mxu0 0.0
    %1835 = vmatpush2.msra.mxu0 0.0
    %1836 = vmatprep.mubr.f32.mxu0 0.0
    %1837 = vmatmul.mubr.f32.gmra.mxu0 %v1767
    %v1838 = vpop.f32.mrf.mxu0
    %v1839 = vadd.f32 %v1764, %v1838
    %v1840 = vpop.f32.mrf.mxu0
    %1841 = vmatprep.mubr.f32.mxu0 0.0
    %1842 = vmatmul.mubr.f32.gmra.mxu0 %v1770
    %v1843 = vpop.f32.mrf.mxu0
    %v1844 = vadd.f32 %v1764, %v1843
    %v1845 = vpop.f32.mrf.mxu0
    %1846 = vdwg.mxu0
    %v1847 = vmax.f32 %v1839, 0.0
    %v1848 = vmax.f32 %v1844, 0.0
    %s1849 = scalar_lea.vmem %s5, 288
    %v1850 = vld [vmem:[%s1849] sm:$0xff]
    %v1851 = vld [vmem:[%s1849 + $0x8] sm:$0xff]
    %v1852 = vld [vmem:[%s1849 + $0x10] sm:$0xff]
    %v1853 = vld [vmem:[%s1849 + $0x18] sm:$0xff]
    %v1854 = vld [vmem:[%s1849 + $0x20] sm:$0xff]
    %v1855 = vld [vmem:[%s1849 + $0x28] sm:$0xff]
    %v1856 = vld [vmem:[%s1849 + $0x30] sm:$0xff]
    %v1857 = vld [vmem:[%s1849 + $0x38] sm:$0xff]
    %v1858 = vld [vmem:[%s1849 + $0x40] sm:$0xff]
    %v1859 = vld [vmem:[%s1849 + $0x48] sm:$0xff]
    %v1860 = vld [vmem:[%s1849 + $0x50] sm:$0xff]
    %v1861 = vld [vmem:[%s1849 + $0x58] sm:$0xff]
    %s1862 = scalar_lea.vmem %s6, 3
    %v1863 = vld [vmem:[%s1862] sm:$0x1]
    %v1866 = vrot.slane %v1847, 7
    %v1867 = vrot.slane %v1848, 7
    %v1868 = vsel %vm863, %v1866, %v1867
    %v1871 = vsel %vm863, 0.0, %v1866
    %v1872 = vrot.slane %v1847, 1
    %v1873 = vrot.slane %v1848, 1
    %v1874 = vsel %vm870, %v1872, %v1873
    %v1877 = vsel %vm870, %v1873, 0.0
    %v1878 = vsel %vm879, %v1871, 0.0
    %v1879 = vsel %vm880, %v1868, 0.0
    %v1880 = vsel %vm885, %v1874, 0.0
    %v1881 = vsel %vm886, %v1877, 0.0
    %1882 = vrot.lane.b32.xlu0 %v1847, 32
    %v1883 = vpop.permute.xlu0 %1882
    %1884 = vrot.lane.b32.xlu0 %v1848, 32
    %v1885 = vpop.permute.xlu0 %1884
    %1890 = vrot.lane.b32.xlu0 %v1880, 64
    %v1891 = vpop.permute.xlu0 %1890
    %1892 = vrot.lane.b32.xlu0 %v1881, 64
    %v1893 = vpop.permute.xlu0 %1892
    %v1896 = vsel %vm903, %v1878, %v1883
    %v1897 = vsel %vm903, %v1879, %v1885
    %v1898 = vsel %vm906, %v1896, %v1891
    %v1899 = vsel %vm906, %v1897, %v1893
    %v1901 = vlaneseq
    %v1902 = vshrl.u32 %v1901, 7
    %v1903 = vsub.s32 0, %v1902
    %v1904 = vrot.slane %v1863, %v1903
    %v1907 = vsel %vm915, %v1898, 0
    %v1910 = vsel %vm915, %v1899, 0
    %1912 = vmatprep.subr.mxu0 0.0
    %1913 = vmatpush1.msra.mxu0 0.0
    %1914 = vmatprep.subr.mxu0 0.0
    %1915 = vmatpush1.msra.mxu0 0.0
    %1916 = vmatprep.subr.mxu0 0.0
    %1917 = vmatpush1.msra.mxu0 0.0
    %1918 = vmatprep.subr.mxu0 0.0
    %1919 = vmatpush1.msra.mxu0 0.0
    %1920 = vmatprep.subr.mxu0 0.0
    %1921 = vmatpush1.msra.mxu0 %v1861
    %1922 = vmatprep.subr.mxu0 0.0
    %1923 = vmatpush1.msra.mxu0 %v1860
    %1924 = vmatprep.subr.mxu0 0.0
    %1925 = vmatpush1.msra.mxu0 %v1859
    %1926 = vmatprep.subr.mxu0 0.0
    %1927 = vmatpush1.msra.mxu0 %v1858
    %1928 = vmatprep.subr.mxu0 0.0
    %1929 = vmatpush1.msra.mxu0 %v1857
    %1930 = vmatprep.subr.mxu0 0.0
    %1931 = vmatpush1.msra.mxu0 %v1856
    %1932 = vmatprep.subr.mxu0 0.0
    %1933 = vmatpush1.msra.mxu0 %v1855
    %1934 = vmatprep.subr.mxu0 0.0
    %1935 = vmatpush1.msra.mxu0 %v1854
    %1936 = vmatprep.subr.mxu0 0.0
    %1937 = vmatpush1.msra.mxu0 %v1853
    %1938 = vmatprep.subr.mxu0 0.0
    %1939 = vmatpush1.msra.mxu0 %v1852
    %1940 = vmatprep.subr.mxu0 0.0
    %1941 = vmatpush1.msra.mxu0 %v1851
    %1942 = vmatprep.subr.mxu0 0.0
    %1943 = vmatpush1.msra.mxu0 %v1850
    %1944 = vmatprep.subr.mxu0 0.0
    %1945 = vmatpush2.msra.mxu0 0.0
    %1946 = vmatprep.subr.mxu0 0.0
    %1947 = vmatpush2.msra.mxu0 0.0
    %1948 = vmatprep.subr.mxu0 0.0
    %1949 = vmatpush2.msra.mxu0 0.0
    %1950 = vmatprep.subr.mxu0 0.0
    %1951 = vmatpush2.msra.mxu0 0.0
    %1952 = vmatprep.subr.mxu0 0.0
    %1953 = vmatpush2.msra.mxu0 0.0
    %1954 = vmatprep.subr.mxu0 0.0
    %1955 = vmatpush2.msra.mxu0 0.0
    %1956 = vmatprep.subr.mxu0 0.0
    %1957 = vmatpush2.msra.mxu0 0.0
    %1958 = vmatprep.subr.mxu0 0.0
    %1959 = vmatpush2.msra.mxu0 0.0
    %1960 = vmatprep.subr.mxu0 0.0
    %1961 = vmatpush2.msra.mxu0 0.0
    %1962 = vmatprep.subr.mxu0 0.0
    %1963 = vmatpush2.msra.mxu0 0.0
    %1964 = vmatprep.subr.mxu0 0.0
    %1965 = vmatpush2.msra.mxu0 0.0
    %1966 = vmatprep.subr.mxu0 0.0
    %1967 = vmatpush2.msra.mxu0 0.0
    %1968 = vmatprep.subr.mxu0 0.0
    %1969 = vmatpush2.msra.mxu0 0.0
    %1970 = vmatprep.subr.mxu0 0.0
    %1971 = vmatpush2.msra.mxu0 0.0
    %1972 = vmatprep.subr.mxu0 0.0
    %1973 = vmatpush2.msra.mxu0 0.0
    %1974 = vmatprep.subr.mxu0 0.0
    %1975 = vmatpush2.msra.mxu0 0.0
    %1976 = vmatprep.mubr.f32.mxu0 0.0
    %1977 = vmatmul.mubr.f32.gmra.mxu0 %v1907
    %v1978 = vpop.f32.mrf.mxu0
    %v1979 = vadd.f32 %v1904, %v1978
    %v1980 = vpop.f32.mrf.mxu0
    %1981 = vmatprep.mubr.f32.mxu0 0.0
    %1982 = vmatmul.mubr.f32.gmra.mxu0 %v1910
    %v1983 = vpop.f32.mrf.mxu0
    %v1984 = vadd.f32 %v1904, %v1983
    %v1985 = vpop.f32.mrf.mxu0
    %1986 = vdwg.mxu0
    %v1987 = vmul.f32 %v1979, 0.3
    %v1988 = vmul.f32 %v1984, 0.3
    %v1989 = vadd.f32 %v1705, %v1987
    %v1990 = vadd.f32 %v1706, %v1988
    %v1991 = vmax.f32 %v1989, 0.0
    %v1992 = vmax.f32 %v1990, 0.0
    %s1993 = scalar_lea.vmem %s3, 384
    %v1994 = vld [vmem:[%s1993] sm:$0xff]
    %v1995 = vld [vmem:[%s1993 + $0x8] sm:$0xff]
    %v1996 = vld [vmem:[%s1993 + $0x10] sm:$0xff]
    %v1997 = vld [vmem:[%s1993 + $0x18] sm:$0xff]
    %v1998 = vld [vmem:[%s1993 + $0x20] sm:$0xff]
    %v1999 = vld [vmem:[%s1993 + $0x28] sm:$0xff]
    %v2000 = vld [vmem:[%s1993 + $0x30] sm:$0xff]
    %v2001 = vld [vmem:[%s1993 + $0x38] sm:$0xff]
    %v2002 = vld [vmem:[%s1993 + $0x40] sm:$0xff]
    %v2003 = vld [vmem:[%s1993 + $0x48] sm:$0xff]
    %v2004 = vld [vmem:[%s1993 + $0x50] sm:$0xff]
    %v2005 = vld [vmem:[%s1993 + $0x58] sm:$0xff]
    %s2006 = scalar_lea.vmem %s4, 4
    %v2007 = vld [vmem:[%s2006] sm:$0x1]
    %v2010 = vrot.slane %v1991, 7
    %v2011 = vrot.slane %v1992, 7
    %v2012 = vsel %vm863, %v2010, %v2011
    %v2015 = vsel %vm863, 0.0, %v2010
    %v2016 = vrot.slane %v1991, 1
    %v2017 = vrot.slane %v1992, 1
    %v2018 = vsel %vm870, %v2016, %v2017
    %v2021 = vsel %vm870, %v2017, 0.0
    %v2022 = vsel %vm879, %v2015, 0.0
    %v2023 = vsel %vm880, %v2012, 0.0
    %v2024 = vsel %vm885, %v2018, 0.0
    %v2025 = vsel %vm886, %v2021, 0.0
    %2026 = vrot.lane.b32.xlu0 %v1991, 32
    %v2027 = vpop.permute.xlu0 %2026
    %2028 = vrot.lane.b32.xlu0 %v1992, 32
    %v2029 = vpop.permute.xlu0 %2028
    %2034 = vrot.lane.b32.xlu0 %v2024, 64
    %v2035 = vpop.permute.xlu0 %2034
    %2036 = vrot.lane.b32.xlu0 %v2025, 64
    %v2037 = vpop.permute.xlu0 %2036
    %v2040 = vsel %vm903, %v2022, %v2027
    %v2041 = vsel %vm903, %v2023, %v2029
    %v2042 = vsel %vm906, %v2040, %v2035
    %v2043 = vsel %vm906, %v2041, %v2037
    %v2045 = vlaneseq
    %v2046 = vshrl.u32 %v2045, 7
    %v2047 = vsub.s32 0, %v2046
    %v2048 = vrot.slane %v2007, %v2047
    %v2051 = vsel %vm915, %v2042, 0
    %v2054 = vsel %vm915, %v2043, 0
    %2056 = vmatprep.subr.mxu0 0.0
    %2057 = vmatpush1.msra.mxu0 0.0
    %2058 = vmatprep.subr.mxu0 0.0
    %2059 = vmatpush1.msra.mxu0 0.0
    %2060 = vmatprep.subr.mxu0 0.0
    %2061 = vmatpush1.msra.mxu0 0.0
    %2062 = vmatprep.subr.mxu0 0.0
    %2063 = vmatpush1.msra.mxu0 0.0
    %2064 = vmatprep.subr.mxu0 0.0
    %2065 = vmatpush1.msra.mxu0 %v2005
    %2066 = vmatprep.subr.mxu0 0.0
    %2067 = vmatpush1.msra.mxu0 %v2004
    %2068 = vmatprep.subr.mxu0 0.0
    %2069 = vmatpush1.msra.mxu0 %v2003
    %2070 = vmatprep.subr.mxu0 0.0
    %2071 = vmatpush1.msra.mxu0 %v2002
    %2072 = vmatprep.subr.mxu0 0.0
    %2073 = vmatpush1.msra.mxu0 %v2001
    %2074 = vmatprep.subr.mxu0 0.0
    %2075 = vmatpush1.msra.mxu0 %v2000
    %2076 = vmatprep.subr.mxu0 0.0
    %2077 = vmatpush1.msra.mxu0 %v1999
    %2078 = vmatprep.subr.mxu0 0.0
    %2079 = vmatpush1.msra.mxu0 %v1998
    %2080 = vmatprep.subr.mxu0 0.0
    %2081 = vmatpush1.msra.mxu0 %v1997
    %2082 = vmatprep.subr.mxu0 0.0
    %2083 = vmatpush1.msra.mxu0 %v1996
    %2084 = vmatprep.subr.mxu0 0.0
    %2085 = vmatpush1.msra.mxu0 %v1995
    %2086 = vmatprep.subr.mxu0 0.0
    %2087 = vmatpush1.msra.mxu0 %v1994
    %2088 = vmatprep.subr.mxu0 0.0
    %2089 = vmatpush2.msra.mxu0 0.0
    %2090 = vmatprep.subr.mxu0 0.0
    %2091 = vmatpush2.msra.mxu0 0.0
    %2092 = vmatprep.subr.mxu0 0.0
    %2093 = vmatpush2.msra.mxu0 0.0
    %2094 = vmatprep.subr.mxu0 0.0
    %2095 = vmatpush2.msra.mxu0 0.0
    %2096 = vmatprep.subr.mxu0 0.0
    %2097 = vmatpush2.msra.mxu0 0.0
    %2098 = vmatprep.subr.mxu0 0.0
    %2099 = vmatpush2.msra.mxu0 0.0
    %2100 = vmatprep.subr.mxu0 0.0
    %2101 = vmatpush2.msra.mxu0 0.0
    %2102 = vmatprep.subr.mxu0 0.0
    %2103 = vmatpush2.msra.mxu0 0.0
    %2104 = vmatprep.subr.mxu0 0.0
    %2105 = vmatpush2.msra.mxu0 0.0
    %2106 = vmatprep.subr.mxu0 0.0
    %2107 = vmatpush2.msra.mxu0 0.0
    %2108 = vmatprep.subr.mxu0 0.0
    %2109 = vmatpush2.msra.mxu0 0.0
    %2110 = vmatprep.subr.mxu0 0.0
    %2111 = vmatpush2.msra.mxu0 0.0
    %2112 = vmatprep.subr.mxu0 0.0
    %2113 = vmatpush2.msra.mxu0 0.0
    %2114 = vmatprep.subr.mxu0 0.0
    %2115 = vmatpush2.msra.mxu0 0.0
    %2116 = vmatprep.subr.mxu0 0.0
    %2117 = vmatpush2.msra.mxu0 0.0
    %2118 = vmatprep.subr.mxu0 0.0
    %2119 = vmatpush2.msra.mxu0 0.0
    %2120 = vmatprep.mubr.f32.mxu0 0.0
    %2121 = vmatmul.mubr.f32.gmra.mxu0 %v2051
    %v2122 = vpop.f32.mrf.mxu0
    %v2123 = vadd.f32 %v2048, %v2122
    %v2124 = vpop.f32.mrf.mxu0
    %2125 = vmatprep.mubr.f32.mxu0 0.0
    %2126 = vmatmul.mubr.f32.gmra.mxu0 %v2054
    %v2127 = vpop.f32.mrf.mxu0
    %v2128 = vadd.f32 %v2048, %v2127
    %v2129 = vpop.f32.mrf.mxu0
    %2130 = vdwg.mxu0
    %v2131 = vmax.f32 %v2123, 0.0
    %v2132 = vmax.f32 %v2128, 0.0
    %s2133 = scalar_lea.vmem %s5, 384
    %v2134 = vld [vmem:[%s2133] sm:$0xff]
    %v2135 = vld [vmem:[%s2133 + $0x8] sm:$0xff]
    %v2136 = vld [vmem:[%s2133 + $0x10] sm:$0xff]
    %v2137 = vld [vmem:[%s2133 + $0x18] sm:$0xff]
    %v2138 = vld [vmem:[%s2133 + $0x20] sm:$0xff]
    %v2139 = vld [vmem:[%s2133 + $0x28] sm:$0xff]
    %v2140 = vld [vmem:[%s2133 + $0x30] sm:$0xff]
    %v2141 = vld [vmem:[%s2133 + $0x38] sm:$0xff]
    %v2142 = vld [vmem:[%s2133 + $0x40] sm:$0xff]
    %v2143 = vld [vmem:[%s2133 + $0x48] sm:$0xff]
    %v2144 = vld [vmem:[%s2133 + $0x50] sm:$0xff]
    %v2145 = vld [vmem:[%s2133 + $0x58] sm:$0xff]
    %s2146 = scalar_lea.vmem %s6, 4
    %v2147 = vld [vmem:[%s2146] sm:$0x1]
    %v2150 = vrot.slane %v2131, 7
    %v2151 = vrot.slane %v2132, 7
    %v2152 = vsel %vm863, %v2150, %v2151
    %v2155 = vsel %vm863, 0.0, %v2150
    %v2156 = vrot.slane %v2131, 1
    %v2157 = vrot.slane %v2132, 1
    %v2158 = vsel %vm870, %v2156, %v2157
    %v2161 = vsel %vm870, %v2157, 0.0
    %v2162 = vsel %vm879, %v2155, 0.0
    %v2163 = vsel %vm880, %v2152, 0.0
    %v2164 = vsel %vm885, %v2158, 0.0
    %v2165 = vsel %vm886, %v2161, 0.0
    %2166 = vrot.lane.b32.xlu0 %v2131, 32
    %v2167 = vpop.permute.xlu0 %2166
    %2168 = vrot.lane.b32.xlu0 %v2132, 32
    %v2169 = vpop.permute.xlu0 %2168
    %2174 = vrot.lane.b32.xlu0 %v2164, 64
    %v2175 = vpop.permute.xlu0 %2174
    %2176 = vrot.lane.b32.xlu0 %v2165, 64
    %v2177 = vpop.permute.xlu0 %2176
    %v2180 = vsel %vm903, %v2162, %v2167
    %v2181 = vsel %vm903, %v2163, %v2169
    %v2182 = vsel %vm906, %v2180, %v2175
    %v2183 = vsel %vm906, %v2181, %v2177
    %v2185 = vlaneseq
    %v2186 = vshrl.u32 %v2185, 7
    %v2187 = vsub.s32 0, %v2186
    %v2188 = vrot.slane %v2147, %v2187
    %v2191 = vsel %vm915, %v2182, 0
    %v2194 = vsel %vm915, %v2183, 0
    %2196 = vmatprep.subr.mxu0 0.0
    %2197 = vmatpush1.msra.mxu0 0.0
    %2198 = vmatprep.subr.mxu0 0.0
    %2199 = vmatpush1.msra.mxu0 0.0
    %2200 = vmatprep.subr.mxu0 0.0
    %2201 = vmatpush1.msra.mxu0 0.0
    %2202 = vmatprep.subr.mxu0 0.0
    %2203 = vmatpush1.msra.mxu0 0.0
    %2204 = vmatprep.subr.mxu0 0.0
    %2205 = vmatpush1.msra.mxu0 %v2145
    %2206 = vmatprep.subr.mxu0 0.0
    %2207 = vmatpush1.msra.mxu0 %v2144
    %2208 = vmatprep.subr.mxu0 0.0
    %2209 = vmatpush1.msra.mxu0 %v2143
    %2210 = vmatprep.subr.mxu0 0.0
    %2211 = vmatpush1.msra.mxu0 %v2142
    %2212 = vmatprep.subr.mxu0 0.0
    %2213 = vmatpush1.msra.mxu0 %v2141
    %2214 = vmatprep.subr.mxu0 0.0
    %2215 = vmatpush1.msra.mxu0 %v2140
    %2216 = vmatprep.subr.mxu0 0.0
    %2217 = vmatpush1.msra.mxu0 %v2139
    %2218 = vmatprep.subr.mxu0 0.0
    %2219 = vmatpush1.msra.mxu0 %v2138
    %2220 = vmatprep.subr.mxu0 0.0
    %2221 = vmatpush1.msra.mxu0 %v2137
    %2222 = vmatprep.subr.mxu0 0.0
    %2223 = vmatpush1.msra.mxu0 %v2136
    %2224 = vmatprep.subr.mxu0 0.0
    %2225 = vmatpush1.msra.mxu0 %v2135
    %2226 = vmatprep.subr.mxu0 0.0
    %2227 = vmatpush1.msra.mxu0 %v2134
    %2228 = vmatprep.subr.mxu0 0.0
    %2229 = vmatpush2.msra.mxu0 0.0
    %2230 = vmatprep.subr.mxu0 0.0
    %2231 = vmatpush2.msra.mxu0 0.0
    %2232 = vmatprep.subr.mxu0 0.0
    %2233 = vmatpush2.msra.mxu0 0.0
    %2234 = vmatprep.subr.mxu0 0.0
    %2235 = vmatpush2.msra.mxu0 0.0
    %2236 = vmatprep.subr.mxu0 0.0
    %2237 = vmatpush2.msra.mxu0 0.0
    %2238 = vmatprep.subr.mxu0 0.0
    %2239 = vmatpush2.msra.mxu0 0.0
    %2240 = vmatprep.subr.mxu0 0.0
    %2241 = vmatpush2.msra.mxu0 0.0
    %2242 = vmatprep.subr.mxu0 0.0
    %2243 = vmatpush2.msra.mxu0 0.0
    %2244 = vmatprep.subr.mxu0 0.0
    %2245 = vmatpush2.msra.mxu0 0.0
    %2246 = vmatprep.subr.mxu0 0.0
    %2247 = vmatpush2.msra.mxu0 0.0
    %2248 = vmatprep.subr.mxu0 0.0
    %2249 = vmatpush2.msra.mxu0 0.0
    %2250 = vmatprep.subr.mxu0 0.0
    %2251 = vmatpush2.msra.mxu0 0.0
    %2252 = vmatprep.subr.mxu0 0.0
    %2253 = vmatpush2.msra.mxu0 0.0
    %2254 = vmatprep.subr.mxu0 0.0
    %2255 = vmatpush2.msra.mxu0 0.0
    %2256 = vmatprep.subr.mxu0 0.0
    %2257 = vmatpush2.msra.mxu0 0.0
    %2258 = vmatprep.subr.mxu0 0.0
    %2259 = vmatpush2.msra.mxu0 0.0
    %2260 = vmatprep.mubr.f32.mxu0 0.0
    %2261 = vmatmul.mubr.f32.gmra.mxu0 %v2191
    %v2262 = vpop.f32.mrf.mxu0
    %v2263 = vadd.f32 %v2188, %v2262
    %v2264 = vpop.f32.mrf.mxu0
    %2265 = vmatprep.mubr.f32.mxu0 0.0
    %2266 = vmatmul.mubr.f32.gmra.mxu0 %v2194
    %v2267 = vpop.f32.mrf.mxu0
    %v2268 = vadd.f32 %v2188, %v2267
    %v2269 = vpop.f32.mrf.mxu0
    %2270 = vdwg.mxu0
    %v2271 = vmul.f32 %v2263, 0.3
    %v2272 = vmul.f32 %v2268, 0.3
    %v2273 = vadd.f32 %v1989, %v2271
    %v2274 = vadd.f32 %v1990, %v2272
    %v2275 = vld [vmem:[%s7] sm:$0xff]
    %v2276 = vld [vmem:[%s7 + $0x8] sm:$0xff]
    %v2277 = vld [vmem:[%s7 + $0x10] sm:$0xff]
    %v2278 = vld [vmem:[%s7 + $0x18] sm:$0xff]
    %v2279 = vld [vmem:[%s8] sm:$0x1]
    %v2281 = vlaneseq
    %v2282 = vshrl.u32 %v2281, 7
    %v2283 = vsub.s32 0, %v2282
    %v2284 = vrot.slane %v2279, %v2283
    %v2287 = vsel %vm903, %v2273, 0
    %v2290 = vsel %vm903, %v2274, 0
    %2292 = vmatprep.subr.mxu0 0.0
    %2293 = vmatpush1.msra.mxu0 0.0
    %2294 = vmatprep.subr.mxu0 0.0
    %2295 = vmatpush1.msra.mxu0 0.0
    %2296 = vmatprep.subr.mxu0 0.0
    %2297 = vmatpush1.msra.mxu0 0.0
    %2298 = vmatprep.subr.mxu0 0.0
    %2299 = vmatpush1.msra.mxu0 0.0
    %2300 = vmatprep.subr.mxu0 0.0
    %2301 = vmatpush1.msra.mxu0 0.0
    %2302 = vmatprep.subr.mxu0 0.0
    %2303 = vmatpush1.msra.mxu0 0.0
    %2304 = vmatprep.subr.mxu0 0.0
    %2305 = vmatpush1.msra.mxu0 0.0
    %2306 = vmatprep.subr.mxu0 0.0
    %2307 = vmatpush1.msra.mxu0 0.0
    %2308 = vmatprep.subr.mxu0 0.0
    %2309 = vmatpush1.msra.mxu0 0.0
    %2310 = vmatprep.subr.mxu0 0.0
    %2311 = vmatpush1.msra.mxu0 0.0
    %2312 = vmatprep.subr.mxu0 0.0
    %2313 = vmatpush1.msra.mxu0 0.0
    %2314 = vmatprep.subr.mxu0 0.0
    %2315 = vmatpush1.msra.mxu0 0.0
    %2316 = vmatprep.subr.mxu0 0.0
    %2317 = vmatpush1.msra.mxu0 %v2278
    %2318 = vmatprep.subr.mxu0 0.0
    %2319 = vmatpush1.msra.mxu0 %v2277
    %2320 = vmatprep.subr.mxu0 0.0
    %2321 = vmatpush1.msra.mxu0 %v2276
    %2322 = vmatprep.subr.mxu0 0.0
    %2323 = vmatpush1.msra.mxu0 %v2275
    %2324 = vmatprep.subr.mxu0 0.0
    %2325 = vmatpush2.msra.mxu0 0.0
    %2326 = vmatprep.subr.mxu0 0.0
    %2327 = vmatpush2.msra.mxu0 0.0
    %2328 = vmatprep.subr.mxu0 0.0
    %2329 = vmatpush2.msra.mxu0 0.0
    %2330 = vmatprep.subr.mxu0 0.0
    %2331 = vmatpush2.msra.mxu0 0.0
    %2332 = vmatprep.subr.mxu0 0.0
    %2333 = vmatpush2.msra.mxu0 0.0
    %2334 = vmatprep.subr.mxu0 0.0
    %2335 = vmatpush2.msra.mxu0 0.0
    %2336 = vmatprep.subr.mxu0 0.0
    %2337 = vmatpush2.msra.mxu0 0.0
    %2338 = vmatprep.subr.mxu0 0.0
    %2339 = vmatpush2.msra.mxu0 0.0
    %2340 = vmatprep.subr.mxu0 0.0
    %2341 = vmatpush2.msra.mxu0 0.0
    %2342 = vmatprep.subr.mxu0 0.0
    %2343 = vmatpush2.msra.mxu0 0.0
    %2344 = vmatprep.subr.mxu0 0.0
    %2345 = vmatpush2.msra.mxu0 0.0
    %2346 = vmatprep.subr.mxu0 0.0
    %2347 = vmatpush2.msra.mxu0 0.0
    %2348 = vmatprep.subr.mxu0 0.0
    %2349 = vmatpush2.msra.mxu0 0.0
    %2350 = vmatprep.subr.mxu0 0.0
    %2351 = vmatpush2.msra.mxu0 0.0
    %2352 = vmatprep.subr.mxu0 0.0
    %2353 = vmatpush2.msra.mxu0 0.0
    %2354 = vmatprep.subr.mxu0 0.0
    %2355 = vmatpush2.msra.mxu0 0.0
    %2356 = vmatprep.mubr.f32.mxu0 0.0
    %2357 = vmatmul.mubr.f32.gmra.mxu0 %v2287
    %v2358 = vpop.f32.mrf.mxu0
    %v2359 = vadd.f32 %v2284, %v2358
    %v2360 = vpop.f32.mrf.mxu0
    %2361 = vmatprep.mubr.f32.mxu0 0.0
    %2362 = vmatmul.mubr.f32.gmra.mxu0 %v2290
    %v2363 = vpop.f32.mrf.mxu0
    %v2364 = vadd.f32 %v2284, %v2363
    %v2365 = vpop.f32.mrf.mxu0
    %2366 = vdwg.mxu0
    %v2367 = vld [vmem:[%s9] sm:$0xff]
    %v2368 = vld [vmem:[%s9 + $0x8] sm:$0xff]
    %v2369 = vadd.f32 %v2359, %v2367
    %v2370 = vadd.f32 %v2364, %v2368
    %v2371 = vmul.f32 %v2369, 1.3333334
    %v2372 = vmul.f32 %v2370, 1.3333334
    %vm2373 = vcmask 130048
    %v2374 = vsel %vm2373, %v2371, -inf
    %2375 = vmax.xlane.f32.xlu0 %v2374
    %v2376 = vpop.xlane.xlu0 %2375
    %v2377 = vsel %vm2373, %v2372, -inf
    %2378 = vmax.xlane.f32.xlu0 %v2377
    %v2379 = vpop.xlane.xlu0 %2378
    %v2380 = vsub.f32 %v2371, %v2376
    %v2381 = vsub.f32 %v2372, %v2379
    %v2382 = vmul.f32 %v2380, 1.442695
    %v2383 = vpow.pop %v2382
    %v2384 = vmul.f32 %v2381, 1.442695
    %v2385 = vpow.pop %v2384
    %v2386 = vsel %vm2373, %v2383, 0.0
    %2387 = vadd.xlane.f32.xlu0 %v2386
    %v2388 = vpop.xlane.xlu0 %2387
    %v2389 = vsel %vm2373, %v2385, 0.0
    %2390 = vadd.xlane.f32.xlu0 %v2389
    %v2391 = vpop.xlane.xlu0 %2390
    %v2392 = vrcp.pop %v2388
    %v2393 = vrcp.pop %v2391
    %v2394 = vmul.f32 %v2383, %v2392
    %v2395 = vmul.f32 %v2385, %v2393
    %2396 = vst.msk [vmem:[#allocation3] sm:$0xff] %vm2373, %v2394
    %2397 = vst.msk [vmem:[#allocation3 + $0x8] sm:$0xff] %vm2373, %v2395
    // Predicated region
    $region42: #{generator_forward.1} parent=1 // pred_check
      _
    $region43: #{generator_forward.1} parent=1 // pred_check_branch
      %2399 = sbr.rel (0) target = $region45
    $region44: #{generator_forward.1} parent=1 // pred_region
      %s2401 = ssub.s32 256, 256
      %2402 = vsyncadd [#allocation4], %s2401
      %s2403 = sshll.u32 [#allocation3], 4
      %s2404 = int_to_ptr.vmem [resolvable:$true] %s2403
      %2409 = dma.vmem_to_hbm [thread:$0]  %s2404, 256, %s10, [#allocation4], 128, 128, 8
    $region45: #{generator_forward.1} parent=1 // pred_fallthru
      _
    // Predicated region
    $region46: #{generator_forward.1} parent=1 // pred_check
      _
    $region47: #{generator_forward.1} parent=1 // pred_check_branch
      %2411 = sbr.rel (0) target = $region49
    $region48: #{generator_forward.1} parent=1 // pred_region
      %2412 = dma.done [#allocation4], 256
    $region49: #{generator_forward.1} parent=1 // pred_fallthru
      _
    %2413 = vsyncpa [#allocation4], 1

</llo_original>
